<compile_context>
chip_gen: v6e
topology: v6e:2x2x1
jax: 0.10.0
libtpu: 0.0.40
codegen_flags: <defaults>
</compile_context>

<pallas_src>
import functools

import numpy as np
import jax
import jax.numpy as jnp
from jax import lax
from jax.experimental import pallas as pl
from jax.experimental.pallas import tpu as pltpu

F32 = jnp.float32

# 3x3 taps in row-major (ky, kx) order; tap t = ky*3+kx -> offset (dy, dx) = (ky-1, kx-1)
_TAPS = tuple((dy, dx) for dy in (-1, 0, 1) for dx in (-1, 0, 1))


# ----------------------------------------------------------------------------
# in-kernel math helpers (only ops that lower on Mosaic TPU)
# ----------------------------------------------------------------------------
def _gelu_exact(x):
    # torch F.gelu default = exact erf GELU; erf via the Numerical-Recipes erfc
    # polynomial (|err| < 1.2e-7 ~ f32 roundoff).  Kept as plain VPU math for
    # guaranteed Mosaic lowering.
    a = jnp.abs(x)
    t = 1.0 / (1.0 + 0.5 * a)
    y = t * jnp.exp(
        -a * a - 1.26551223
        + t * (1.00002368
        + t * (0.37409196
        + t * (0.09678418
        + t * (-0.18628806
        + t * (0.27886807
        + t * (-1.13520398
        + t * (1.48851587
        + t * (-0.82215223
        + t * 0.17087277)))))))))
    erf = jnp.where(x >= 0, 1.0 - y, y - 1.0)
    return 0.5 * x * (1.0 + erf)


# ----------------------------------------------------------------------------
# the single fused kernel
# ----------------------------------------------------------------------------
def _decoder_kernel(xb_ref, xd_ref, pos_h_ref, pos_w_ref, attn_bias_ref,
                    rwb_ref, rwd_ref,
                    ln1w_ref, ln1b_ref, qkvw_ref, qkvdw_ref, temp_ref, projw_ref,
                    ln2w_ref, ln2b_ref, ffniw_ref, ffndw_ref, ffnow_ref,
                    outw1_ref, outw2_ref, o_ref,
                    *, B, H, W, C, hidden, num_blocks):
    N = H * W
    R = B * N

    # ---- helper tables, computed ONCE per kernel invocation ----------------
    ph = pos_h_ref[...]                       # (1, R) int32: h coord of lane j
    pw = pos_w_ref[...]                       # (1, R) int32: w coord of lane j
    lane = lax.broadcasted_iota(jnp.int32, (1, R), 1)
    batch_mask = [((lane >= b * N) & (lane < (b + 1) * N)).astype(F32)
                  for b in range(B)]
    tap_mask = []
    for dy, dx in _TAPS:
        if dy == 0 and dx == 0:
            tap_mask.append(None)             # centre tap: always valid
        else:
            ok = ((ph + dy >= 0) & (ph + dy < H) & (pw + dx >= 0) & (pw + dx < W))
            tap_mask.append(ok.astype(F32))
    attn_bias = attn_bias_ref[...]            # (B*C, B*C): 0 in-batch/in-head, -1e30 else

    def shift_tap(z, t):
        # value of z at spatial offset (dy, dx) of the same image, zero outside.
        dy, dx = _TAPS[t]
        d = dy * W + dx
        if d == 0:
            return z
        # lane roll can wrap across batch/image edges, but exactly those
        # positions are zeroed by the precomputed boundary mask.
        return pltpu.roll(z, shift=(-d) % R, axis=1) * tap_mask[t]

    def dwconv3x3(z, dw):                     # z: (Cz, R); dw: (Cz, 9) lane-dense taps
        acc = z * dw[:, 4:5]                  # centre tap: no roll, no mask
        for t in range(9):
            if t != 4:
                acc = acc + shift_tap(z, t) * dw[:, t:t + 1]
        return acc

    def conv3x3_im2col(z, w):                 # z: (Cin, R); w: (Cout, 9*Cin)
        cols = jnp.concatenate([shift_tap(z, t) for t in range(9)], axis=0)
        return jnp.dot(w, cols, preferred_element_type=F32)

    def layer_norm(z, wt, bs):                # WithBias LN over channels (sublanes)
        mu = jnp.mean(z, axis=0, keepdims=True)
        zc = z - mu
        var = jnp.mean(zc * zc, axis=0, keepdims=True)   # unbiased=False
        return zc * lax.rsqrt(var + 1e-5) * wt + bs

    # ----------------- concat + reduce_channel (1x1 conv) -------------------
    x = (jnp.dot(rwb_ref[...], xb_ref[...].astype(F32), preferred_element_type=F32)
         + jnp.dot(rwd_ref[...], xd_ref[...].astype(F32), preferred_element_type=F32))

    # ---------------------- TransformerBlock stack --------------------------
    for blk in range(num_blocks):
        # --- Attention branch ---
        y1 = layer_norm(x, ln1w_ref[blk], ln1b_ref[blk])
        qkv = dwconv3x3(jnp.dot(qkvw_ref[blk], y1, preferred_element_type=F32),
                        qkvdw_ref[blk])                                   # (3C, R)
        q = qkv[0:C, :]
        k = qkv[C:2 * C, :]
        v = qkv[2 * C:3 * C, :]

        # batches stacked along sublanes -> one Gram / softmax / PV for all batches
        q_st = jnp.concatenate([q * batch_mask[b] for b in range(B)], axis=0)   # (BC, R)
        k_st = jnp.concatenate([k * batch_mask[b] for b in range(B)], axis=0)
        v_st = jnp.concatenate([v for _ in range(B)], axis=0)
        temp_st = jnp.concatenate([temp_ref[blk] for _ in range(B)], axis=0)    # (BC, 1)

        # F.normalize(dim=-1, eps=1e-12): x * rsqrt(max(|x|^2, eps^2))
        qn = q_st * lax.rsqrt(jnp.maximum(jnp.sum(q_st * q_st, axis=1, keepdims=True), 1e-24))
        kn = k_st * lax.rsqrt(jnp.maximum(jnp.sum(k_st * k_st, axis=1, keepdims=True), 1e-24))

        # (BC, BC) Gram; cross-batch/cross-head entries pushed to -1e30 so the
        # single softmax equals the per-(batch, head) softmax exactly.
        logits = lax.dot_general(qn, kn, (((1,), (1,)), ((), ())),
                                 preferred_element_type=F32) * temp_st + attn_bias
        logits = logits - jnp.max(logits, axis=1, keepdims=True)
        p = jnp.exp(logits)
        p = p * pl.reciprocal(jnp.sum(p, axis=1, keepdims=True), approx=True)
        o_st = jnp.dot(p, v_st, preferred_element_type=F32)                     # (BC, R)

        attn = o_st[0:C, :] * batch_mask[0]
        for b in range(1, B):
            attn = attn + o_st[b * C:(b + 1) * C, :] * batch_mask[b]
        x = x + jnp.dot(projw_ref[blk], attn, preferred_element_type=F32)

        # --- Gated-DConv FeedForward branch ---
        y2 = layer_norm(x, ln2w_ref[blk], ln2b_ref[blk])
        g = dwconv3x3(jnp.dot(ffniw_ref[blk], y2, preferred_element_type=F32),
                      ffndw_ref[blk])                                     # (2*hidden, R)
        act = _gelu_exact(g[0:hidden, :]) * g[hidden:2 * hidden, :]
        x = x + jnp.dot(ffnow_ref[blk], act, preferred_element_type=F32)

    # ------------------------ output conv head ------------------------------
    h1 = conv3x3_im2col(x, outw1_ref[...])               # (C//2, R)
    h1 = jnp.where(h1 >= 0.0, h1, 0.01 * h1)             # nn.LeakyReLU() slope 0.01
    o_ref[...] = conv3x3_im2col(h1, outw2_ref[...]).astype(o_ref.dtype)


# ----------------------------------------------------------------------------
# wrapper: NCHW <-> channel-major glue + the single pallas_call
# ----------------------------------------------------------------------------
def restormer_decoder_hr(base_feature, detail_feature, params, *,
                         heads, hidden, H, W, num_blocks):
    """base_feature, detail_feature: NCHW (B, dim, H, W). Returns out_enc_level1 NCHW."""
    B, C, hh, ww = base_feature.shape
    assert (hh, ww) == (H, W)
    assert C % heads == 0
    assert C % 8 == 0 and hidden % 8 == 0 and (C // 2) % 8 == 0, \
        "channel splits must stay f32 sublane-tile aligned"
    N = H * W
    R = B * N

    def to_cm(t):  # NCHW -> channel-major (C, B*H*W), lane j = b*N + h*W + w
        return t.transpose(1, 0, 2, 3).reshape(t.shape[1], R)

    # static lane-coordinate / attention-bias tables (jit-time constants, tiny)
    hw = np.arange(N, dtype=np.int32)
    pos_h = jnp.asarray(np.tile(hw // W, B)).reshape(1, R)
    pos_w = jnp.asarray(np.tile(hw % W, B)).reshape(1, R)
    hs = C // heads
    idx = np.arange(B * C, dtype=np.int32)
    same = (((idx[:, None] // C) == (idx[None, :] // C)) &
            (((idx[:, None] % C) // hs) == ((idx[None, :] % C) // hs)))
    attn_bias = jnp.asarray(np.where(same, 0.0, -1e30).astype(np.float32))

    args = (to_cm(base_feature), to_cm(detail_feature), pos_h, pos_w, attn_bias,
            params["reduce_w_base"], params["reduce_w_detail"],
            params["ln1_w"], params["ln1_b"], params["qkv_w"], params["qkv_dw"],
            params["temp"], params["proj_w"],
            params["ln2_w"], params["ln2_b"],
            params["ffn_in_w"], params["ffn_dw"], params["ffn_out_w"],
            params["out_w1"], params["out_w2"])

    Cout = params["out_w2"].shape[0]
    kernel = functools.partial(_decoder_kernel, B=B, H=H, W=W, C=C,
                               hidden=hidden, num_blocks=num_blocks)
    y = pl.pallas_call(
        kernel,
        out_shape=jax.ShapeDtypeStruct((Cout, R), base_feature.dtype),
    )(*args)
    return y.reshape(Cout, B, H, W).transpose(1, 0, 2, 3)


# ----------------------------------------------------------------------------
# deterministic parameter init (bias-free, kernel-friendly weight layouts)
# ----------------------------------------------------------------------------
def init_params(key, *, dim, heads, hidden, out_channels, num_blocks):
    kit = iter(jax.random.split(key, 32))

    def rnd(*shape):
        return 0.05 * jax.random.normal(next(kit), shape, F32)

    return dict(
        # reduce_channel: torch (dim, 2*dim, 1, 1) split into base / detail halves
        reduce_w_base=rnd(dim, dim),
        reduce_w_detail=rnd(dim, dim),
        # per-block parameters stacked on a leading num_blocks axis
        ln1_w=jnp.ones((num_blocks, dim, 1), F32),
        ln1_b=jnp.zeros((num_blocks, dim, 1), F32),
        qkv_w=rnd(num_blocks, 3 * dim, dim),        # torch (3*dim, dim, 1, 1)
        qkv_dw=rnd(num_blocks, 3 * dim, 9),         # torch (3*dim, 1, 3, 3) -> (3*dim, 9)
        temp=jnp.ones((num_blocks, dim, 1), F32),   # torch (heads,1,1) repeated per channel
        proj_w=rnd(num_blocks, dim, dim),
        ln2_w=jnp.ones((num_blocks, dim, 1), F32),
        ln2_b=jnp.zeros((num_blocks, dim, 1), F32),
        ffn_in_w=rnd(num_blocks, 2 * hidden, dim),
        ffn_dw=rnd(num_blocks, 2 * hidden, 9),
        ffn_out_w=rnd(num_blocks, dim, hidden),
        # output head, im2col layout: torch (Cout, Cin, 3, 3) -> permute(0,2,3,1).reshape(Cout, 9*Cin)
        out_w1=rnd(dim // 2, 9 * dim),
        out_w2=rnd(out_channels, 9 * (dim // 2)),
    )


# ----------------------------------------------------------------------------
if __name__ == "__main__":
    B, DIM, H, W = 2, 16, 8, 8
    HEADS = 4
    FFN_EXPANSION = 2
    HIDDEN = int(DIM * FFN_EXPANSION)
    OUT_CHANNELS = 8
    NUM_BLOCKS = 2

    key = jax.random.PRNGKey(0)
    kp, k_base, k_detail = jax.random.split(key, 3)
    params = init_params(kp, dim=DIM, heads=HEADS, hidden=HIDDEN,
                         out_channels=OUT_CHANNELS, num_blocks=NUM_BLOCKS)
    base_feature = jax.random.normal(k_base, (B, DIM, H, W), F32)
    detail_feature = jax.random.normal(k_detail, (B, DIM, H, W), F32)

    fwd = jax.jit(functools.partial(restormer_decoder_hr, heads=HEADS,
                                    hidden=HIDDEN, H=H, W=W,
                                    num_blocks=NUM_BLOCKS))
    out_enc_level1 = fwd(base_feature, detail_feature, params)
    jax.block_until_ready(out_enc_level1)

    assert out_enc_level1.shape == (B, OUT_CHANNELS, H, W)
    assert bool(jnp.all(jnp.isfinite(out_enc_level1)))
    print("KERNEL_OK")
</pallas_src>

<mosaic_0001>
module attributes {stable_mosaic.version = 11 : i64} {
  func.func @_decoder_kernel(%arg0: memref<16x128xf32, #tpu.memory_space<vmem>>, %arg1: memref<16x128xf32, #tpu.memory_space<vmem>>, %arg2: memref<1x128xi32, #tpu.memory_space<vmem>>, %arg3: memref<1x128xi32, #tpu.memory_space<vmem>>, %arg4: memref<32x32xf32, #tpu.memory_space<vmem>>, %arg5: memref<16x16xf32, #tpu.memory_space<vmem>>, %arg6: memref<16x16xf32, #tpu.memory_space<vmem>>, %arg7: memref<2x16x1xf32, #tpu.memory_space<vmem>>, %arg8: memref<2x16x1xf32, #tpu.memory_space<vmem>>, %arg9: memref<2x48x16xf32, #tpu.memory_space<vmem>>, %arg10: memref<2x48x9xf32, #tpu.memory_space<vmem>>, %arg11: memref<2x16x1xf32, #tpu.memory_space<vmem>>, %arg12: memref<2x16x16xf32, #tpu.memory_space<vmem>>, %arg13: memref<2x16x1xf32, #tpu.memory_space<vmem>>, %arg14: memref<2x16x1xf32, #tpu.memory_space<vmem>>, %arg15: memref<2x64x16xf32, #tpu.memory_space<vmem>>, %arg16: memref<2x64x9xf32, #tpu.memory_space<vmem>>, %arg17: memref<2x16x32xf32, #tpu.memory_space<vmem>>, %arg18: memref<8x144xf32, #tpu.memory_space<vmem>>, %arg19: memref<8x72xf32, #tpu.memory_space<vmem>>, %arg20: memref<8x128xf32, #tpu.memory_space<vmem>>) attributes {dimension_semantics = [], scalar_prefetch = 0 : i64, scratch_operands = 0 : i64, tpu.core_type = #tpu.core_type<tc>} {
    %c0 = arith.constant 0 : index
    %c0_0 = arith.constant 0 : index
    %0 = vector.load %arg2[%c0, %c0_0] : memref<1x128xi32, #tpu.memory_space<vmem>>, vector<1x128xi32>
    %c0_1 = arith.constant 0 : index
    %c0_2 = arith.constant 0 : index
    %1 = vector.load %arg3[%c0_1, %c0_2] : memref<1x128xi32, #tpu.memory_space<vmem>>, vector<1x128xi32>
    %2 = tpu.iota {dimensions = array<i32: 1>} : vector<1x128xi32>
    %c0_i32 = arith.constant 0 : i32
    %3 = vector.broadcast %c0_i32 : i32 to vector<1x128xi32>
    %4 = arith.cmpi sge, %2, %3 : vector<1x128xi32>
    %c64_i32 = arith.constant 64 : i32
    %5 = vector.broadcast %c64_i32 : i32 to vector<1x128xi32>
    %6 = arith.cmpi slt, %2, %5 : vector<1x128xi32>
    %7 = arith.andi %4, %6 : vector<1x128xi1>
    %8 = arith.extui %7 : vector<1x128xi1> to vector<1x128xi32>
    %9 = arith.sitofp %8 : vector<1x128xi32> to vector<1x128xf32>
    %c64_i32_3 = arith.constant 64 : i32
    %10 = vector.broadcast %c64_i32_3 : i32 to vector<1x128xi32>
    %11 = arith.cmpi sge, %2, %10 : vector<1x128xi32>
    %c128_i32 = arith.constant 128 : i32
    %12 = vector.broadcast %c128_i32 : i32 to vector<1x128xi32>
    %13 = arith.cmpi slt, %2, %12 : vector<1x128xi32>
    %14 = arith.andi %11, %13 : vector<1x128xi1>
    %15 = arith.extui %14 : vector<1x128xi1> to vector<1x128xi32>
    %16 = arith.sitofp %15 : vector<1x128xi32> to vector<1x128xf32>
    %c-1_i32 = arith.constant -1 : i32
    %17 = vector.broadcast %c-1_i32 : i32 to vector<1x128xi32>
    %18 = arith.addi %0, %17 : vector<1x128xi32>
    %c0_i32_4 = arith.constant 0 : i32
    %19 = vector.broadcast %c0_i32_4 : i32 to vector<1x128xi32>
    %20 = arith.cmpi sge, %18, %19 : vector<1x128xi32>
    %c-1_i32_5 = arith.constant -1 : i32
    %21 = vector.broadcast %c-1_i32_5 : i32 to vector<1x128xi32>
    %22 = arith.addi %0, %21 : vector<1x128xi32>
    %c8_i32 = arith.constant 8 : i32
    %23 = vector.broadcast %c8_i32 : i32 to vector<1x128xi32>
    %24 = arith.cmpi slt, %22, %23 : vector<1x128xi32>
    %25 = arith.andi %20, %24 : vector<1x128xi1>
    %c-1_i32_6 = arith.constant -1 : i32
    %26 = vector.broadcast %c-1_i32_6 : i32 to vector<1x128xi32>
    %27 = arith.addi %1, %26 : vector<1x128xi32>
    %c0_i32_7 = arith.constant 0 : i32
    %28 = vector.broadcast %c0_i32_7 : i32 to vector<1x128xi32>
    %29 = arith.cmpi sge, %27, %28 : vector<1x128xi32>
    %30 = arith.andi %25, %29 : vector<1x128xi1>
    %c-1_i32_8 = arith.constant -1 : i32
    %31 = vector.broadcast %c-1_i32_8 : i32 to vector<1x128xi32>
    %32 = arith.addi %1, %31 : vector<1x128xi32>
    %c8_i32_9 = arith.constant 8 : i32
    %33 = vector.broadcast %c8_i32_9 : i32 to vector<1x128xi32>
    %34 = arith.cmpi slt, %32, %33 : vector<1x128xi32>
    %35 = arith.andi %30, %34 : vector<1x128xi1>
    %36 = arith.extui %35 : vector<1x128xi1> to vector<1x128xi32>
    %37 = arith.sitofp %36 : vector<1x128xi32> to vector<1x128xf32>
    %c-1_i32_10 = arith.constant -1 : i32
    %38 = vector.broadcast %c-1_i32_10 : i32 to vector<1x128xi32>
    %39 = arith.addi %0, %38 : vector<1x128xi32>
    %c0_i32_11 = arith.constant 0 : i32
    %40 = vector.broadcast %c0_i32_11 : i32 to vector<1x128xi32>
    %41 = arith.cmpi sge, %39, %40 : vector<1x128xi32>
    %c-1_i32_12 = arith.constant -1 : i32
    %42 = vector.broadcast %c-1_i32_12 : i32 to vector<1x128xi32>
    %43 = arith.addi %0, %42 : vector<1x128xi32>
    %c8_i32_13 = arith.constant 8 : i32
    %44 = vector.broadcast %c8_i32_13 : i32 to vector<1x128xi32>
    %45 = arith.cmpi slt, %43, %44 : vector<1x128xi32>
    %46 = arith.andi %41, %45 : vector<1x128xi1>
    %c0_i32_14 = arith.constant 0 : i32
    %47 = vector.broadcast %c0_i32_14 : i32 to vector<1x128xi32>
    %48 = arith.addi %1, %47 : vector<1x128xi32>
    %c0_i32_15 = arith.constant 0 : i32
    %49 = vector.broadcast %c0_i32_15 : i32 to vector<1x128xi32>
    %50 = arith.cmpi sge, %48, %49 : vector<1x128xi32>
    %51 = arith.andi %46, %50 : vector<1x128xi1>
    %c0_i32_16 = arith.constant 0 : i32
    %52 = vector.broadcast %c0_i32_16 : i32 to vector<1x128xi32>
    %53 = arith.addi %1, %52 : vector<1x128xi32>
    %c8_i32_17 = arith.constant 8 : i32
    %54 = vector.broadcast %c8_i32_17 : i32 to vector<1x128xi32>
    %55 = arith.cmpi slt, %53, %54 : vector<1x128xi32>
    %56 = arith.andi %51, %55 : vector<1x128xi1>
    %57 = arith.extui %56 : vector<1x128xi1> to vector<1x128xi32>
    %58 = arith.sitofp %57 : vector<1x128xi32> to vector<1x128xf32>
    %c-1_i32_18 = arith.constant -1 : i32
    %59 = vector.broadcast %c-1_i32_18 : i32 to vector<1x128xi32>
    %60 = arith.addi %0, %59 : vector<1x128xi32>
    %c0_i32_19 = arith.constant 0 : i32
    %61 = vector.broadcast %c0_i32_19 : i32 to vector<1x128xi32>
    %62 = arith.cmpi sge, %60, %61 : vector<1x128xi32>
    %c-1_i32_20 = arith.constant -1 : i32
    %63 = vector.broadcast %c-1_i32_20 : i32 to vector<1x128xi32>
    %64 = arith.addi %0, %63 : vector<1x128xi32>
    %c8_i32_21 = arith.constant 8 : i32
    %65 = vector.broadcast %c8_i32_21 : i32 to vector<1x128xi32>
    %66 = arith.cmpi slt, %64, %65 : vector<1x128xi32>
    %67 = arith.andi %62, %66 : vector<1x128xi1>
    %c1_i32 = arith.constant 1 : i32
    %68 = vector.broadcast %c1_i32 : i32 to vector<1x128xi32>
    %69 = arith.addi %1, %68 : vector<1x128xi32>
    %c0_i32_22 = arith.constant 0 : i32
    %70 = vector.broadcast %c0_i32_22 : i32 to vector<1x128xi32>
    %71 = arith.cmpi sge, %69, %70 : vector<1x128xi32>
    %72 = arith.andi %67, %71 : vector<1x128xi1>
    %c1_i32_23 = arith.constant 1 : i32
    %73 = vector.broadcast %c1_i32_23 : i32 to vector<1x128xi32>
    %74 = arith.addi %1, %73 : vector<1x128xi32>
    %c8_i32_24 = arith.constant 8 : i32
    %75 = vector.broadcast %c8_i32_24 : i32 to vector<1x128xi32>
    %76 = arith.cmpi slt, %74, %75 : vector<1x128xi32>
    %77 = arith.andi %72, %76 : vector<1x128xi1>
    %78 = arith.extui %77 : vector<1x128xi1> to vector<1x128xi32>
    %79 = arith.sitofp %78 : vector<1x128xi32> to vector<1x128xf32>
    %c0_i32_25 = arith.constant 0 : i32
    %80 = vector.broadcast %c0_i32_25 : i32 to vector<1x128xi32>
    %81 = arith.addi %0, %80 : vector<1x128xi32>
    %c0_i32_26 = arith.constant 0 : i32
    %82 = vector.broadcast %c0_i32_26 : i32 to vector<1x128xi32>
    %83 = arith.cmpi sge, %81, %82 : vector<1x128xi32>
    %c0_i32_27 = arith.constant 0 : i32
    %84 = vector.broadcast %c0_i32_27 : i32 to vector<1x128xi32>
    %85 = arith.addi %0, %84 : vector<1x128xi32>
    %c8_i32_28 = arith.constant 8 : i32
    %86 = vector.broadcast %c8_i32_28 : i32 to vector<1x128xi32>
    %87 = arith.cmpi slt, %85, %86 : vector<1x128xi32>
    %88 = arith.andi %83, %87 : vector<1x128xi1>
    %c-1_i32_29 = arith.constant -1 : i32
    %89 = vector.broadcast %c-1_i32_29 : i32 to vector<1x128xi32>
    %90 = arith.addi %1, %89 : vector<1x128xi32>
    %c0_i32_30 = arith.constant 0 : i32
    %91 = vector.broadcast %c0_i32_30 : i32 to vector<1x128xi32>
    %92 = arith.cmpi sge, %90, %91 : vector<1x128xi32>
    %93 = arith.andi %88, %92 : vector<1x128xi1>
    %c-1_i32_31 = arith.constant -1 : i32
    %94 = vector.broadcast %c-1_i32_31 : i32 to vector<1x128xi32>
    %95 = arith.addi %1, %94 : vector<1x128xi32>
    %c8_i32_32 = arith.constant 8 : i32
    %96 = vector.broadcast %c8_i32_32 : i32 to vector<1x128xi32>
    %97 = arith.cmpi slt, %95, %96 : vector<1x128xi32>
    %98 = arith.andi %93, %97 : vector<1x128xi1>
    %99 = arith.extui %98 : vector<1x128xi1> to vector<1x128xi32>
    %100 = arith.sitofp %99 : vector<1x128xi32> to vector<1x128xf32>
    %c0_i32_33 = arith.constant 0 : i32
    %101 = vector.broadcast %c0_i32_33 : i32 to vector<1x128xi32>
    %102 = arith.addi %0, %101 : vector<1x128xi32>
    %c0_i32_34 = arith.constant 0 : i32
    %103 = vector.broadcast %c0_i32_34 : i32 to vector<1x128xi32>
    %104 = arith.cmpi sge, %102, %103 : vector<1x128xi32>
    %c0_i32_35 = arith.constant 0 : i32
    %105 = vector.broadcast %c0_i32_35 : i32 to vector<1x128xi32>
    %106 = arith.addi %0, %105 : vector<1x128xi32>
    %c8_i32_36 = arith.constant 8 : i32
    %107 = vector.broadcast %c8_i32_36 : i32 to vector<1x128xi32>
    %108 = arith.cmpi slt, %106, %107 : vector<1x128xi32>
    %109 = arith.andi %104, %108 : vector<1x128xi1>
    %c1_i32_37 = arith.constant 1 : i32
    %110 = vector.broadcast %c1_i32_37 : i32 to vector<1x128xi32>
    %111 = arith.addi %1, %110 : vector<1x128xi32>
    %c0_i32_38 = arith.constant 0 : i32
    %112 = vector.broadcast %c0_i32_38 : i32 to vector<1x128xi32>
    %113 = arith.cmpi sge, %111, %112 : vector<1x128xi32>
    %114 = arith.andi %109, %113 : vector<1x128xi1>
    %c1_i32_39 = arith.constant 1 : i32
    %115 = vector.broadcast %c1_i32_39 : i32 to vector<1x128xi32>
    %116 = arith.addi %1, %115 : vector<1x128xi32>
    %c8_i32_40 = arith.constant 8 : i32
    %117 = vector.broadcast %c8_i32_40 : i32 to vector<1x128xi32>
    %118 = arith.cmpi slt, %116, %117 : vector<1x128xi32>
    %119 = arith.andi %114, %118 : vector<1x128xi1>
    %120 = arith.extui %119 : vector<1x128xi1> to vector<1x128xi32>
    %121 = arith.sitofp %120 : vector<1x128xi32> to vector<1x128xf32>
    %c1_i32_41 = arith.constant 1 : i32
    %122 = vector.broadcast %c1_i32_41 : i32 to vector<1x128xi32>
    %123 = arith.addi %0, %122 : vector<1x128xi32>
    %c0_i32_42 = arith.constant 0 : i32
    %124 = vector.broadcast %c0_i32_42 : i32 to vector<1x128xi32>
    %125 = arith.cmpi sge, %123, %124 : vector<1x128xi32>
    %c1_i32_43 = arith.constant 1 : i32
    %126 = vector.broadcast %c1_i32_43 : i32 to vector<1x128xi32>
    %127 = arith.addi %0, %126 : vector<1x128xi32>
    %c8_i32_44 = arith.constant 8 : i32
    %128 = vector.broadcast %c8_i32_44 : i32 to vector<1x128xi32>
    %129 = arith.cmpi slt, %127, %128 : vector<1x128xi32>
    %130 = arith.andi %125, %129 : vector<1x128xi1>
    %c-1_i32_45 = arith.constant -1 : i32
    %131 = vector.broadcast %c-1_i32_45 : i32 to vector<1x128xi32>
    %132 = arith.addi %1, %131 : vector<1x128xi32>
    %c0_i32_46 = arith.constant 0 : i32
    %133 = vector.broadcast %c0_i32_46 : i32 to vector<1x128xi32>
    %134 = arith.cmpi sge, %132, %133 : vector<1x128xi32>
    %135 = arith.andi %130, %134 : vector<1x128xi1>
    %c-1_i32_47 = arith.constant -1 : i32
    %136 = vector.broadcast %c-1_i32_47 : i32 to vector<1x128xi32>
    %137 = arith.addi %1, %136 : vector<1x128xi32>
    %c8_i32_48 = arith.constant 8 : i32
    %138 = vector.broadcast %c8_i32_48 : i32 to vector<1x128xi32>
    %139 = arith.cmpi slt, %137, %138 : vector<1x128xi32>
    %140 = arith.andi %135, %139 : vector<1x128xi1>
    %141 = arith.extui %140 : vector<1x128xi1> to vector<1x128xi32>
    %142 = arith.sitofp %141 : vector<1x128xi32> to vector<1x128xf32>
    %c1_i32_49 = arith.constant 1 : i32
    %143 = vector.broadcast %c1_i32_49 : i32 to vector<1x128xi32>
    %144 = arith.addi %0, %143 : vector<1x128xi32>
    %c0_i32_50 = arith.constant 0 : i32
    %145 = vector.broadcast %c0_i32_50 : i32 to vector<1x128xi32>
    %146 = arith.cmpi sge, %144, %145 : vector<1x128xi32>
    %c1_i32_51 = arith.constant 1 : i32
    %147 = vector.broadcast %c1_i32_51 : i32 to vector<1x128xi32>
    %148 = arith.addi %0, %147 : vector<1x128xi32>
    %c8_i32_52 = arith.constant 8 : i32
    %149 = vector.broadcast %c8_i32_52 : i32 to vector<1x128xi32>
    %150 = arith.cmpi slt, %148, %149 : vector<1x128xi32>
    %151 = arith.andi %146, %150 : vector<1x128xi1>
    %c0_i32_53 = arith.constant 0 : i32
    %152 = vector.broadcast %c0_i32_53 : i32 to vector<1x128xi32>
    %153 = arith.addi %1, %152 : vector<1x128xi32>
    %c0_i32_54 = arith.constant 0 : i32
    %154 = vector.broadcast %c0_i32_54 : i32 to vector<1x128xi32>
    %155 = arith.cmpi sge, %153, %154 : vector<1x128xi32>
    %156 = arith.andi %151, %155 : vector<1x128xi1>
    %c0_i32_55 = arith.constant 0 : i32
    %157 = vector.broadcast %c0_i32_55 : i32 to vector<1x128xi32>
    %158 = arith.addi %1, %157 : vector<1x128xi32>
    %c8_i32_56 = arith.constant 8 : i32
    %159 = vector.broadcast %c8_i32_56 : i32 to vector<1x128xi32>
    %160 = arith.cmpi slt, %158, %159 : vector<1x128xi32>
    %161 = arith.andi %156, %160 : vector<1x128xi1>
    %162 = arith.extui %161 : vector<1x128xi1> to vector<1x128xi32>
    %163 = arith.sitofp %162 : vector<1x128xi32> to vector<1x128xf32>
    %c1_i32_57 = arith.constant 1 : i32
    %164 = vector.broadcast %c1_i32_57 : i32 to vector<1x128xi32>
    %165 = arith.addi %0, %164 : vector<1x128xi32>
    %c0_i32_58 = arith.constant 0 : i32
    %166 = vector.broadcast %c0_i32_58 : i32 to vector<1x128xi32>
    %167 = arith.cmpi sge, %165, %166 : vector<1x128xi32>
    %c1_i32_59 = arith.constant 1 : i32
    %168 = vector.broadcast %c1_i32_59 : i32 to vector<1x128xi32>
    %169 = arith.addi %0, %168 : vector<1x128xi32>
    %c8_i32_60 = arith.constant 8 : i32
    %170 = vector.broadcast %c8_i32_60 : i32 to vector<1x128xi32>
    %171 = arith.cmpi slt, %169, %170 : vector<1x128xi32>
    %172 = arith.andi %167, %171 : vector<1x128xi1>
    %c1_i32_61 = arith.constant 1 : i32
    %173 = vector.broadcast %c1_i32_61 : i32 to vector<1x128xi32>
    %174 = arith.addi %1, %173 : vector<1x128xi32>
    %c0_i32_62 = arith.constant 0 : i32
    %175 = vector.broadcast %c0_i32_62 : i32 to vector<1x128xi32>
    %176 = arith.cmpi sge, %174, %175 : vector<1x128xi32>
    %177 = arith.andi %172, %176 : vector<1x128xi1>
    %c1_i32_63 = arith.constant 1 : i32
    %178 = vector.broadcast %c1_i32_63 : i32 to vector<1x128xi32>
    %179 = arith.addi %1, %178 : vector<1x128xi32>
    %c8_i32_64 = arith.constant 8 : i32
    %180 = vector.broadcast %c8_i32_64 : i32 to vector<1x128xi32>
    %181 = arith.cmpi slt, %179, %180 : vector<1x128xi32>
    %182 = arith.andi %177, %181 : vector<1x128xi1>
    %183 = arith.extui %182 : vector<1x128xi1> to vector<1x128xi32>
    %184 = arith.sitofp %183 : vector<1x128xi32> to vector<1x128xf32>
    %c0_65 = arith.constant 0 : index
    %c0_66 = arith.constant 0 : index
    %185 = vector.load %arg4[%c0_65, %c0_66] : memref<32x32xf32, #tpu.memory_space<vmem>>, vector<32x32xf32>
    %c0_67 = arith.constant 0 : index
    %c0_68 = arith.constant 0 : index
    %186 = vector.load %arg5[%c0_67, %c0_68] : memref<16x16xf32, #tpu.memory_space<vmem>>, vector<16x16xf32>
    %c0_69 = arith.constant 0 : index
    %c0_70 = arith.constant 0 : index
    %187 = vector.load %arg0[%c0_69, %c0_70] : memref<16x128xf32, #tpu.memory_space<vmem>>, vector<16x128xf32>
    %cst = arith.constant dense<0.000000e+00> : vector<16x128xf32>
    %188 = tpu.matmul %186, %187, %cst {dimension_numbers = #tpu.dot_dimension_numbers<[1], [0], [0], [1], [0, 0, 1, 1], [], []>} : vector<16x16xf32>, vector<16x128xf32>, vector<16x128xf32> -> vector<16x128xf32>
    %c0_71 = arith.constant 0 : index
    %c0_72 = arith.constant 0 : index
    %189 = vector.load %arg6[%c0_71, %c0_72] : memref<16x16xf32, #tpu.memory_space<vmem>>, vector<16x16xf32>
    %c0_73 = arith.constant 0 : index
    %c0_74 = arith.constant 0 : index
    %190 = vector.load %arg1[%c0_73, %c0_74] : memref<16x128xf32, #tpu.memory_space<vmem>>, vector<16x128xf32>
    %cst_75 = arith.constant dense<0.000000e+00> : vector<16x128xf32>
    %191 = tpu.matmul %189, %190, %cst_75 {dimension_numbers = #tpu.dot_dimension_numbers<[1], [0], [0], [1], [0, 0, 1, 1], [], []>} : vector<16x16xf32>, vector<16x128xf32>, vector<16x128xf32> -> vector<16x128xf32>
    %192 = arith.addf %188, %191 : vector<16x128xf32>
    %c0_76 = arith.constant 0 : index
    %c0_77 = arith.constant 0 : index
    %c0_78 = arith.constant 0 : index
    %193 = vector.load %arg7[%c0_76, %c0_77, %c0_78] : memref<2x16x1xf32, #tpu.memory_space<vmem>>, vector<1x16x1xf32>
    %194 = vector.shape_cast %193 : vector<1x16x1xf32> to vector<16x1xf32>
    %c0_79 = arith.constant 0 : index
    %c0_80 = arith.constant 0 : index
    %c0_81 = arith.constant 0 : index
    %195 = vector.load %arg8[%c0_79, %c0_80, %c0_81] : memref<2x16x1xf32, #tpu.memory_space<vmem>>, vector<1x16x1xf32>
    %196 = vector.shape_cast %195 : vector<1x16x1xf32> to vector<16x1xf32>
    %cst_82 = arith.constant dense<0.000000e+00> : vector<128xf32>
    %197 = vector.multi_reduction <add>, %192, %cst_82 [0] : vector<16x128xf32> to vector<128xf32>
    %198 = vector.shape_cast %197 : vector<128xf32> to vector<1x128xf32>
    %cst_83 = arith.constant 1.600000e+01 : f32
    %199 = vector.broadcast %cst_83 : f32 to vector<1x128xf32>
    %200 = arith.divf %198, %199 : vector<1x128xf32>
    %201 = vector.broadcast %200 : vector<1x128xf32> to vector<16x128xf32>
    %202 = arith.subf %192, %201 : vector<16x128xf32>
    %203 = arith.mulf %202, %202 : vector<16x128xf32>
    %cst_84 = arith.constant dense<0.000000e+00> : vector<128xf32>
    %204 = vector.multi_reduction <add>, %203, %cst_84 [0] : vector<16x128xf32> to vector<128xf32>
    %205 = vector.shape_cast %204 : vector<128xf32> to vector<1x128xf32>
    %cst_85 = arith.constant 1.600000e+01 : f32
    %206 = vector.broadcast %cst_85 : f32 to vector<1x128xf32>
    %207 = arith.divf %205, %206 : vector<1x128xf32>
    %cst_86 = arith.constant 9.99999974E-6 : f32
    %208 = vector.broadcast %cst_86 : f32 to vector<1x128xf32>
    %209 = arith.addf %207, %208 : vector<1x128xf32>
    %210 = math.rsqrt %209 : vector<1x128xf32>
    %211 = vector.broadcast %210 : vector<1x128xf32> to vector<16x128xf32>
    %212 = arith.mulf %202, %211 : vector<16x128xf32>
    %213 = vector.broadcast %194 : vector<16x1xf32> to vector<16x128xf32>
    %214 = arith.mulf %212, %213 : vector<16x128xf32>
    %215 = vector.broadcast %196 : vector<16x1xf32> to vector<16x128xf32>
    %216 = arith.addf %214, %215 : vector<16x128xf32>
    %c0_87 = arith.constant 0 : index
    %c0_88 = arith.constant 0 : index
    %c0_89 = arith.constant 0 : index
    %217 = vector.load %arg9[%c0_87, %c0_88, %c0_89] : memref<2x48x16xf32, #tpu.memory_space<vmem>>, vector<1x48x16xf32>
    %218 = vector.shape_cast %217 : vector<1x48x16xf32> to vector<48x16xf32>
    %cst_90 = arith.constant dense<0.000000e+00> : vector<48x128xf32>
    %219 = tpu.matmul %218, %216, %cst_90 {dimension_numbers = #tpu.dot_dimension_numbers<[1], [0], [0], [1], [0, 0, 1, 1], [], []>} : vector<48x16xf32>, vector<16x128xf32>, vector<48x128xf32> -> vector<48x128xf32>
    %c0_91 = arith.constant 0 : index
    %c0_92 = arith.constant 0 : index
    %c0_93 = arith.constant 0 : index
    %220 = vector.load %arg10[%c0_91, %c0_92, %c0_93] : memref<2x48x9xf32, #tpu.memory_space<vmem>>, vector<1x48x9xf32>
    %221 = vector.shape_cast %220 : vector<1x48x9xf32> to vector<48x9xf32>
    %222 = vector.extract_strided_slice %221 {offsets = [0, 4], sizes = [48, 1], strides = [1, 1]} : vector<48x9xf32> to vector<48x1xf32>
    %223 = vector.broadcast %222 : vector<48x1xf32> to vector<48x128xf32>
    %224 = arith.mulf %219, %223 : vector<48x128xf32>
    %c9_i32 = arith.constant 9 : i32
    %225 = tpu.dynamic_rotate %219 by %c9_i32 dim 1 : vector<48x128xf32>, i32 -> vector<48x128xf32>
    %226 = vector.broadcast %37 : vector<1x128xf32> to vector<48x128xf32>
    %227 = arith.mulf %225, %226 : vector<48x128xf32>
    %228 = vector.extract_strided_slice %221 {offsets = [0, 0], sizes = [48, 1], strides = [1, 1]} : vector<48x9xf32> to vector<48x1xf32>
    %229 = vector.broadcast %228 : vector<48x1xf32> to vector<48x128xf32>
    %230 = arith.mulf %227, %229 : vector<48x128xf32>
    %231 = arith.addf %224, %230 : vector<48x128xf32>
    %c8_i32_94 = arith.constant 8 : i32
    %232 = tpu.dynamic_rotate %219 by %c8_i32_94 dim 1 : vector<48x128xf32>, i32 -> vector<48x128xf32>
    %233 = vector.broadcast %58 : vector<1x128xf32> to vector<48x128xf32>
    %234 = arith.mulf %232, %233 : vector<48x128xf32>
    %235 = vector.extract_strided_slice %221 {offsets = [0, 1], sizes = [48, 1], strides = [1, 1]} : vector<48x9xf32> to vector<48x1xf32>
    %236 = vector.broadcast %235 : vector<48x1xf32> to vector<48x128xf32>
    %237 = arith.mulf %234, %236 : vector<48x128xf32>
    %238 = arith.addf %231, %237 : vector<48x128xf32>
    %c7_i32 = arith.constant 7 : i32
    %239 = tpu.dynamic_rotate %219 by %c7_i32 dim 1 : vector<48x128xf32>, i32 -> vector<48x128xf32>
    %240 = vector.broadcast %79 : vector<1x128xf32> to vector<48x128xf32>
    %241 = arith.mulf %239, %240 : vector<48x128xf32>
    %242 = vector.extract_strided_slice %221 {offsets = [0, 2], sizes = [48, 1], strides = [1, 1]} : vector<48x9xf32> to vector<48x1xf32>
    %243 = vector.broadcast %242 : vector<48x1xf32> to vector<48x128xf32>
    %244 = arith.mulf %241, %243 : vector<48x128xf32>
    %245 = arith.addf %238, %244 : vector<48x128xf32>
    %c1_i32_95 = arith.constant 1 : i32
    %246 = tpu.dynamic_rotate %219 by %c1_i32_95 dim 1 : vector<48x128xf32>, i32 -> vector<48x128xf32>
    %247 = vector.broadcast %100 : vector<1x128xf32> to vector<48x128xf32>
    %248 = arith.mulf %246, %247 : vector<48x128xf32>
    %249 = vector.extract_strided_slice %221 {offsets = [0, 3], sizes = [48, 1], strides = [1, 1]} : vector<48x9xf32> to vector<48x1xf32>
    %250 = vector.broadcast %249 : vector<48x1xf32> to vector<48x128xf32>
    %251 = arith.mulf %248, %250 : vector<48x128xf32>
    %252 = arith.addf %245, %251 : vector<48x128xf32>
    %c127_i32 = arith.constant 127 : i32
    %253 = tpu.dynamic_rotate %219 by %c127_i32 dim 1 : vector<48x128xf32>, i32 -> vector<48x128xf32>
    %254 = vector.broadcast %121 : vector<1x128xf32> to vector<48x128xf32>
    %255 = arith.mulf %253, %254 : vector<48x128xf32>
    %256 = vector.extract_strided_slice %221 {offsets = [0, 5], sizes = [48, 1], strides = [1, 1]} : vector<48x9xf32> to vector<48x1xf32>
    %257 = vector.broadcast %256 : vector<48x1xf32> to vector<48x128xf32>
    %258 = arith.mulf %255, %257 : vector<48x128xf32>
    %259 = arith.addf %252, %258 : vector<48x128xf32>
    %c121_i32 = arith.constant 121 : i32
    %260 = tpu.dynamic_rotate %219 by %c121_i32 dim 1 : vector<48x128xf32>, i32 -> vector<48x128xf32>
    %261 = vector.broadcast %142 : vector<1x128xf32> to vector<48x128xf32>
    %262 = arith.mulf %260, %261 : vector<48x128xf32>
    %263 = vector.extract_strided_slice %221 {offsets = [0, 6], sizes = [48, 1], strides = [1, 1]} : vector<48x9xf32> to vector<48x1xf32>
    %264 = vector.broadcast %263 : vector<48x1xf32> to vector<48x128xf32>
    %265 = arith.mulf %262, %264 : vector<48x128xf32>
    %266 = arith.addf %259, %265 : vector<48x128xf32>
    %c120_i32 = arith.constant 120 : i32
    %267 = tpu.dynamic_rotate %219 by %c120_i32 dim 1 : vector<48x128xf32>, i32 -> vector<48x128xf32>
    %268 = vector.broadcast %163 : vector<1x128xf32> to vector<48x128xf32>
    %269 = arith.mulf %267, %268 : vector<48x128xf32>
    %270 = vector.extract_strided_slice %221 {offsets = [0, 7], sizes = [48, 1], strides = [1, 1]} : vector<48x9xf32> to vector<48x1xf32>
    %271 = vector.broadcast %270 : vector<48x1xf32> to vector<48x128xf32>
    %272 = arith.mulf %269, %271 : vector<48x128xf32>
    %273 = arith.addf %266, %272 : vector<48x128xf32>
    %c119_i32 = arith.constant 119 : i32
    %274 = tpu.dynamic_rotate %219 by %c119_i32 dim 1 : vector<48x128xf32>, i32 -> vector<48x128xf32>
    %275 = vector.broadcast %184 : vector<1x128xf32> to vector<48x128xf32>
    %276 = arith.mulf %274, %275 : vector<48x128xf32>
    %277 = vector.extract_strided_slice %221 {offsets = [0, 8], sizes = [48, 1], strides = [1, 1]} : vector<48x9xf32> to vector<48x1xf32>
    %278 = vector.broadcast %277 : vector<48x1xf32> to vector<48x128xf32>
    %279 = arith.mulf %276, %278 : vector<48x128xf32>
    %280 = arith.addf %273, %279 : vector<48x128xf32>
    %281 = vector.extract_strided_slice %280 {offsets = [0, 0], sizes = [16, 128], strides = [1, 1]} : vector<48x128xf32> to vector<16x128xf32>
    %282 = vector.extract_strided_slice %280 {offsets = [16, 0], sizes = [16, 128], strides = [1, 1]} : vector<48x128xf32> to vector<16x128xf32>
    %283 = vector.extract_strided_slice %280 {offsets = [32, 0], sizes = [16, 128], strides = [1, 1]} : vector<48x128xf32> to vector<16x128xf32>
    %284 = vector.broadcast %9 : vector<1x128xf32> to vector<16x128xf32>
    %285 = arith.mulf %281, %284 : vector<16x128xf32>
    %286 = vector.broadcast %16 : vector<1x128xf32> to vector<16x128xf32>
    %287 = arith.mulf %281, %286 : vector<16x128xf32>
    %288 = tpu.concatenate %285, %287 in 0 : vector<16x128xf32>, vector<16x128xf32> -> vector<32x128xf32>
    %289 = vector.broadcast %9 : vector<1x128xf32> to vector<16x128xf32>
    %290 = arith.mulf %282, %289 : vector<16x128xf32>
    %291 = vector.broadcast %16 : vector<1x128xf32> to vector<16x128xf32>
    %292 = arith.mulf %282, %291 : vector<16x128xf32>
    %293 = tpu.concatenate %290, %292 in 0 : vector<16x128xf32>, vector<16x128xf32> -> vector<32x128xf32>
    %294 = tpu.concatenate %283, %283 in 0 : vector<16x128xf32>, vector<16x128xf32> -> vector<32x128xf32>
    %c0_96 = arith.constant 0 : index
    %c0_97 = arith.constant 0 : index
    %c0_98 = arith.constant 0 : index
    %295 = vector.load %arg11[%c0_96, %c0_97, %c0_98] : memref<2x16x1xf32, #tpu.memory_space<vmem>>, vector<1x16x1xf32>
    %296 = vector.shape_cast %295 : vector<1x16x1xf32> to vector<16x1xf32>
    %c0_99 = arith.constant 0 : index
    %c0_100 = arith.constant 0 : index
    %c0_101 = arith.constant 0 : index
    %297 = vector.load %arg11[%c0_99, %c0_100, %c0_101] : memref<2x16x1xf32, #tpu.memory_space<vmem>>, vector<1x16x1xf32>
    %298 = vector.shape_cast %297 : vector<1x16x1xf32> to vector<16x1xf32>
    %299 = tpu.concatenate %296, %298 in 0 : vector<16x1xf32>, vector<16x1xf32> -> vector<32x1xf32>
    %300 = arith.mulf %288, %288 : vector<32x128xf32>
    %cst_102 = arith.constant dense<0.000000e+00> : vector<32xf32>
    %301 = vector.multi_reduction <add>, %300, %cst_102 [1] : vector<32x128xf32> to vector<32xf32>
    %302 = vector.shape_cast %301 : vector<32xf32> to vector<32x1xf32>
    %cst_103 = arith.constant 1.000000e-24 : f32
    %303 = vector.broadcast %cst_103 : f32 to vector<32x1xf32>
    %304 = arith.maximumf %302, %303 : vector<32x1xf32>
    %305 = math.rsqrt %304 : vector<32x1xf32>
    %306 = vector.broadcast %305 : vector<32x1xf32> to vector<32x128xf32>
    %307 = arith.mulf %288, %306 : vector<32x128xf32>
    %308 = arith.mulf %293, %293 : vector<32x128xf32>
    %cst_104 = arith.constant dense<0.000000e+00> : vector<32xf32>
    %309 = vector.multi_reduction <add>, %308, %cst_104 [1] : vector<32x128xf32> to vector<32xf32>
    %310 = vector.shape_cast %309 : vector<32xf32> to vector<32x1xf32>
    %cst_105 = arith.constant 1.000000e-24 : f32
    %311 = vector.broadcast %cst_105 : f32 to vector<32x1xf32>
    %312 = arith.maximumf %310, %311 : vector<32x1xf32>
    %313 = math.rsqrt %312 : vector<32x1xf32>
    %314 = vector.broadcast %313 : vector<32x1xf32> to vector<32x128xf32>
    %315 = arith.mulf %293, %314 : vector<32x128xf32>
    %cst_106 = arith.constant dense<0.000000e+00> : vector<32x32xf32>
    %316 = tpu.matmul %307, %315, %cst_106 {dimension_numbers = #tpu.dot_dimension_numbers<[1], [1], [0], [0], [0, 0, 1, 0], [], []>} : vector<32x128xf32>, vector<32x128xf32>, vector<32x32xf32> -> vector<32x32xf32>
    %317 = vector.broadcast %299 : vector<32x1xf32> to vector<32x32xf32>
    %318 = arith.mulf %316, %317 : vector<32x32xf32>
    %319 = arith.addf %318, %185 : vector<32x32xf32>
    %cst_107 = arith.constant dense<0xFF800000> : vector<32xf32>
    %320 = vector.multi_reduction <maximumf>, %319, %cst_107 [1] : vector<32x32xf32> to vector<32xf32>
    %321 = vector.shape_cast %320 : vector<32xf32> to vector<32x1xf32>
    %322 = vector.broadcast %321 : vector<32x1xf32> to vector<32x32xf32>
    %323 = arith.subf %319, %322 : vector<32x32xf32>
    %324 = math.exp %323 : vector<32x32xf32>
    %cst_108 = arith.constant dense<0.000000e+00> : vector<32xf32>
    %325 = vector.multi_reduction <add>, %324, %cst_108 [1] : vector<32x32xf32> to vector<32xf32>
    %326 = vector.shape_cast %325 : vector<32xf32> to vector<32x1xf32>
    %327 = tpu.reciprocal %326 {approx = true} : vector<32x1xf32> -> vector<32x1xf32>
    %328 = vector.broadcast %327 : vector<32x1xf32> to vector<32x32xf32>
    %329 = arith.mulf %324, %328 : vector<32x32xf32>
    %cst_109 = arith.constant dense<0.000000e+00> : vector<32x128xf32>
    %330 = tpu.matmul %329, %294, %cst_109 {dimension_numbers = #tpu.dot_dimension_numbers<[1], [0], [0], [1], [0, 0, 1, 1], [], []>} : vector<32x32xf32>, vector<32x128xf32>, vector<32x128xf32> -> vector<32x128xf32>
    %331 = vector.extract_strided_slice %330 {offsets = [0, 0], sizes = [16, 128], strides = [1, 1]} : vector<32x128xf32> to vector<16x128xf32>
    %332 = vector.broadcast %9 : vector<1x128xf32> to vector<16x128xf32>
    %333 = arith.mulf %331, %332 : vector<16x128xf32>
    %334 = vector.extract_strided_slice %330 {offsets = [16, 0], sizes = [16, 128], strides = [1, 1]} : vector<32x128xf32> to vector<16x128xf32>
    %335 = vector.broadcast %16 : vector<1x128xf32> to vector<16x128xf32>
    %336 = arith.mulf %334, %335 : vector<16x128xf32>
    %337 = arith.addf %333, %336 : vector<16x128xf32>
    %c0_110 = arith.constant 0 : index
    %c0_111 = arith.constant 0 : index
    %c0_112 = arith.constant 0 : index
    %338 = vector.load %arg12[%c0_110, %c0_111, %c0_112] : memref<2x16x16xf32, #tpu.memory_space<vmem>>, vector<1x16x16xf32>
    %339 = vector.shape_cast %338 : vector<1x16x16xf32> to vector<16x16xf32>
    %cst_113 = arith.constant dense<0.000000e+00> : vector<16x128xf32>
    %340 = tpu.matmul %339, %337, %cst_113 {dimension_numbers = #tpu.dot_dimension_numbers<[1], [0], [0], [1], [0, 0, 1, 1], [], []>} : vector<16x16xf32>, vector<16x128xf32>, vector<16x128xf32> -> vector<16x128xf32>
    %341 = arith.addf %192, %340 : vector<16x128xf32>
    %c0_114 = arith.constant 0 : index
    %c0_115 = arith.constant 0 : index
    %c0_116 = arith.constant 0 : index
    %342 = vector.load %arg13[%c0_114, %c0_115, %c0_116] : memref<2x16x1xf32, #tpu.memory_space<vmem>>, vector<1x16x1xf32>
    %343 = vector.shape_cast %342 : vector<1x16x1xf32> to vector<16x1xf32>
    %c0_117 = arith.constant 0 : index
    %c0_118 = arith.constant 0 : index
    %c0_119 = arith.constant 0 : index
    %344 = vector.load %arg14[%c0_117, %c0_118, %c0_119] : memref<2x16x1xf32, #tpu.memory_space<vmem>>, vector<1x16x1xf32>
    %345 = vector.shape_cast %344 : vector<1x16x1xf32> to vector<16x1xf32>
    %cst_120 = arith.constant dense<0.000000e+00> : vector<128xf32>
    %346 = vector.multi_reduction <add>, %341, %cst_120 [0] : vector<16x128xf32> to vector<128xf32>
    %347 = vector.shape_cast %346 : vector<128xf32> to vector<1x128xf32>
    %cst_121 = arith.constant 1.600000e+01 : f32
    %348 = vector.broadcast %cst_121 : f32 to vector<1x128xf32>
    %349 = arith.divf %347, %348 : vector<1x128xf32>
    %350 = vector.broadcast %349 : vector<1x128xf32> to vector<16x128xf32>
    %351 = arith.subf %341, %350 : vector<16x128xf32>
    %352 = arith.mulf %351, %351 : vector<16x128xf32>
    %cst_122 = arith.constant dense<0.000000e+00> : vector<128xf32>
    %353 = vector.multi_reduction <add>, %352, %cst_122 [0] : vector<16x128xf32> to vector<128xf32>
    %354 = vector.shape_cast %353 : vector<128xf32> to vector<1x128xf32>
    %cst_123 = arith.constant 1.600000e+01 : f32
    %355 = vector.broadcast %cst_123 : f32 to vector<1x128xf32>
    %356 = arith.divf %354, %355 : vector<1x128xf32>
    %cst_124 = arith.constant 9.99999974E-6 : f32
    %357 = vector.broadcast %cst_124 : f32 to vector<1x128xf32>
    %358 = arith.addf %356, %357 : vector<1x128xf32>
    %359 = math.rsqrt %358 : vector<1x128xf32>
    %360 = vector.broadcast %359 : vector<1x128xf32> to vector<16x128xf32>
    %361 = arith.mulf %351, %360 : vector<16x128xf32>
    %362 = vector.broadcast %343 : vector<16x1xf32> to vector<16x128xf32>
    %363 = arith.mulf %361, %362 : vector<16x128xf32>
    %364 = vector.broadcast %345 : vector<16x1xf32> to vector<16x128xf32>
    %365 = arith.addf %363, %364 : vector<16x128xf32>
    %c0_125 = arith.constant 0 : index
    %c0_126 = arith.constant 0 : index
    %c0_127 = arith.constant 0 : index
    %366 = vector.load %arg15[%c0_125, %c0_126, %c0_127] : memref<2x64x16xf32, #tpu.memory_space<vmem>>, vector<1x64x16xf32>
    %367 = vector.shape_cast %366 : vector<1x64x16xf32> to vector<64x16xf32>
    %cst_128 = arith.constant dense<0.000000e+00> : vector<64x128xf32>
    %368 = tpu.matmul %367, %365, %cst_128 {dimension_numbers = #tpu.dot_dimension_numbers<[1], [0], [0], [1], [0, 0, 1, 1], [], []>} : vector<64x16xf32>, vector<16x128xf32>, vector<64x128xf32> -> vector<64x128xf32>
    %c0_129 = arith.constant 0 : index
    %c0_130 = arith.constant 0 : index
    %c0_131 = arith.constant 0 : index
    %369 = vector.load %arg16[%c0_129, %c0_130, %c0_131] : memref<2x64x9xf32, #tpu.memory_space<vmem>>, vector<1x64x9xf32>
    %370 = vector.shape_cast %369 : vector<1x64x9xf32> to vector<64x9xf32>
    %371 = vector.extract_strided_slice %370 {offsets = [0, 4], sizes = [64, 1], strides = [1, 1]} : vector<64x9xf32> to vector<64x1xf32>
    %372 = vector.broadcast %371 : vector<64x1xf32> to vector<64x128xf32>
    %373 = arith.mulf %368, %372 : vector<64x128xf32>
    %c9_i32_132 = arith.constant 9 : i32
    %374 = tpu.dynamic_rotate %368 by %c9_i32_132 dim 1 : vector<64x128xf32>, i32 -> vector<64x128xf32>
    %375 = vector.broadcast %37 : vector<1x128xf32> to vector<64x128xf32>
    %376 = arith.mulf %374, %375 : vector<64x128xf32>
    %377 = vector.extract_strided_slice %370 {offsets = [0, 0], sizes = [64, 1], strides = [1, 1]} : vector<64x9xf32> to vector<64x1xf32>
    %378 = vector.broadcast %377 : vector<64x1xf32> to vector<64x128xf32>
    %379 = arith.mulf %376, %378 : vector<64x128xf32>
    %380 = arith.addf %373, %379 : vector<64x128xf32>
    %c8_i32_133 = arith.constant 8 : i32
    %381 = tpu.dynamic_rotate %368 by %c8_i32_133 dim 1 : vector<64x128xf32>, i32 -> vector<64x128xf32>
    %382 = vector.broadcast %58 : vector<1x128xf32> to vector<64x128xf32>
    %383 = arith.mulf %381, %382 : vector<64x128xf32>
    %384 = vector.extract_strided_slice %370 {offsets = [0, 1], sizes = [64, 1], strides = [1, 1]} : vector<64x9xf32> to vector<64x1xf32>
    %385 = vector.broadcast %384 : vector<64x1xf32> to vector<64x128xf32>
    %386 = arith.mulf %383, %385 : vector<64x128xf32>
    %387 = arith.addf %380, %386 : vector<64x128xf32>
    %c7_i32_134 = arith.constant 7 : i32
    %388 = tpu.dynamic_rotate %368 by %c7_i32_134 dim 1 : vector<64x128xf32>, i32 -> vector<64x128xf32>
    %389 = vector.broadcast %79 : vector<1x128xf32> to vector<64x128xf32>
    %390 = arith.mulf %388, %389 : vector<64x128xf32>
    %391 = vector.extract_strided_slice %370 {offsets = [0, 2], sizes = [64, 1], strides = [1, 1]} : vector<64x9xf32> to vector<64x1xf32>
    %392 = vector.broadcast %391 : vector<64x1xf32> to vector<64x128xf32>
    %393 = arith.mulf %390, %392 : vector<64x128xf32>
    %394 = arith.addf %387, %393 : vector<64x128xf32>
    %c1_i32_135 = arith.constant 1 : i32
    %395 = tpu.dynamic_rotate %368 by %c1_i32_135 dim 1 : vector<64x128xf32>, i32 -> vector<64x128xf32>
    %396 = vector.broadcast %100 : vector<1x128xf32> to vector<64x128xf32>
    %397 = arith.mulf %395, %396 : vector<64x128xf32>
    %398 = vector.extract_strided_slice %370 {offsets = [0, 3], sizes = [64, 1], strides = [1, 1]} : vector<64x9xf32> to vector<64x1xf32>
    %399 = vector.broadcast %398 : vector<64x1xf32> to vector<64x128xf32>
    %400 = arith.mulf %397, %399 : vector<64x128xf32>
    %401 = arith.addf %394, %400 : vector<64x128xf32>
    %c127_i32_136 = arith.constant 127 : i32
    %402 = tpu.dynamic_rotate %368 by %c127_i32_136 dim 1 : vector<64x128xf32>, i32 -> vector<64x128xf32>
    %403 = vector.broadcast %121 : vector<1x128xf32> to vector<64x128xf32>
    %404 = arith.mulf %402, %403 : vector<64x128xf32>
    %405 = vector.extract_strided_slice %370 {offsets = [0, 5], sizes = [64, 1], strides = [1, 1]} : vector<64x9xf32> to vector<64x1xf32>
    %406 = vector.broadcast %405 : vector<64x1xf32> to vector<64x128xf32>
    %407 = arith.mulf %404, %406 : vector<64x128xf32>
    %408 = arith.addf %401, %407 : vector<64x128xf32>
    %c121_i32_137 = arith.constant 121 : i32
    %409 = tpu.dynamic_rotate %368 by %c121_i32_137 dim 1 : vector<64x128xf32>, i32 -> vector<64x128xf32>
    %410 = vector.broadcast %142 : vector<1x128xf32> to vector<64x128xf32>
    %411 = arith.mulf %409, %410 : vector<64x128xf32>
    %412 = vector.extract_strided_slice %370 {offsets = [0, 6], sizes = [64, 1], strides = [1, 1]} : vector<64x9xf32> to vector<64x1xf32>
    %413 = vector.broadcast %412 : vector<64x1xf32> to vector<64x128xf32>
    %414 = arith.mulf %411, %413 : vector<64x128xf32>
    %415 = arith.addf %408, %414 : vector<64x128xf32>
    %c120_i32_138 = arith.constant 120 : i32
    %416 = tpu.dynamic_rotate %368 by %c120_i32_138 dim 1 : vector<64x128xf32>, i32 -> vector<64x128xf32>
    %417 = vector.broadcast %163 : vector<1x128xf32> to vector<64x128xf32>
    %418 = arith.mulf %416, %417 : vector<64x128xf32>
    %419 = vector.extract_strided_slice %370 {offsets = [0, 7], sizes = [64, 1], strides = [1, 1]} : vector<64x9xf32> to vector<64x1xf32>
    %420 = vector.broadcast %419 : vector<64x1xf32> to vector<64x128xf32>
    %421 = arith.mulf %418, %420 : vector<64x128xf32>
    %422 = arith.addf %415, %421 : vector<64x128xf32>
    %c119_i32_139 = arith.constant 119 : i32
    %423 = tpu.dynamic_rotate %368 by %c119_i32_139 dim 1 : vector<64x128xf32>, i32 -> vector<64x128xf32>
    %424 = vector.broadcast %184 : vector<1x128xf32> to vector<64x128xf32>
    %425 = arith.mulf %423, %424 : vector<64x128xf32>
    %426 = vector.extract_strided_slice %370 {offsets = [0, 8], sizes = [64, 1], strides = [1, 1]} : vector<64x9xf32> to vector<64x1xf32>
    %427 = vector.broadcast %426 : vector<64x1xf32> to vector<64x128xf32>
    %428 = arith.mulf %425, %427 : vector<64x128xf32>
    %429 = arith.addf %422, %428 : vector<64x128xf32>
    %430 = vector.extract_strided_slice %429 {offsets = [0, 0], sizes = [32, 128], strides = [1, 1]} : vector<64x128xf32> to vector<32x128xf32>
    %431 = math.absf %430 : vector<32x128xf32>
    %cst_140 = arith.constant 5.000000e-01 : f32
    %432 = vector.broadcast %cst_140 : f32 to vector<32x128xf32>
    %433 = arith.mulf %432, %431 : vector<32x128xf32>
    %cst_141 = arith.constant 1.000000e+00 : f32
    %434 = vector.broadcast %cst_141 : f32 to vector<32x128xf32>
    %435 = arith.addf %434, %433 : vector<32x128xf32>
    %cst_142 = arith.constant 1.000000e+00 : f32
    %436 = vector.broadcast %cst_142 : f32 to vector<32x128xf32>
    %437 = arith.divf %436, %435 : vector<32x128xf32>
    %cst_143 = arith.constant 0.000000e+00 : f32
    %438 = vector.broadcast %cst_143 : f32 to vector<32x128xf32>
    %439 = arith.subf %438, %431 : vector<32x128xf32>
    %440 = arith.mulf %439, %431 : vector<32x128xf32>
    %cst_144 = arith.constant 1.26551223 : f32
    %441 = vector.broadcast %cst_144 : f32 to vector<32x128xf32>
    %442 = arith.subf %440, %441 : vector<32x128xf32>
    %cst_145 = arith.constant 0.170872763 : f32
    %443 = vector.broadcast %cst_145 : f32 to vector<32x128xf32>
    %444 = arith.mulf %437, %443 : vector<32x128xf32>
    %cst_146 = arith.constant -0.822152256 : f32
    %445 = vector.broadcast %cst_146 : f32 to vector<32x128xf32>
    %446 = arith.addf %445, %444 : vector<32x128xf32>
    %447 = arith.mulf %437, %446 : vector<32x128xf32>
    %cst_147 = arith.constant 1.48851585 : f32
    %448 = vector.broadcast %cst_147 : f32 to vector<32x128xf32>
    %449 = arith.addf %448, %447 : vector<32x128xf32>
    %450 = arith.mulf %437, %449 : vector<32x128xf32>
    %cst_148 = arith.constant -1.13520396 : f32
    %451 = vector.broadcast %cst_148 : f32 to vector<32x128xf32>
    %452 = arith.addf %451, %450 : vector<32x128xf32>
    %453 = arith.mulf %437, %452 : vector<32x128xf32>
    %cst_149 = arith.constant 0.278868079 : f32
    %454 = vector.broadcast %cst_149 : f32 to vector<32x128xf32>
    %455 = arith.addf %454, %453 : vector<32x128xf32>
    %456 = arith.mulf %437, %455 : vector<32x128xf32>
    %cst_150 = arith.constant -0.186288059 : f32
    %457 = vector.broadcast %cst_150 : f32 to vector<32x128xf32>
    %458 = arith.addf %457, %456 : vector<32x128xf32>
    %459 = arith.mulf %437, %458 : vector<32x128xf32>
    %cst_151 = arith.constant 0.0967841818 : f32
    %460 = vector.broadcast %cst_151 : f32 to vector<32x128xf32>
    %461 = arith.addf %460, %459 : vector<32x128xf32>
    %462 = arith.mulf %437, %461 : vector<32x128xf32>
    %cst_152 = arith.constant 0.374091953 : f32
    %463 = vector.broadcast %cst_152 : f32 to vector<32x128xf32>
    %464 = arith.addf %463, %462 : vector<32x128xf32>
    %465 = arith.mulf %437, %464 : vector<32x128xf32>
    %cst_153 = arith.constant 1.00002372 : f32
    %466 = vector.broadcast %cst_153 : f32 to vector<32x128xf32>
    %467 = arith.addf %466, %465 : vector<32x128xf32>
    %468 = arith.mulf %437, %467 : vector<32x128xf32>
    %469 = arith.addf %442, %468 : vector<32x128xf32>
    %470 = math.exp %469 : vector<32x128xf32>
    %471 = arith.mulf %437, %470 : vector<32x128xf32>
    %cst_154 = arith.constant 0.000000e+00 : f32
    %472 = vector.broadcast %cst_154 : f32 to vector<32x128xf32>
    %473 = arith.cmpf oge, %430, %472 : vector<32x128xf32>
    %cst_155 = arith.constant 1.000000e+00 : f32
    %474 = vector.broadcast %cst_155 : f32 to vector<32x128xf32>
    %475 = arith.subf %474, %471 : vector<32x128xf32>
    %cst_156 = arith.constant 1.000000e+00 : f32
    %476 = vector.broadcast %cst_156 : f32 to vector<32x128xf32>
    %477 = arith.subf %471, %476 : vector<32x128xf32>
    %478 = arith.select %473, %475, %477 : vector<32x128xi1>, vector<32x128xf32>
    %cst_157 = arith.constant 5.000000e-01 : f32
    %479 = vector.broadcast %cst_157 : f32 to vector<32x128xf32>
    %480 = arith.mulf %479, %430 : vector<32x128xf32>
    %cst_158 = arith.constant 1.000000e+00 : f32
    %481 = vector.broadcast %cst_158 : f32 to vector<32x128xf32>
    %482 = arith.addf %481, %478 : vector<32x128xf32>
    %483 = arith.mulf %480, %482 : vector<32x128xf32>
    %484 = vector.extract_strided_slice %429 {offsets = [32, 0], sizes = [32, 128], strides = [1, 1]} : vector<64x128xf32> to vector<32x128xf32>
    %485 = arith.mulf %483, %484 : vector<32x128xf32>
    %c0_159 = arith.constant 0 : index
    %c0_160 = arith.constant 0 : index
    %c0_161 = arith.constant 0 : index
    %486 = vector.load %arg17[%c0_159, %c0_160, %c0_161] : memref<2x16x32xf32, #tpu.memory_space<vmem>>, vector<1x16x32xf32>
    %487 = vector.shape_cast %486 : vector<1x16x32xf32> to vector<16x32xf32>
    %cst_162 = arith.constant dense<0.000000e+00> : vector<16x128xf32>
    %488 = tpu.matmul %487, %485, %cst_162 {dimension_numbers = #tpu.dot_dimension_numbers<[1], [0], [0], [1], [0, 0, 1, 1], [], []>} : vector<16x32xf32>, vector<32x128xf32>, vector<16x128xf32> -> vector<16x128xf32>
    %489 = arith.addf %341, %488 : vector<16x128xf32>
    %c1 = arith.constant 1 : index
    %c0_163 = arith.constant 0 : index
    %c0_164 = arith.constant 0 : index
    %490 = vector.load %arg7[%c1, %c0_163, %c0_164] : memref<2x16x1xf32, #tpu.memory_space<vmem>>, vector<1x16x1xf32>
    %491 = vector.shape_cast %490 : vector<1x16x1xf32> to vector<16x1xf32>
    %c1_165 = arith.constant 1 : index
    %c0_166 = arith.constant 0 : index
    %c0_167 = arith.constant 0 : index
    %492 = vector.load %arg8[%c1_165, %c0_166, %c0_167] : memref<2x16x1xf32, #tpu.memory_space<vmem>>, vector<1x16x1xf32>
    %493 = vector.shape_cast %492 : vector<1x16x1xf32> to vector<16x1xf32>
    %cst_168 = arith.constant dense<0.000000e+00> : vector<128xf32>
    %494 = vector.multi_reduction <add>, %489, %cst_168 [0] : vector<16x128xf32> to vector<128xf32>
    %495 = vector.shape_cast %494 : vector<128xf32> to vector<1x128xf32>
    %cst_169 = arith.constant 1.600000e+01 : f32
    %496 = vector.broadcast %cst_169 : f32 to vector<1x128xf32>
    %497 = arith.divf %495, %496 : vector<1x128xf32>
    %498 = vector.broadcast %497 : vector<1x128xf32> to vector<16x128xf32>
    %499 = arith.subf %489, %498 : vector<16x128xf32>
    %500 = arith.mulf %499, %499 : vector<16x128xf32>
    %cst_170 = arith.constant dense<0.000000e+00> : vector<128xf32>
    %501 = vector.multi_reduction <add>, %500, %cst_170 [0] : vector<16x128xf32> to vector<128xf32>
    %502 = vector.shape_cast %501 : vector<128xf32> to vector<1x128xf32>
    %cst_171 = arith.constant 1.600000e+01 : f32
    %503 = vector.broadcast %cst_171 : f32 to vector<1x128xf32>
    %504 = arith.divf %502, %503 : vector<1x128xf32>
    %cst_172 = arith.constant 9.99999974E-6 : f32
    %505 = vector.broadcast %cst_172 : f32 to vector<1x128xf32>
    %506 = arith.addf %504, %505 : vector<1x128xf32>
    %507 = math.rsqrt %506 : vector<1x128xf32>
    %508 = vector.broadcast %507 : vector<1x128xf32> to vector<16x128xf32>
    %509 = arith.mulf %499, %508 : vector<16x128xf32>
    %510 = vector.broadcast %491 : vector<16x1xf32> to vector<16x128xf32>
    %511 = arith.mulf %509, %510 : vector<16x128xf32>
    %512 = vector.broadcast %493 : vector<16x1xf32> to vector<16x128xf32>
    %513 = arith.addf %511, %512 : vector<16x128xf32>
    %c1_173 = arith.constant 1 : index
    %c0_174 = arith.constant 0 : index
    %c0_175 = arith.constant 0 : index
    %514 = vector.load %arg9[%c1_173, %c0_174, %c0_175] : memref<2x48x16xf32, #tpu.memory_space<vmem>>, vector<1x48x16xf32>
    %515 = vector.shape_cast %514 : vector<1x48x16xf32> to vector<48x16xf32>
    %cst_176 = arith.constant dense<0.000000e+00> : vector<48x128xf32>
    %516 = tpu.matmul %515, %513, %cst_176 {dimension_numbers = #tpu.dot_dimension_numbers<[1], [0], [0], [1], [0, 0, 1, 1], [], []>} : vector<48x16xf32>, vector<16x128xf32>, vector<48x128xf32> -> vector<48x128xf32>
    %c1_177 = arith.constant 1 : index
    %c0_178 = arith.constant 0 : index
    %c0_179 = arith.constant 0 : index
    %517 = vector.load %arg10[%c1_177, %c0_178, %c0_179] : memref<2x48x9xf32, #tpu.memory_space<vmem>>, vector<1x48x9xf32>
    %518 = vector.shape_cast %517 : vector<1x48x9xf32> to vector<48x9xf32>
    %519 = vector.extract_strided_slice %518 {offsets = [0, 4], sizes = [48, 1], strides = [1, 1]} : vector<48x9xf32> to vector<48x1xf32>
    %520 = vector.broadcast %519 : vector<48x1xf32> to vector<48x128xf32>
    %521 = arith.mulf %516, %520 : vector<48x128xf32>
    %c9_i32_180 = arith.constant 9 : i32
    %522 = tpu.dynamic_rotate %516 by %c9_i32_180 dim 1 : vector<48x128xf32>, i32 -> vector<48x128xf32>
    %523 = vector.broadcast %37 : vector<1x128xf32> to vector<48x128xf32>
    %524 = arith.mulf %522, %523 : vector<48x128xf32>
    %525 = vector.extract_strided_slice %518 {offsets = [0, 0], sizes = [48, 1], strides = [1, 1]} : vector<48x9xf32> to vector<48x1xf32>
    %526 = vector.broadcast %525 : vector<48x1xf32> to vector<48x128xf32>
    %527 = arith.mulf %524, %526 : vector<48x128xf32>
    %528 = arith.addf %521, %527 : vector<48x128xf32>
    %c8_i32_181 = arith.constant 8 : i32
    %529 = tpu.dynamic_rotate %516 by %c8_i32_181 dim 1 : vector<48x128xf32>, i32 -> vector<48x128xf32>
    %530 = vector.broadcast %58 : vector<1x128xf32> to vector<48x128xf32>
    %531 = arith.mulf %529, %530 : vector<48x128xf32>
    %532 = vector.extract_strided_slice %518 {offsets = [0, 1], sizes = [48, 1], strides = [1, 1]} : vector<48x9xf32> to vector<48x1xf32>
    %533 = vector.broadcast %532 : vector<48x1xf32> to vector<48x128xf32>
    %534 = arith.mulf %531, %533 : vector<48x128xf32>
    %535 = arith.addf %528, %534 : vector<48x128xf32>
    %c7_i32_182 = arith.constant 7 : i32
    %536 = tpu.dynamic_rotate %516 by %c7_i32_182 dim 1 : vector<48x128xf32>, i32 -> vector<48x128xf32>
    %537 = vector.broadcast %79 : vector<1x128xf32> to vector<48x128xf32>
    %538 = arith.mulf %536, %537 : vector<48x128xf32>
    %539 = vector.extract_strided_slice %518 {offsets = [0, 2], sizes = [48, 1], strides = [1, 1]} : vector<48x9xf32> to vector<48x1xf32>
    %540 = vector.broadcast %539 : vector<48x1xf32> to vector<48x128xf32>
    %541 = arith.mulf %538, %540 : vector<48x128xf32>
    %542 = arith.addf %535, %541 : vector<48x128xf32>
    %c1_i32_183 = arith.constant 1 : i32
    %543 = tpu.dynamic_rotate %516 by %c1_i32_183 dim 1 : vector<48x128xf32>, i32 -> vector<48x128xf32>
    %544 = vector.broadcast %100 : vector<1x128xf32> to vector<48x128xf32>
    %545 = arith.mulf %543, %544 : vector<48x128xf32>
    %546 = vector.extract_strided_slice %518 {offsets = [0, 3], sizes = [48, 1], strides = [1, 1]} : vector<48x9xf32> to vector<48x1xf32>
    %547 = vector.broadcast %546 : vector<48x1xf32> to vector<48x128xf32>
    %548 = arith.mulf %545, %547 : vector<48x128xf32>
    %549 = arith.addf %542, %548 : vector<48x128xf32>
    %c127_i32_184 = arith.constant 127 : i32
    %550 = tpu.dynamic_rotate %516 by %c127_i32_184 dim 1 : vector<48x128xf32>, i32 -> vector<48x128xf32>
    %551 = vector.broadcast %121 : vector<1x128xf32> to vector<48x128xf32>
    %552 = arith.mulf %550, %551 : vector<48x128xf32>
    %553 = vector.extract_strided_slice %518 {offsets = [0, 5], sizes = [48, 1], strides = [1, 1]} : vector<48x9xf32> to vector<48x1xf32>
    %554 = vector.broadcast %553 : vector<48x1xf32> to vector<48x128xf32>
    %555 = arith.mulf %552, %554 : vector<48x128xf32>
    %556 = arith.addf %549, %555 : vector<48x128xf32>
    %c121_i32_185 = arith.constant 121 : i32
    %557 = tpu.dynamic_rotate %516 by %c121_i32_185 dim 1 : vector<48x128xf32>, i32 -> vector<48x128xf32>
    %558 = vector.broadcast %142 : vector<1x128xf32> to vector<48x128xf32>
    %559 = arith.mulf %557, %558 : vector<48x128xf32>
    %560 = vector.extract_strided_slice %518 {offsets = [0, 6], sizes = [48, 1], strides = [1, 1]} : vector<48x9xf32> to vector<48x1xf32>
    %561 = vector.broadcast %560 : vector<48x1xf32> to vector<48x128xf32>
    %562 = arith.mulf %559, %561 : vector<48x128xf32>
    %563 = arith.addf %556, %562 : vector<48x128xf32>
    %c120_i32_186 = arith.constant 120 : i32
    %564 = tpu.dynamic_rotate %516 by %c120_i32_186 dim 1 : vector<48x128xf32>, i32 -> vector<48x128xf32>
    %565 = vector.broadcast %163 : vector<1x128xf32> to vector<48x128xf32>
    %566 = arith.mulf %564, %565 : vector<48x128xf32>
    %567 = vector.extract_strided_slice %518 {offsets = [0, 7], sizes = [48, 1], strides = [1, 1]} : vector<48x9xf32> to vector<48x1xf32>
    %568 = vector.broadcast %567 : vector<48x1xf32> to vector<48x128xf32>
    %569 = arith.mulf %566, %568 : vector<48x128xf32>
    %570 = arith.addf %563, %569 : vector<48x128xf32>
    %c119_i32_187 = arith.constant 119 : i32
    %571 = tpu.dynamic_rotate %516 by %c119_i32_187 dim 1 : vector<48x128xf32>, i32 -> vector<48x128xf32>
    %572 = vector.broadcast %184 : vector<1x128xf32> to vector<48x128xf32>
    %573 = arith.mulf %571, %572 : vector<48x128xf32>
    %574 = vector.extract_strided_slice %518 {offsets = [0, 8], sizes = [48, 1], strides = [1, 1]} : vector<48x9xf32> to vector<48x1xf32>
    %575 = vector.broadcast %574 : vector<48x1xf32> to vector<48x128xf32>
    %576 = arith.mulf %573, %575 : vector<48x128xf32>
    %577 = arith.addf %570, %576 : vector<48x128xf32>
    %578 = vector.extract_strided_slice %577 {offsets = [0, 0], sizes = [16, 128], strides = [1, 1]} : vector<48x128xf32> to vector<16x128xf32>
    %579 = vector.extract_strided_slice %577 {offsets = [16, 0], sizes = [16, 128], strides = [1, 1]} : vector<48x128xf32> to vector<16x128xf32>
    %580 = vector.extract_strided_slice %577 {offsets = [32, 0], sizes = [16, 128], strides = [1, 1]} : vector<48x128xf32> to vector<16x128xf32>
    %581 = vector.broadcast %9 : vector<1x128xf32> to vector<16x128xf32>
    %582 = arith.mulf %578, %581 : vector<16x128xf32>
    %583 = vector.broadcast %16 : vector<1x128xf32> to vector<16x128xf32>
    %584 = arith.mulf %578, %583 : vector<16x128xf32>
    %585 = tpu.concatenate %582, %584 in 0 : vector<16x128xf32>, vector<16x128xf32> -> vector<32x128xf32>
    %586 = vector.broadcast %9 : vector<1x128xf32> to vector<16x128xf32>
    %587 = arith.mulf %579, %586 : vector<16x128xf32>
    %588 = vector.broadcast %16 : vector<1x128xf32> to vector<16x128xf32>
    %589 = arith.mulf %579, %588 : vector<16x128xf32>
    %590 = tpu.concatenate %587, %589 in 0 : vector<16x128xf32>, vector<16x128xf32> -> vector<32x128xf32>
    %591 = tpu.concatenate %580, %580 in 0 : vector<16x128xf32>, vector<16x128xf32> -> vector<32x128xf32>
    %c1_188 = arith.constant 1 : index
    %c0_189 = arith.constant 0 : index
    %c0_190 = arith.constant 0 : index
    %592 = vector.load %arg11[%c1_188, %c0_189, %c0_190] : memref<2x16x1xf32, #tpu.memory_space<vmem>>, vector<1x16x1xf32>
    %593 = vector.shape_cast %592 : vector<1x16x1xf32> to vector<16x1xf32>
    %c1_191 = arith.constant 1 : index
    %c0_192 = arith.constant 0 : index
    %c0_193 = arith.constant 0 : index
    %594 = vector.load %arg11[%c1_191, %c0_192, %c0_193] : memref<2x16x1xf32, #tpu.memory_space<vmem>>, vector<1x16x1xf32>
    %595 = vector.shape_cast %594 : vector<1x16x1xf32> to vector<16x1xf32>
    %596 = tpu.concatenate %593, %595 in 0 : vector<16x1xf32>, vector<16x1xf32> -> vector<32x1xf32>
    %597 = arith.mulf %585, %585 : vector<32x128xf32>
    %cst_194 = arith.constant dense<0.000000e+00> : vector<32xf32>
    %598 = vector.multi_reduction <add>, %597, %cst_194 [1] : vector<32x128xf32> to vector<32xf32>
    %599 = vector.shape_cast %598 : vector<32xf32> to vector<32x1xf32>
    %cst_195 = arith.constant 1.000000e-24 : f32
    %600 = vector.broadcast %cst_195 : f32 to vector<32x1xf32>
    %601 = arith.maximumf %599, %600 : vector<32x1xf32>
    %602 = math.rsqrt %601 : vector<32x1xf32>
    %603 = vector.broadcast %602 : vector<32x1xf32> to vector<32x128xf32>
    %604 = arith.mulf %585, %603 : vector<32x128xf32>
    %605 = arith.mulf %590, %590 : vector<32x128xf32>
    %cst_196 = arith.constant dense<0.000000e+00> : vector<32xf32>
    %606 = vector.multi_reduction <add>, %605, %cst_196 [1] : vector<32x128xf32> to vector<32xf32>
    %607 = vector.shape_cast %606 : vector<32xf32> to vector<32x1xf32>
    %cst_197 = arith.constant 1.000000e-24 : f32
    %608 = vector.broadcast %cst_197 : f32 to vector<32x1xf32>
    %609 = arith.maximumf %607, %608 : vector<32x1xf32>
    %610 = math.rsqrt %609 : vector<32x1xf32>
    %611 = vector.broadcast %610 : vector<32x1xf32> to vector<32x128xf32>
    %612 = arith.mulf %590, %611 : vector<32x128xf32>
    %cst_198 = arith.constant dense<0.000000e+00> : vector<32x32xf32>
    %613 = tpu.matmul %604, %612, %cst_198 {dimension_numbers = #tpu.dot_dimension_numbers<[1], [1], [0], [0], [0, 0, 1, 0], [], []>} : vector<32x128xf32>, vector<32x128xf32>, vector<32x32xf32> -> vector<32x32xf32>
    %614 = vector.broadcast %596 : vector<32x1xf32> to vector<32x32xf32>
    %615 = arith.mulf %613, %614 : vector<32x32xf32>
    %616 = arith.addf %615, %185 : vector<32x32xf32>
    %cst_199 = arith.constant dense<0xFF800000> : vector<32xf32>
    %617 = vector.multi_reduction <maximumf>, %616, %cst_199 [1] : vector<32x32xf32> to vector<32xf32>
    %618 = vector.shape_cast %617 : vector<32xf32> to vector<32x1xf32>
    %619 = vector.broadcast %618 : vector<32x1xf32> to vector<32x32xf32>
    %620 = arith.subf %616, %619 : vector<32x32xf32>
    %621 = math.exp %620 : vector<32x32xf32>
    %cst_200 = arith.constant dense<0.000000e+00> : vector<32xf32>
    %622 = vector.multi_reduction <add>, %621, %cst_200 [1] : vector<32x32xf32> to vector<32xf32>
    %623 = vector.shape_cast %622 : vector<32xf32> to vector<32x1xf32>
    %624 = tpu.reciprocal %623 {approx = true} : vector<32x1xf32> -> vector<32x1xf32>
    %625 = vector.broadcast %624 : vector<32x1xf32> to vector<32x32xf32>
    %626 = arith.mulf %621, %625 : vector<32x32xf32>
    %cst_201 = arith.constant dense<0.000000e+00> : vector<32x128xf32>
    %627 = tpu.matmul %626, %591, %cst_201 {dimension_numbers = #tpu.dot_dimension_numbers<[1], [0], [0], [1], [0, 0, 1, 1], [], []>} : vector<32x32xf32>, vector<32x128xf32>, vector<32x128xf32> -> vector<32x128xf32>
    %628 = vector.extract_strided_slice %627 {offsets = [0, 0], sizes = [16, 128], strides = [1, 1]} : vector<32x128xf32> to vector<16x128xf32>
    %629 = vector.broadcast %9 : vector<1x128xf32> to vector<16x128xf32>
    %630 = arith.mulf %628, %629 : vector<16x128xf32>
    %631 = vector.extract_strided_slice %627 {offsets = [16, 0], sizes = [16, 128], strides = [1, 1]} : vector<32x128xf32> to vector<16x128xf32>
    %632 = vector.broadcast %16 : vector<1x128xf32> to vector<16x128xf32>
    %633 = arith.mulf %631, %632 : vector<16x128xf32>
    %634 = arith.addf %630, %633 : vector<16x128xf32>
    %c1_202 = arith.constant 1 : index
    %c0_203 = arith.constant 0 : index
    %c0_204 = arith.constant 0 : index
    %635 = vector.load %arg12[%c1_202, %c0_203, %c0_204] : memref<2x16x16xf32, #tpu.memory_space<vmem>>, vector<1x16x16xf32>
    %636 = vector.shape_cast %635 : vector<1x16x16xf32> to vector<16x16xf32>
    %cst_205 = arith.constant dense<0.000000e+00> : vector<16x128xf32>
    %637 = tpu.matmul %636, %634, %cst_205 {dimension_numbers = #tpu.dot_dimension_numbers<[1], [0], [0], [1], [0, 0, 1, 1], [], []>} : vector<16x16xf32>, vector<16x128xf32>, vector<16x128xf32> -> vector<16x128xf32>
    %638 = arith.addf %489, %637 : vector<16x128xf32>
    %c1_206 = arith.constant 1 : index
    %c0_207 = arith.constant 0 : index
    %c0_208 = arith.constant 0 : index
    %639 = vector.load %arg13[%c1_206, %c0_207, %c0_208] : memref<2x16x1xf32, #tpu.memory_space<vmem>>, vector<1x16x1xf32>
    %640 = vector.shape_cast %639 : vector<1x16x1xf32> to vector<16x1xf32>
    %c1_209 = arith.constant 1 : index
    %c0_210 = arith.constant 0 : index
    %c0_211 = arith.constant 0 : index
    %641 = vector.load %arg14[%c1_209, %c0_210, %c0_211] : memref<2x16x1xf32, #tpu.memory_space<vmem>>, vector<1x16x1xf32>
    %642 = vector.shape_cast %641 : vector<1x16x1xf32> to vector<16x1xf32>
    %cst_212 = arith.constant dense<0.000000e+00> : vector<128xf32>
    %643 = vector.multi_reduction <add>, %638, %cst_212 [0] : vector<16x128xf32> to vector<128xf32>
    %644 = vector.shape_cast %643 : vector<128xf32> to vector<1x128xf32>
    %cst_213 = arith.constant 1.600000e+01 : f32
    %645 = vector.broadcast %cst_213 : f32 to vector<1x128xf32>
    %646 = arith.divf %644, %645 : vector<1x128xf32>
    %647 = vector.broadcast %646 : vector<1x128xf32> to vector<16x128xf32>
    %648 = arith.subf %638, %647 : vector<16x128xf32>
    %649 = arith.mulf %648, %648 : vector<16x128xf32>
    %cst_214 = arith.constant dense<0.000000e+00> : vector<128xf32>
    %650 = vector.multi_reduction <add>, %649, %cst_214 [0] : vector<16x128xf32> to vector<128xf32>
    %651 = vector.shape_cast %650 : vector<128xf32> to vector<1x128xf32>
    %cst_215 = arith.constant 1.600000e+01 : f32
    %652 = vector.broadcast %cst_215 : f32 to vector<1x128xf32>
    %653 = arith.divf %651, %652 : vector<1x128xf32>
    %cst_216 = arith.constant 9.99999974E-6 : f32
    %654 = vector.broadcast %cst_216 : f32 to vector<1x128xf32>
    %655 = arith.addf %653, %654 : vector<1x128xf32>
    %656 = math.rsqrt %655 : vector<1x128xf32>
    %657 = vector.broadcast %656 : vector<1x128xf32> to vector<16x128xf32>
    %658 = arith.mulf %648, %657 : vector<16x128xf32>
    %659 = vector.broadcast %640 : vector<16x1xf32> to vector<16x128xf32>
    %660 = arith.mulf %658, %659 : vector<16x128xf32>
    %661 = vector.broadcast %642 : vector<16x1xf32> to vector<16x128xf32>
    %662 = arith.addf %660, %661 : vector<16x128xf32>
    %c1_217 = arith.constant 1 : index
    %c0_218 = arith.constant 0 : index
    %c0_219 = arith.constant 0 : index
    %663 = vector.load %arg15[%c1_217, %c0_218, %c0_219] : memref<2x64x16xf32, #tpu.memory_space<vmem>>, vector<1x64x16xf32>
    %664 = vector.shape_cast %663 : vector<1x64x16xf32> to vector<64x16xf32>
    %cst_220 = arith.constant dense<0.000000e+00> : vector<64x128xf32>
    %665 = tpu.matmul %664, %662, %cst_220 {dimension_numbers = #tpu.dot_dimension_numbers<[1], [0], [0], [1], [0, 0, 1, 1], [], []>} : vector<64x16xf32>, vector<16x128xf32>, vector<64x128xf32> -> vector<64x128xf32>
    %c1_221 = arith.constant 1 : index
    %c0_222 = arith.constant 0 : index
    %c0_223 = arith.constant 0 : index
    %666 = vector.load %arg16[%c1_221, %c0_222, %c0_223] : memref<2x64x9xf32, #tpu.memory_space<vmem>>, vector<1x64x9xf32>
    %667 = vector.shape_cast %666 : vector<1x64x9xf32> to vector<64x9xf32>
    %668 = vector.extract_strided_slice %667 {offsets = [0, 4], sizes = [64, 1], strides = [1, 1]} : vector<64x9xf32> to vector<64x1xf32>
    %669 = vector.broadcast %668 : vector<64x1xf32> to vector<64x128xf32>
    %670 = arith.mulf %665, %669 : vector<64x128xf32>
    %c9_i32_224 = arith.constant 9 : i32
    %671 = tpu.dynamic_rotate %665 by %c9_i32_224 dim 1 : vector<64x128xf32>, i32 -> vector<64x128xf32>
    %672 = vector.broadcast %37 : vector<1x128xf32> to vector<64x128xf32>
    %673 = arith.mulf %671, %672 : vector<64x128xf32>
    %674 = vector.extract_strided_slice %667 {offsets = [0, 0], sizes = [64, 1], strides = [1, 1]} : vector<64x9xf32> to vector<64x1xf32>
    %675 = vector.broadcast %674 : vector<64x1xf32> to vector<64x128xf32>
    %676 = arith.mulf %673, %675 : vector<64x128xf32>
    %677 = arith.addf %670, %676 : vector<64x128xf32>
    %c8_i32_225 = arith.constant 8 : i32
    %678 = tpu.dynamic_rotate %665 by %c8_i32_225 dim 1 : vector<64x128xf32>, i32 -> vector<64x128xf32>
    %679 = vector.broadcast %58 : vector<1x128xf32> to vector<64x128xf32>
    %680 = arith.mulf %678, %679 : vector<64x128xf32>
    %681 = vector.extract_strided_slice %667 {offsets = [0, 1], sizes = [64, 1], strides = [1, 1]} : vector<64x9xf32> to vector<64x1xf32>
    %682 = vector.broadcast %681 : vector<64x1xf32> to vector<64x128xf32>
    %683 = arith.mulf %680, %682 : vector<64x128xf32>
    %684 = arith.addf %677, %683 : vector<64x128xf32>
    %c7_i32_226 = arith.constant 7 : i32
    %685 = tpu.dynamic_rotate %665 by %c7_i32_226 dim 1 : vector<64x128xf32>, i32 -> vector<64x128xf32>
    %686 = vector.broadcast %79 : vector<1x128xf32> to vector<64x128xf32>
    %687 = arith.mulf %685, %686 : vector<64x128xf32>
    %688 = vector.extract_strided_slice %667 {offsets = [0, 2], sizes = [64, 1], strides = [1, 1]} : vector<64x9xf32> to vector<64x1xf32>
    %689 = vector.broadcast %688 : vector<64x1xf32> to vector<64x128xf32>
    %690 = arith.mulf %687, %689 : vector<64x128xf32>
    %691 = arith.addf %684, %690 : vector<64x128xf32>
    %c1_i32_227 = arith.constant 1 : i32
    %692 = tpu.dynamic_rotate %665 by %c1_i32_227 dim 1 : vector<64x128xf32>, i32 -> vector<64x128xf32>
    %693 = vector.broadcast %100 : vector<1x128xf32> to vector<64x128xf32>
    %694 = arith.mulf %692, %693 : vector<64x128xf32>
    %695 = vector.extract_strided_slice %667 {offsets = [0, 3], sizes = [64, 1], strides = [1, 1]} : vector<64x9xf32> to vector<64x1xf32>
    %696 = vector.broadcast %695 : vector<64x1xf32> to vector<64x128xf32>
    %697 = arith.mulf %694, %696 : vector<64x128xf32>
    %698 = arith.addf %691, %697 : vector<64x128xf32>
    %c127_i32_228 = arith.constant 127 : i32
    %699 = tpu.dynamic_rotate %665 by %c127_i32_228 dim 1 : vector<64x128xf32>, i32 -> vector<64x128xf32>
    %700 = vector.broadcast %121 : vector<1x128xf32> to vector<64x128xf32>
    %701 = arith.mulf %699, %700 : vector<64x128xf32>
    %702 = vector.extract_strided_slice %667 {offsets = [0, 5], sizes = [64, 1], strides = [1, 1]} : vector<64x9xf32> to vector<64x1xf32>
    %703 = vector.broadcast %702 : vector<64x1xf32> to vector<64x128xf32>
    %704 = arith.mulf %701, %703 : vector<64x128xf32>
    %705 = arith.addf %698, %704 : vector<64x128xf32>
    %c121_i32_229 = arith.constant 121 : i32
    %706 = tpu.dynamic_rotate %665 by %c121_i32_229 dim 1 : vector<64x128xf32>, i32 -> vector<64x128xf32>
    %707 = vector.broadcast %142 : vector<1x128xf32> to vector<64x128xf32>
    %708 = arith.mulf %706, %707 : vector<64x128xf32>
    %709 = vector.extract_strided_slice %667 {offsets = [0, 6], sizes = [64, 1], strides = [1, 1]} : vector<64x9xf32> to vector<64x1xf32>
    %710 = vector.broadcast %709 : vector<64x1xf32> to vector<64x128xf32>
    %711 = arith.mulf %708, %710 : vector<64x128xf32>
    %712 = arith.addf %705, %711 : vector<64x128xf32>
    %c120_i32_230 = arith.constant 120 : i32
    %713 = tpu.dynamic_rotate %665 by %c120_i32_230 dim 1 : vector<64x128xf32>, i32 -> vector<64x128xf32>
    %714 = vector.broadcast %163 : vector<1x128xf32> to vector<64x128xf32>
    %715 = arith.mulf %713, %714 : vector<64x128xf32>
    %716 = vector.extract_strided_slice %667 {offsets = [0, 7], sizes = [64, 1], strides = [1, 1]} : vector<64x9xf32> to vector<64x1xf32>
    %717 = vector.broadcast %716 : vector<64x1xf32> to vector<64x128xf32>
    %718 = arith.mulf %715, %717 : vector<64x128xf32>
    %719 = arith.addf %712, %718 : vector<64x128xf32>
    %c119_i32_231 = arith.constant 119 : i32
    %720 = tpu.dynamic_rotate %665 by %c119_i32_231 dim 1 : vector<64x128xf32>, i32 -> vector<64x128xf32>
    %721 = vector.broadcast %184 : vector<1x128xf32> to vector<64x128xf32>
    %722 = arith.mulf %720, %721 : vector<64x128xf32>
    %723 = vector.extract_strided_slice %667 {offsets = [0, 8], sizes = [64, 1], strides = [1, 1]} : vector<64x9xf32> to vector<64x1xf32>
    %724 = vector.broadcast %723 : vector<64x1xf32> to vector<64x128xf32>
    %725 = arith.mulf %722, %724 : vector<64x128xf32>
    %726 = arith.addf %719, %725 : vector<64x128xf32>
    %727 = vector.extract_strided_slice %726 {offsets = [0, 0], sizes = [32, 128], strides = [1, 1]} : vector<64x128xf32> to vector<32x128xf32>
    %728 = math.absf %727 : vector<32x128xf32>
    %cst_232 = arith.constant 5.000000e-01 : f32
    %729 = vector.broadcast %cst_232 : f32 to vector<32x128xf32>
    %730 = arith.mulf %729, %728 : vector<32x128xf32>
    %cst_233 = arith.constant 1.000000e+00 : f32
    %731 = vector.broadcast %cst_233 : f32 to vector<32x128xf32>
    %732 = arith.addf %731, %730 : vector<32x128xf32>
    %cst_234 = arith.constant 1.000000e+00 : f32
    %733 = vector.broadcast %cst_234 : f32 to vector<32x128xf32>
    %734 = arith.divf %733, %732 : vector<32x128xf32>
    %cst_235 = arith.constant 0.000000e+00 : f32
    %735 = vector.broadcast %cst_235 : f32 to vector<32x128xf32>
    %736 = arith.subf %735, %728 : vector<32x128xf32>
    %737 = arith.mulf %736, %728 : vector<32x128xf32>
    %cst_236 = arith.constant 1.26551223 : f32
    %738 = vector.broadcast %cst_236 : f32 to vector<32x128xf32>
    %739 = arith.subf %737, %738 : vector<32x128xf32>
    %cst_237 = arith.constant 0.170872763 : f32
    %740 = vector.broadcast %cst_237 : f32 to vector<32x128xf32>
    %741 = arith.mulf %734, %740 : vector<32x128xf32>
    %cst_238 = arith.constant -0.822152256 : f32
    %742 = vector.broadcast %cst_238 : f32 to vector<32x128xf32>
    %743 = arith.addf %742, %741 : vector<32x128xf32>
    %744 = arith.mulf %734, %743 : vector<32x128xf32>
    %cst_239 = arith.constant 1.48851585 : f32
    %745 = vector.broadcast %cst_239 : f32 to vector<32x128xf32>
    %746 = arith.addf %745, %744 : vector<32x128xf32>
    %747 = arith.mulf %734, %746 : vector<32x128xf32>
    %cst_240 = arith.constant -1.13520396 : f32
    %748 = vector.broadcast %cst_240 : f32 to vector<32x128xf32>
    %749 = arith.addf %748, %747 : vector<32x128xf32>
    %750 = arith.mulf %734, %749 : vector<32x128xf32>
    %cst_241 = arith.constant 0.278868079 : f32
    %751 = vector.broadcast %cst_241 : f32 to vector<32x128xf32>
    %752 = arith.addf %751, %750 : vector<32x128xf32>
    %753 = arith.mulf %734, %752 : vector<32x128xf32>
    %cst_242 = arith.constant -0.186288059 : f32
    %754 = vector.broadcast %cst_242 : f32 to vector<32x128xf32>
    %755 = arith.addf %754, %753 : vector<32x128xf32>
    %756 = arith.mulf %734, %755 : vector<32x128xf32>
    %cst_243 = arith.constant 0.0967841818 : f32
    %757 = vector.broadcast %cst_243 : f32 to vector<32x128xf32>
    %758 = arith.addf %757, %756 : vector<32x128xf32>
    %759 = arith.mulf %734, %758 : vector<32x128xf32>
    %cst_244 = arith.constant 0.374091953 : f32
    %760 = vector.broadcast %cst_244 : f32 to vector<32x128xf32>
    %761 = arith.addf %760, %759 : vector<32x128xf32>
    %762 = arith.mulf %734, %761 : vector<32x128xf32>
    %cst_245 = arith.constant 1.00002372 : f32
    %763 = vector.broadcast %cst_245 : f32 to vector<32x128xf32>
    %764 = arith.addf %763, %762 : vector<32x128xf32>
    %765 = arith.mulf %734, %764 : vector<32x128xf32>
    %766 = arith.addf %739, %765 : vector<32x128xf32>
    %767 = math.exp %766 : vector<32x128xf32>
    %768 = arith.mulf %734, %767 : vector<32x128xf32>
    %cst_246 = arith.constant 0.000000e+00 : f32
    %769 = vector.broadcast %cst_246 : f32 to vector<32x128xf32>
    %770 = arith.cmpf oge, %727, %769 : vector<32x128xf32>
    %cst_247 = arith.constant 1.000000e+00 : f32
    %771 = vector.broadcast %cst_247 : f32 to vector<32x128xf32>
    %772 = arith.subf %771, %768 : vector<32x128xf32>
    %cst_248 = arith.constant 1.000000e+00 : f32
    %773 = vector.broadcast %cst_248 : f32 to vector<32x128xf32>
    %774 = arith.subf %768, %773 : vector<32x128xf32>
    %775 = arith.select %770, %772, %774 : vector<32x128xi1>, vector<32x128xf32>
    %cst_249 = arith.constant 5.000000e-01 : f32
    %776 = vector.broadcast %cst_249 : f32 to vector<32x128xf32>
    %777 = arith.mulf %776, %727 : vector<32x128xf32>
    %cst_250 = arith.constant 1.000000e+00 : f32
    %778 = vector.broadcast %cst_250 : f32 to vector<32x128xf32>
    %779 = arith.addf %778, %775 : vector<32x128xf32>
    %780 = arith.mulf %777, %779 : vector<32x128xf32>
    %781 = vector.extract_strided_slice %726 {offsets = [32, 0], sizes = [32, 128], strides = [1, 1]} : vector<64x128xf32> to vector<32x128xf32>
    %782 = arith.mulf %780, %781 : vector<32x128xf32>
    %c1_251 = arith.constant 1 : index
    %c0_252 = arith.constant 0 : index
    %c0_253 = arith.constant 0 : index
    %783 = vector.load %arg17[%c1_251, %c0_252, %c0_253] : memref<2x16x32xf32, #tpu.memory_space<vmem>>, vector<1x16x32xf32>
    %784 = vector.shape_cast %783 : vector<1x16x32xf32> to vector<16x32xf32>
    %cst_254 = arith.constant dense<0.000000e+00> : vector<16x128xf32>
    %785 = tpu.matmul %784, %782, %cst_254 {dimension_numbers = #tpu.dot_dimension_numbers<[1], [0], [0], [1], [0, 0, 1, 1], [], []>} : vector<16x32xf32>, vector<32x128xf32>, vector<16x128xf32> -> vector<16x128xf32>
    %786 = arith.addf %638, %785 : vector<16x128xf32>
    %c0_255 = arith.constant 0 : index
    %c0_256 = arith.constant 0 : index
    %787 = vector.load %arg18[%c0_255, %c0_256] : memref<8x144xf32, #tpu.memory_space<vmem>>, vector<8x144xf32>
    %c9_i32_257 = arith.constant 9 : i32
    %788 = tpu.dynamic_rotate %786 by %c9_i32_257 dim 1 : vector<16x128xf32>, i32 -> vector<16x128xf32>
    %789 = vector.broadcast %37 : vector<1x128xf32> to vector<16x128xf32>
    %790 = arith.mulf %788, %789 : vector<16x128xf32>
    %c8_i32_258 = arith.constant 8 : i32
    %791 = tpu.dynamic_rotate %786 by %c8_i32_258 dim 1 : vector<16x128xf32>, i32 -> vector<16x128xf32>
    %792 = vector.broadcast %58 : vector<1x128xf32> to vector<16x128xf32>
    %793 = arith.mulf %791, %792 : vector<16x128xf32>
    %c7_i32_259 = arith.constant 7 : i32
    %794 = tpu.dynamic_rotate %786 by %c7_i32_259 dim 1 : vector<16x128xf32>, i32 -> vector<16x128xf32>
    %795 = vector.broadcast %79 : vector<1x128xf32> to vector<16x128xf32>
    %796 = arith.mulf %794, %795 : vector<16x128xf32>
    %c1_i32_260 = arith.constant 1 : i32
    %797 = tpu.dynamic_rotate %786 by %c1_i32_260 dim 1 : vector<16x128xf32>, i32 -> vector<16x128xf32>
    %798 = vector.broadcast %100 : vector<1x128xf32> to vector<16x128xf32>
    %799 = arith.mulf %797, %798 : vector<16x128xf32>
    %c127_i32_261 = arith.constant 127 : i32
    %800 = tpu.dynamic_rotate %786 by %c127_i32_261 dim 1 : vector<16x128xf32>, i32 -> vector<16x128xf32>
    %801 = vector.broadcast %121 : vector<1x128xf32> to vector<16x128xf32>
    %802 = arith.mulf %800, %801 : vector<16x128xf32>
    %c121_i32_262 = arith.constant 121 : i32
    %803 = tpu.dynamic_rotate %786 by %c121_i32_262 dim 1 : vector<16x128xf32>, i32 -> vector<16x128xf32>
    %804 = vector.broadcast %142 : vector<1x128xf32> to vector<16x128xf32>
    %805 = arith.mulf %803, %804 : vector<16x128xf32>
    %c120_i32_263 = arith.constant 120 : i32
    %806 = tpu.dynamic_rotate %786 by %c120_i32_263 dim 1 : vector<16x128xf32>, i32 -> vector<16x128xf32>
    %807 = vector.broadcast %163 : vector<1x128xf32> to vector<16x128xf32>
    %808 = arith.mulf %806, %807 : vector<16x128xf32>
    %c119_i32_264 = arith.constant 119 : i32
    %809 = tpu.dynamic_rotate %786 by %c119_i32_264 dim 1 : vector<16x128xf32>, i32 -> vector<16x128xf32>
    %810 = vector.broadcast %184 : vector<1x128xf32> to vector<16x128xf32>
    %811 = arith.mulf %809, %810 : vector<16x128xf32>
    %812 = tpu.concatenate %790, %793, %796, %799, %786, %802, %805, %808, %811 in 0 : vector<16x128xf32>, vector<16x128xf32>, vector<16x128xf32>, vector<16x128xf32>, vector<16x128xf32>, vector<16x128xf32>, vector<16x128xf32>, vector<16x128xf32>, vector<16x128xf32> -> vector<144x128xf32>
    %cst_265 = arith.constant dense<0.000000e+00> : vector<8x128xf32>
    %813 = tpu.matmul %787, %812, %cst_265 {dimension_numbers = #tpu.dot_dimension_numbers<[1], [0], [0], [1], [0, 0, 1, 1], [], []>} : vector<8x144xf32>, vector<144x128xf32>, vector<8x128xf32> -> vector<8x128xf32>
    %cst_266 = arith.constant 0.000000e+00 : f32
    %814 = vector.broadcast %cst_266 : f32 to vector<8x128xf32>
    %815 = arith.cmpf oge, %813, %814 : vector<8x128xf32>
    %cst_267 = arith.constant 0.00999999977 : f32
    %816 = vector.broadcast %cst_267 : f32 to vector<8x128xf32>
    %817 = arith.mulf %816, %813 : vector<8x128xf32>
    %818 = arith.select %815, %813, %817 : vector<8x128xi1>, vector<8x128xf32>
    %c0_268 = arith.constant 0 : index
    %c0_269 = arith.constant 0 : index
    %819 = vector.load %arg19[%c0_268, %c0_269] : memref<8x72xf32, #tpu.memory_space<vmem>>, vector<8x72xf32>
    %c9_i32_270 = arith.constant 9 : i32
    %820 = tpu.dynamic_rotate %818 by %c9_i32_270 dim 1 : vector<8x128xf32>, i32 -> vector<8x128xf32>
    %821 = vector.broadcast %37 : vector<1x128xf32> to vector<8x128xf32>
    %822 = arith.mulf %820, %821 : vector<8x128xf32>
    %c8_i32_271 = arith.constant 8 : i32
    %823 = tpu.dynamic_rotate %818 by %c8_i32_271 dim 1 : vector<8x128xf32>, i32 -> vector<8x128xf32>
    %824 = vector.broadcast %58 : vector<1x128xf32> to vector<8x128xf32>
    %825 = arith.mulf %823, %824 : vector<8x128xf32>
    %c7_i32_272 = arith.constant 7 : i32
    %826 = tpu.dynamic_rotate %818 by %c7_i32_272 dim 1 : vector<8x128xf32>, i32 -> vector<8x128xf32>
    %827 = vector.broadcast %79 : vector<1x128xf32> to vector<8x128xf32>
    %828 = arith.mulf %826, %827 : vector<8x128xf32>
    %c1_i32_273 = arith.constant 1 : i32
    %829 = tpu.dynamic_rotate %818 by %c1_i32_273 dim 1 : vector<8x128xf32>, i32 -> vector<8x128xf32>
    %830 = vector.broadcast %100 : vector<1x128xf32> to vector<8x128xf32>
    %831 = arith.mulf %829, %830 : vector<8x128xf32>
    %c127_i32_274 = arith.constant 127 : i32
    %832 = tpu.dynamic_rotate %818 by %c127_i32_274 dim 1 : vector<8x128xf32>, i32 -> vector<8x128xf32>
    %833 = vector.broadcast %121 : vector<1x128xf32> to vector<8x128xf32>
    %834 = arith.mulf %832, %833 : vector<8x128xf32>
    %c121_i32_275 = arith.constant 121 : i32
    %835 = tpu.dynamic_rotate %818 by %c121_i32_275 dim 1 : vector<8x128xf32>, i32 -> vector<8x128xf32>
    %836 = vector.broadcast %142 : vector<1x128xf32> to vector<8x128xf32>
    %837 = arith.mulf %835, %836 : vector<8x128xf32>
    %c120_i32_276 = arith.constant 120 : i32
    %838 = tpu.dynamic_rotate %818 by %c120_i32_276 dim 1 : vector<8x128xf32>, i32 -> vector<8x128xf32>
    %839 = vector.broadcast %163 : vector<1x128xf32> to vector<8x128xf32>
    %840 = arith.mulf %838, %839 : vector<8x128xf32>
    %c119_i32_277 = arith.constant 119 : i32
    %841 = tpu.dynamic_rotate %818 by %c119_i32_277 dim 1 : vector<8x128xf32>, i32 -> vector<8x128xf32>
    %842 = vector.broadcast %184 : vector<1x128xf32> to vector<8x128xf32>
    %843 = arith.mulf %841, %842 : vector<8x128xf32>
    %844 = tpu.concatenate %822, %825, %828, %831, %818, %834, %837, %840, %843 in 0 : vector<8x128xf32>, vector<8x128xf32>, vector<8x128xf32>, vector<8x128xf32>, vector<8x128xf32>, vector<8x128xf32>, vector<8x128xf32>, vector<8x128xf32>, vector<8x128xf32> -> vector<72x128xf32>
    %cst_278 = arith.constant dense<0.000000e+00> : vector<8x128xf32>
    %845 = tpu.matmul %819, %844, %cst_278 {dimension_numbers = #tpu.dot_dimension_numbers<[1], [0], [0], [1], [0, 0, 1, 1], [], []>} : vector<8x72xf32>, vector<72x128xf32>, vector<8x128xf32> -> vector<8x128xf32>
    %c0_279 = arith.constant 0 : index
    %c0_280 = arith.constant 0 : index
    %846 = vector.load %arg20[%c0_279, %c0_280] : memref<8x128xf32, #tpu.memory_space<vmem>>, vector<8x128xf32>
    tpu.vector_store %arg20[%c0_279, %c0_280], %845 {strides = array<i32>} : memref<8x128xf32, #tpu.memory_space<vmem>>, vector<8x128xf32>,
    return
  }
}

</mosaic_0001>

<llo_original>
// kernel: restormer_decoder_hr.1
$region0: #{restormer_decoder_hr.1}
  #allocation0 [shape = 'u32[]', space=smem, size = 0x4, offset = 0x4, fixed_abs, tag = 'smem constant byte address 0x4 - core index']
  #allocation1 [shape = 'u32[144,128]{1,0:T(1,128)}', space=vmem, size = 0x12000, scoped, tag = 'internal scratch']
  %s0 = inlined_call_operand.vmem [shape: f32[16,128], index: 0, kind: input, shape index: {}]
  %s1 = inlined_call_operand.vmem [shape: f32[16,128], index: 1, kind: input, shape index: {}]
  %s2 = inlined_call_operand.vmem [shape: s32[1,128], index: 2, kind: input, shape index: {}]
  %s3 = inlined_call_operand.vmem [shape: s32[1,128], index: 3, kind: input, shape index: {}]
  %s4 = inlined_call_operand.vmem [shape: f32[32,32], index: 4, kind: input, shape index: {}]
  %s5 = inlined_call_operand.vmem [shape: f32[16,16], index: 5, kind: input, shape index: {}]
  %s6 = inlined_call_operand.vmem [shape: f32[16,16], index: 6, kind: input, shape index: {}]
  %s7 = inlined_call_operand.vmem [shape: f32[2,16,1], index: 7, kind: input, shape index: {}]
  %s8 = inlined_call_operand.vmem [shape: f32[2,16,1], index: 8, kind: input, shape index: {}]
  %s9 = inlined_call_operand.vmem [shape: f32[2,48,16], index: 9, kind: input, shape index: {}]
  %s10 = inlined_call_operand.vmem [shape: f32[2,48,9], index: 10, kind: input, shape index: {}]
  %s11 = inlined_call_operand.vmem [shape: f32[2,16,1], index: 11, kind: input, shape index: {}]
  %s12 = inlined_call_operand.vmem [shape: f32[2,16,16], index: 12, kind: input, shape index: {}]
  %s13 = inlined_call_operand.vmem [shape: f32[2,16,1], index: 13, kind: input, shape index: {}]
  %s14 = inlined_call_operand.vmem [shape: f32[2,16,1], index: 14, kind: input, shape index: {}]
  %s15 = inlined_call_operand.vmem [shape: f32[2,64,16], index: 15, kind: input, shape index: {}]
  %s16 = inlined_call_operand.vmem [shape: f32[2,64,9], index: 16, kind: input, shape index: {}]
  %s17 = inlined_call_operand.vmem [shape: f32[2,16,32], index: 17, kind: input, shape index: {}]
  %s18 = inlined_call_operand.vmem [shape: f32[8,144], index: 18, kind: input, shape index: {}]
  %s19 = inlined_call_operand.vmem [shape: f32[8,72], index: 19, kind: input, shape index: {}]
  %s20 = inlined_call_operand.vmem [shape: f32[8,128], index: 20, kind: output, shape index: {}]
  %s21 = sld [smem:[#allocation0]]
  $region90: #{restormer_decoder_hr.1} parent=0
    _
  %s23 = ssub.s32 1, %s21
  %s24 = scalar_select 0, %s23, %s21
  // Predicated region
  $region2: #{restormer_decoder_hr.1} parent=0 // pred_check
    _
  $region3: #{restormer_decoder_hr.1} parent=0 // pred_check_branch
    %26 = sbr.rel (0) target = $region5
  $region4: #{restormer_decoder_hr.1} parent=0 // pred_region
    _
  $region5: #{restormer_decoder_hr.1} parent=0 // pred_fallthru
    _
  // Predicated region
  $region6: #{restormer_decoder_hr.1} parent=0 // pred_check
    _
  $region7: #{restormer_decoder_hr.1} parent=0 // pred_check_branch
    %28 = sbr.rel (0) target = $region9
  $region8: #{restormer_decoder_hr.1} parent=0 // pred_region
    _
  $region9: #{restormer_decoder_hr.1} parent=0 // pred_fallthru
    _
  // Predicated region
  $region10: #{restormer_decoder_hr.1} parent=0 // pred_check
    _
  $region11: #{restormer_decoder_hr.1} parent=0 // pred_check_branch
    %30 = sbr.rel (0) target = $region13
  $region12: #{restormer_decoder_hr.1} parent=0 // pred_region
    _
  $region13: #{restormer_decoder_hr.1} parent=0 // pred_fallthru
    _
  // Predicated region
  $region14: #{restormer_decoder_hr.1} parent=0 // pred_check
    _
  $region15: #{restormer_decoder_hr.1} parent=0 // pred_check_branch
    %32 = sbr.rel (0) target = $region17
  $region16: #{restormer_decoder_hr.1} parent=0 // pred_region
    _
  $region17: #{restormer_decoder_hr.1} parent=0 // pred_fallthru
    _
  // Predicated region
  $region18: #{restormer_decoder_hr.1} parent=0 // pred_check
    _
  $region19: #{restormer_decoder_hr.1} parent=0 // pred_check_branch
    %34 = sbr.rel (0) target = $region21
  $region20: #{restormer_decoder_hr.1} parent=0 // pred_region
    _
  $region21: #{restormer_decoder_hr.1} parent=0 // pred_fallthru
    _
  // Predicated region
  $region22: #{restormer_decoder_hr.1} parent=0 // pred_check
    _
  $region23: #{restormer_decoder_hr.1} parent=0 // pred_check_branch
    %36 = sbr.rel (0) target = $region25
  $region24: #{restormer_decoder_hr.1} parent=0 // pred_region
    _
  $region25: #{restormer_decoder_hr.1} parent=0 // pred_fallthru
    _
  // Predicated region
  $region26: #{restormer_decoder_hr.1} parent=0 // pred_check
    _
  $region27: #{restormer_decoder_hr.1} parent=0 // pred_check_branch
    %38 = sbr.rel (0) target = $region29
  $region28: #{restormer_decoder_hr.1} parent=0 // pred_region
    _
  $region29: #{restormer_decoder_hr.1} parent=0 // pred_fallthru
    _
  // Predicated region
  $region30: #{restormer_decoder_hr.1} parent=0 // pred_check
    _
  $region31: #{restormer_decoder_hr.1} parent=0 // pred_check_branch
    %40 = sbr.rel (0) target = $region33
  $region32: #{restormer_decoder_hr.1} parent=0 // pred_region
    _
  $region33: #{restormer_decoder_hr.1} parent=0 // pred_fallthru
    _
  // Predicated region
  $region34: #{restormer_decoder_hr.1} parent=0 // pred_check
    _
  $region35: #{restormer_decoder_hr.1} parent=0 // pred_check_branch
    %42 = sbr.rel (0) target = $region37
  $region36: #{restormer_decoder_hr.1} parent=0 // pred_region
    _
  $region37: #{restormer_decoder_hr.1} parent=0 // pred_fallthru
    _
  // Predicated region
  $region38: #{restormer_decoder_hr.1} parent=0 // pred_check
    _
  $region39: #{restormer_decoder_hr.1} parent=0 // pred_check_branch
    %44 = sbr.rel (0) target = $region41
  $region40: #{restormer_decoder_hr.1} parent=0 // pred_region
    _
  $region41: #{restormer_decoder_hr.1} parent=0 // pred_fallthru
    _
  // Predicated region
  $region42: #{restormer_decoder_hr.1} parent=0 // pred_check
    _
  $region43: #{restormer_decoder_hr.1} parent=0 // pred_check_branch
    %46 = sbr.rel (0) target = $region45
  $region44: #{restormer_decoder_hr.1} parent=0 // pred_region
    _
  $region45: #{restormer_decoder_hr.1} parent=0 // pred_fallthru
    _
  // Predicated region
  $region46: #{restormer_decoder_hr.1} parent=0 // pred_check
    _
  $region47: #{restormer_decoder_hr.1} parent=0 // pred_check_branch
    %48 = sbr.rel (0) target = $region49
  $region48: #{restormer_decoder_hr.1} parent=0 // pred_region
    _
  $region49: #{restormer_decoder_hr.1} parent=0 // pred_fallthru
    _
  // Predicated region
  $region50: #{restormer_decoder_hr.1} parent=0 // pred_check
    _
  $region51: #{restormer_decoder_hr.1} parent=0 // pred_check_branch
    %50 = sbr.rel (0) target = $region53
  $region52: #{restormer_decoder_hr.1} parent=0 // pred_region
    _
  $region53: #{restormer_decoder_hr.1} parent=0 // pred_fallthru
    _
  // Predicated region
  $region54: #{restormer_decoder_hr.1} parent=0 // pred_check
    _
  $region55: #{restormer_decoder_hr.1} parent=0 // pred_check_branch
    %52 = sbr.rel (0) target = $region57
  $region56: #{restormer_decoder_hr.1} parent=0 // pred_region
    _
  $region57: #{restormer_decoder_hr.1} parent=0 // pred_fallthru
    _
  // Predicated region
  $region58: #{restormer_decoder_hr.1} parent=0 // pred_check
    _
  $region59: #{restormer_decoder_hr.1} parent=0 // pred_check_branch
    %54 = sbr.rel (0) target = $region61
  $region60: #{restormer_decoder_hr.1} parent=0 // pred_region
    _
  $region61: #{restormer_decoder_hr.1} parent=0 // pred_fallthru
    _
  // Predicated region
  $region62: #{restormer_decoder_hr.1} parent=0 // pred_check
    _
  $region63: #{restormer_decoder_hr.1} parent=0 // pred_check_branch
    %56 = sbr.rel (0) target = $region65
  $region64: #{restormer_decoder_hr.1} parent=0 // pred_region
    _
  $region65: #{restormer_decoder_hr.1} parent=0 // pred_fallthru
    _
  // Predicated region
  $region66: #{restormer_decoder_hr.1} parent=0 // pred_check
    _
  $region67: #{restormer_decoder_hr.1} parent=0 // pred_check_branch
    %58 = sbr.rel (0) target = $region69
  $region68: #{restormer_decoder_hr.1} parent=0 // pred_region
    _
  $region69: #{restormer_decoder_hr.1} parent=0 // pred_fallthru
    _
  // Predicated region
  $region70: #{restormer_decoder_hr.1} parent=0 // pred_check
    _
  $region71: #{restormer_decoder_hr.1} parent=0 // pred_check_branch
    %60 = sbr.rel (0) target = $region73
  $region72: #{restormer_decoder_hr.1} parent=0 // pred_region
    _
  $region73: #{restormer_decoder_hr.1} parent=0 // pred_fallthru
    _
  // Predicated region
  $region74: #{restormer_decoder_hr.1} parent=0 // pred_check
    _
  $region75: #{restormer_decoder_hr.1} parent=0 // pred_check_branch
    %62 = sbr.rel (0) target = $region77
  $region76: #{restormer_decoder_hr.1} parent=0 // pred_region
    _
  $region77: #{restormer_decoder_hr.1} parent=0 // pred_fallthru
    _
  // Predicated region
  $region78: #{restormer_decoder_hr.1} parent=0 // pred_check
    _
  $region79: #{restormer_decoder_hr.1} parent=0 // pred_check_branch
    %64 = sbr.rel (0) target = $region81
  $region80: #{restormer_decoder_hr.1} parent=0 // pred_region
    _
  $region81: #{restormer_decoder_hr.1} parent=0 // pred_fallthru
    _
  %v65 = vld [vmem:[%s2] sm:$0x1]
  %v66 = vld [vmem:[%s3] sm:$0x1]
  %v67 = vlaneseq
  %v68 = vand.u32 %v67, 127
  %vm69 = vcmp.ge.s32.totalorder %v68, 0
  %vm70 = vcmp.lt.s32.totalorder %v68, 64
  %vm71 = vmand %vm69, %vm70
  %v72 = vsel %vm71, 1, 0
  %v73 = vcvt.s32.f32 %v72
  %vm74 = vcmp.ge.s32.totalorder %v68, 64
  %vm75 = vcmp.lt.s32.totalorder %v68, 128
  %vm76 = vmand %vm74, %vm75
  %v77 = vsel %vm76, 1, 0
  %v78 = vcvt.s32.f32 %v77
  %v79 = vadd.s32 %v65, 4294967295
  %vm80 = vcmp.ge.s32.totalorder %v79, 0
  %vm81 = vcmp.lt.s32.totalorder %v79, 8
  %vm82 = vmand %vm80, %vm81
  %v83 = vadd.s32 %v66, 4294967295
  %vm84 = vcmp.ge.s32.totalorder %v83, 0
  %vm85 = vmand %vm82, %vm84
  %vm86 = vcmp.lt.s32.totalorder %v83, 8
  %vm87 = vmand %vm85, %vm86
  %v88 = vsel %vm87, 1, 0
  %v89 = vcvt.s32.f32 %v88
  %vm90 = vcmp.ge.s32.totalorder %v66, 0
  %vm91 = vmand %vm82, %vm90
  %vm92 = vcmp.lt.s32.totalorder %v66, 8
  %vm93 = vmand %vm91, %vm92
  %v94 = vsel %vm93, 1, 0
  %v95 = vcvt.s32.f32 %v94
  %v96 = vadd.s32 %v66, 1
  %vm97 = vcmp.ge.s32.totalorder %v96, 0
  %vm98 = vmand %vm82, %vm97
  %vm99 = vcmp.lt.s32.totalorder %v96, 8
  %vm100 = vmand %vm98, %vm99
  %v101 = vsel %vm100, 1, 0
  %v102 = vcvt.s32.f32 %v101
  %vm103 = vcmp.ge.s32.totalorder %v65, 0
  %vm104 = vcmp.lt.s32.totalorder %v65, 8
  %vm105 = vmand %vm103, %vm104
  %vm106 = vmand %vm105, %vm84
  %vm107 = vmand %vm106, %vm86
  %v108 = vsel %vm107, 1, 0
  %v109 = vcvt.s32.f32 %v108
  %vm110 = vmand %vm105, %vm97
  %vm111 = vmand %vm110, %vm99
  %v112 = vsel %vm111, 1, 0
  %v113 = vcvt.s32.f32 %v112
  %v114 = vadd.s32 %v65, 1
  %vm115 = vcmp.ge.s32.totalorder %v114, 0
  %vm116 = vcmp.lt.s32.totalorder %v114, 8
  %vm117 = vmand %vm115, %vm116
  %vm118 = vmand %vm117, %vm84
  %vm119 = vmand %vm118, %vm86
  %v120 = vsel %vm119, 1, 0
  %v121 = vcvt.s32.f32 %v120
  %vm122 = vmand %vm117, %vm90
  %vm123 = vmand %vm122, %vm92
  %v124 = vsel %vm123, 1, 0
  %v125 = vcvt.s32.f32 %v124
  %vm126 = vmand %vm117, %vm97
  %vm127 = vmand %vm126, %vm99
  %v128 = vsel %vm127, 1, 0
  %v129 = vcvt.s32.f32 %v128
  %v130 = vld [vmem:[%s4] sm:$0xff]
  %v131 = vld [vmem:[%s4 + $0x8] sm:$0xff]
  %v132 = vld [vmem:[%s4 + $0x10] sm:$0xff]
  %v133 = vld [vmem:[%s4 + $0x18] sm:$0xff]
  %v134 = vld [vmem:[%s5] sm:$0xff]
  %v135 = vld [vmem:[%s5 + $0x8] sm:$0xff]
  %v136 = vld [vmem:[%s0] sm:$0xff]
  %v137 = vld [vmem:[%s0 + $0x8] sm:$0xff]
  %v138 = vld [vmem:[%s6] sm:$0xff]
  %v139 = vld [vmem:[%s6 + $0x8] sm:$0xff]
  %v140 = vld [vmem:[%s1] sm:$0xff]
  %v141 = vld [vmem:[%s1 + $0x8] sm:$0xff]
  %vm142 = vcmask 130048
  %v144 = vsel %vm142, %v138, 0
  %v147 = vsel %vm142, %v139, 0
  %149 = vmatprep.subr.mxu0 0.0
  %150 = vmatpush1.msra.mxu0 0.0
  %151 = vmatprep.subr.mxu0 0.0
  %152 = vmatpush1.msra.mxu0 0.0
  %153 = vmatprep.subr.mxu0 0.0
  %154 = vmatpush1.msra.mxu0 0.0
  %155 = vmatprep.subr.mxu0 0.0
  %156 = vmatpush1.msra.mxu0 0.0
  %157 = vmatprep.subr.mxu0 0.0
  %158 = vmatpush1.msra.mxu0 0.0
  %159 = vmatprep.subr.mxu0 0.0
  %160 = vmatpush1.msra.mxu0 0.0
  %161 = vmatprep.subr.mxu0 0.0
  %162 = vmatpush1.msra.mxu0 0.0
  %163 = vmatprep.subr.mxu0 0.0
  %164 = vmatpush1.msra.mxu0 0.0
  %165 = vmatprep.subr.mxu0 0.0
  %166 = vmatpush1.msra.mxu0 0.0
  %167 = vmatprep.subr.mxu0 0.0
  %168 = vmatpush1.msra.mxu0 0.0
  %169 = vmatprep.subr.mxu0 0.0
  %170 = vmatpush1.msra.mxu0 0.0
  %171 = vmatprep.subr.mxu0 0.0
  %172 = vmatpush1.msra.mxu0 0.0
  %173 = vmatprep.subr.mxu0 0.0
  %174 = vmatpush1.msra.mxu0 0.0
  %175 = vmatprep.subr.mxu0 0.0
  %176 = vmatpush1.msra.mxu0 0.0
  %177 = vmatprep.subr.mxu0 0.0
  %178 = vmatpush1.msra.mxu0 %v141
  %179 = vmatprep.subr.mxu0 0.0
  %180 = vmatpush1.msra.mxu0 %v140
  %181 = vmatprep.subr.mxu0 0.0
  %182 = vmatpush2.msra.mxu0 0.0
  %183 = vmatprep.subr.mxu0 0.0
  %184 = vmatpush2.msra.mxu0 0.0
  %185 = vmatprep.subr.mxu0 0.0
  %186 = vmatpush2.msra.mxu0 0.0
  %187 = vmatprep.subr.mxu0 0.0
  %188 = vmatpush2.msra.mxu0 0.0
  %189 = vmatprep.subr.mxu0 0.0
  %190 = vmatpush2.msra.mxu0 0.0
  %191 = vmatprep.subr.mxu0 0.0
  %192 = vmatpush2.msra.mxu0 0.0
  %193 = vmatprep.subr.mxu0 0.0
  %194 = vmatpush2.msra.mxu0 0.0
  %195 = vmatprep.subr.mxu0 0.0
  %196 = vmatpush2.msra.mxu0 0.0
  %197 = vmatprep.subr.mxu0 0.0
  %198 = vmatpush2.msra.mxu0 0.0
  %199 = vmatprep.subr.mxu0 0.0
  %200 = vmatpush2.msra.mxu0 0.0
  %201 = vmatprep.subr.mxu0 0.0
  %202 = vmatpush2.msra.mxu0 0.0
  %203 = vmatprep.subr.mxu0 0.0
  %204 = vmatpush2.msra.mxu0 0.0
  %205 = vmatprep.subr.mxu0 0.0
  %206 = vmatpush2.msra.mxu0 0.0
  %207 = vmatprep.subr.mxu0 0.0
  %208 = vmatpush2.msra.mxu0 0.0
  %209 = vmatprep.subr.mxu0 0.0
  %210 = vmatpush2.msra.mxu0 0.0
  %211 = vmatprep.subr.mxu0 0.0
  %212 = vmatpush2.msra.mxu0 0.0
  %213 = vmatprep.mubr.f32.mxu0 0.0
  %214 = vmatmul.mubr.f32.gmra.mxu0 %v144
  %v215 = vpop.f32.mrf.mxu0
  %v216 = vadd.f32 0.0, %v215
  %v217 = vpop.f32.mrf.mxu0
  %218 = vmatprep.mubr.f32.mxu0 0.0
  %219 = vmatmul.mubr.f32.gmra.mxu0 %v147
  %v220 = vpop.f32.mrf.mxu0
  %v221 = vadd.f32 0.0, %v220
  %v222 = vpop.f32.mrf.mxu0
  %223 = vdwg.mxu0
  %v225 = vsel %vm142, %v134, 0
  %v228 = vsel %vm142, %v135, 0
  %230 = vmatprep.subr.mxu0 0.0
  %231 = vmatpush1.msra.mxu0 0.0
  %232 = vmatprep.subr.mxu0 0.0
  %233 = vmatpush1.msra.mxu0 0.0
  %234 = vmatprep.subr.mxu0 0.0
  %235 = vmatpush1.msra.mxu0 0.0
  %236 = vmatprep.subr.mxu0 0.0
  %237 = vmatpush1.msra.mxu0 0.0
  %238 = vmatprep.subr.mxu0 0.0
  %239 = vmatpush1.msra.mxu0 0.0
  %240 = vmatprep.subr.mxu0 0.0
  %241 = vmatpush1.msra.mxu0 0.0
  %242 = vmatprep.subr.mxu0 0.0
  %243 = vmatpush1.msra.mxu0 0.0
  %244 = vmatprep.subr.mxu0 0.0
  %245 = vmatpush1.msra.mxu0 0.0
  %246 = vmatprep.subr.mxu0 0.0
  %247 = vmatpush1.msra.mxu0 0.0
  %248 = vmatprep.subr.mxu0 0.0
  %249 = vmatpush1.msra.mxu0 0.0
  %250 = vmatprep.subr.mxu0 0.0
  %251 = vmatpush1.msra.mxu0 0.0
  %252 = vmatprep.subr.mxu0 0.0
  %253 = vmatpush1.msra.mxu0 0.0
  %254 = vmatprep.subr.mxu0 0.0
  %255 = vmatpush1.msra.mxu0 0.0
  %256 = vmatprep.subr.mxu0 0.0
  %257 = vmatpush1.msra.mxu0 0.0
  %258 = vmatprep.subr.mxu0 0.0
  %259 = vmatpush1.msra.mxu0 %v137
  %260 = vmatprep.subr.mxu0 0.0
  %261 = vmatpush1.msra.mxu0 %v136
  %262 = vmatprep.subr.mxu0 0.0
  %263 = vmatpush2.msra.mxu0 0.0
  %264 = vmatprep.subr.mxu0 0.0
  %265 = vmatpush2.msra.mxu0 0.0
  %266 = vmatprep.subr.mxu0 0.0
  %267 = vmatpush2.msra.mxu0 0.0
  %268 = vmatprep.subr.mxu0 0.0
  %269 = vmatpush2.msra.mxu0 0.0
  %270 = vmatprep.subr.mxu0 0.0
  %271 = vmatpush2.msra.mxu0 0.0
  %272 = vmatprep.subr.mxu0 0.0
  %273 = vmatpush2.msra.mxu0 0.0
  %274 = vmatprep.subr.mxu0 0.0
  %275 = vmatpush2.msra.mxu0 0.0
  %276 = vmatprep.subr.mxu0 0.0
  %277 = vmatpush2.msra.mxu0 0.0
  %278 = vmatprep.subr.mxu0 0.0
  %279 = vmatpush2.msra.mxu0 0.0
  %280 = vmatprep.subr.mxu0 0.0
  %281 = vmatpush2.msra.mxu0 0.0
  %282 = vmatprep.subr.mxu0 0.0
  %283 = vmatpush2.msra.mxu0 0.0
  %284 = vmatprep.subr.mxu0 0.0
  %285 = vmatpush2.msra.mxu0 0.0
  %286 = vmatprep.subr.mxu0 0.0
  %287 = vmatpush2.msra.mxu0 0.0
  %288 = vmatprep.subr.mxu0 0.0
  %289 = vmatpush2.msra.mxu0 0.0
  %290 = vmatprep.subr.mxu0 0.0
  %291 = vmatpush2.msra.mxu0 0.0
  %292 = vmatprep.subr.mxu0 0.0
  %293 = vmatpush2.msra.mxu0 0.0
  %294 = vmatprep.mubr.f32.mxu0 0.0
  %295 = vmatmul.mubr.f32.gmra.mxu0 %v225
  %v296 = vpop.f32.mrf.mxu0
  %v297 = vadd.f32 %v216, %v296
  %v298 = vpop.f32.mrf.mxu0
  %299 = vmatprep.mubr.f32.mxu0 0.0
  %300 = vmatmul.mubr.f32.gmra.mxu0 %v228
  %v301 = vpop.f32.mrf.mxu0
  %v302 = vadd.f32 %v221, %v301
  %v303 = vpop.f32.mrf.mxu0
  %304 = vdwg.mxu0
  %v305 = vld [vmem:[%s7] sm:$0xff]
  %v306 = vld [vmem:[%s7 + $0x8] sm:$0xff]
  %v307 = vld [vmem:[%s8] sm:$0xff]
  %v308 = vld [vmem:[%s8 + $0x8] sm:$0xff]
  %v309 = vadd.f32 %v297, %v302
  %v310 = vrot.slane %v309, 4
  %v311 = vadd.f32 %v309, %v310
  %v312 = vrot.slane %v311, 2
  %v313 = vadd.f32 %v311, %v312
  %v314 = vrot.slane %v313, 1
  %v315 = vadd.f32 %v313, %v314
  %v316 = vrcp.pop 16.0
  %v317 = vmul.f32 %v315, %v316
  %v318 = vsub.f32 %v297, %v317
  %v319 = vsub.f32 %v302, %v317
  %v320 = vmul.f32 %v318, %v318
  %v321 = vmul.f32 %v319, %v319
  %v322 = vadd.f32 %v320, %v321
  %v323 = vrot.slane %v322, 4
  %v324 = vadd.f32 %v322, %v323
  %v325 = vrot.slane %v324, 2
  %v326 = vadd.f32 %v324, %v325
  %v327 = vrot.slane %v326, 1
  %v328 = vadd.f32 %v326, %v327
  %v329 = vmul.f32 %v328, %v316
  %v330 = vadd.f32 %v329, 1e-05
  %v331 = vrsqrt.pop %v330
  %v332 = vmul.f32 %v318, %v331
  %v333 = vmul.f32 %v319, %v331
  %335 = vset.pattern.permute.xlu0 0
  %336 = vperm.xlu0 %335, %v305
  %v337 = vpop.permute.xlu0 %336
  %340 = vset.pattern.permute.xlu0 0
  %341 = vperm.xlu0 %340, %v306
  %v342 = vpop.permute.xlu0 %341
  %v344 = vmul.f32 %v332, %v337
  %v345 = vmul.f32 %v333, %v342
  %347 = vset.pattern.permute.xlu0 0
  %348 = vperm.xlu0 %347, %v307
  %v349 = vpop.permute.xlu0 %348
  %352 = vset.pattern.permute.xlu0 0
  %353 = vperm.xlu0 %352, %v308
  %v354 = vpop.permute.xlu0 %353
  %v356 = vadd.f32 %v344, %v349
  %v357 = vadd.f32 %v345, %v354
  %v358 = vld [vmem:[%s9] sm:$0xff]
  %v359 = vld [vmem:[%s9 + $0x8] sm:$0xff]
  %v360 = vld [vmem:[%s9 + $0x10] sm:$0xff]
  %v361 = vld [vmem:[%s9 + $0x18] sm:$0xff]
  %v362 = vld [vmem:[%s9 + $0x20] sm:$0xff]
  %v363 = vld [vmem:[%s9 + $0x28] sm:$0xff]
  %v365 = vsel %vm142, %v358, 0
  %v368 = vsel %vm142, %v359, 0
  %v371 = vsel %vm142, %v360, 0
  %v374 = vsel %vm142, %v361, 0
  %v377 = vsel %vm142, %v362, 0
  %v380 = vsel %vm142, %v363, 0
  %382 = vmatprep.subr.mxu0 0.0
  %383 = vmatpush1.msra.mxu0 0.0
  %384 = vmatprep.subr.mxu0 0.0
  %385 = vmatpush1.msra.mxu0 0.0
  %386 = vmatprep.subr.mxu0 0.0
  %387 = vmatpush1.msra.mxu0 0.0
  %388 = vmatprep.subr.mxu0 0.0
  %389 = vmatpush1.msra.mxu0 0.0
  %390 = vmatprep.subr.mxu0 0.0
  %391 = vmatpush1.msra.mxu0 0.0
  %392 = vmatprep.subr.mxu0 0.0
  %393 = vmatpush1.msra.mxu0 0.0
  %394 = vmatprep.subr.mxu0 0.0
  %395 = vmatpush1.msra.mxu0 0.0
  %396 = vmatprep.subr.mxu0 0.0
  %397 = vmatpush1.msra.mxu0 0.0
  %398 = vmatprep.subr.mxu0 0.0
  %399 = vmatpush1.msra.mxu0 0.0
  %400 = vmatprep.subr.mxu0 0.0
  %401 = vmatpush1.msra.mxu0 0.0
  %402 = vmatprep.subr.mxu0 0.0
  %403 = vmatpush1.msra.mxu0 0.0
  %404 = vmatprep.subr.mxu0 0.0
  %405 = vmatpush1.msra.mxu0 0.0
  %406 = vmatprep.subr.mxu0 0.0
  %407 = vmatpush1.msra.mxu0 0.0
  %408 = vmatprep.subr.mxu0 0.0
  %409 = vmatpush1.msra.mxu0 0.0
  %410 = vmatprep.subr.mxu0 0.0
  %411 = vmatpush1.msra.mxu0 %v357
  %412 = vmatprep.subr.mxu0 0.0
  %413 = vmatpush1.msra.mxu0 %v356
  %414 = vmatprep.subr.mxu0 0.0
  %415 = vmatpush2.msra.mxu0 0.0
  %416 = vmatprep.subr.mxu0 0.0
  %417 = vmatpush2.msra.mxu0 0.0
  %418 = vmatprep.subr.mxu0 0.0
  %419 = vmatpush2.msra.mxu0 0.0
  %420 = vmatprep.subr.mxu0 0.0
  %421 = vmatpush2.msra.mxu0 0.0
  %422 = vmatprep.subr.mxu0 0.0
  %423 = vmatpush2.msra.mxu0 0.0
  %424 = vmatprep.subr.mxu0 0.0
  %425 = vmatpush2.msra.mxu0 0.0
  %426 = vmatprep.subr.mxu0 0.0
  %427 = vmatpush2.msra.mxu0 0.0
  %428 = vmatprep.subr.mxu0 0.0
  %429 = vmatpush2.msra.mxu0 0.0
  %430 = vmatprep.subr.mxu0 0.0
  %431 = vmatpush2.msra.mxu0 0.0
  %432 = vmatprep.subr.mxu0 0.0
  %433 = vmatpush2.msra.mxu0 0.0
  %434 = vmatprep.subr.mxu0 0.0
  %435 = vmatpush2.msra.mxu0 0.0
  %436 = vmatprep.subr.mxu0 0.0
  %437 = vmatpush2.msra.mxu0 0.0
  %438 = vmatprep.subr.mxu0 0.0
  %439 = vmatpush2.msra.mxu0 0.0
  %440 = vmatprep.subr.mxu0 0.0
  %441 = vmatpush2.msra.mxu0 0.0
  %442 = vmatprep.subr.mxu0 0.0
  %443 = vmatpush2.msra.mxu0 0.0
  %444 = vmatprep.subr.mxu0 0.0
  %445 = vmatpush2.msra.mxu0 0.0
  %446 = vmatprep.mubr.f32.mxu0 0.0
  %447 = vmatmul.mubr.f32.gmra.mxu0 %v365
  %v448 = vpop.f32.mrf.mxu0
  %v449 = vadd.f32 0.0, %v448
  %v450 = vpop.f32.mrf.mxu0
  %451 = vmatprep.mubr.f32.mxu0 0.0
  %452 = vmatmul.mubr.f32.gmra.mxu0 %v368
  %v453 = vpop.f32.mrf.mxu0
  %v454 = vadd.f32 0.0, %v453
  %v455 = vpop.f32.mrf.mxu0
  %456 = vmatprep.mubr.f32.mxu0 0.0
  %457 = vmatmul.mubr.f32.gmra.mxu0 %v371
  %v458 = vpop.f32.mrf.mxu0
  %v459 = vadd.f32 0.0, %v458
  %v460 = vpop.f32.mrf.mxu0
  %461 = vmatprep.mubr.f32.mxu0 0.0
  %462 = vmatmul.mubr.f32.gmra.mxu0 %v374
  %v463 = vpop.f32.mrf.mxu0
  %v464 = vadd.f32 0.0, %v463
  %v465 = vpop.f32.mrf.mxu0
  %466 = vmatprep.mubr.f32.mxu0 0.0
  %467 = vmatmul.mubr.f32.gmra.mxu0 %v377
  %v468 = vpop.f32.mrf.mxu0
  %v469 = vadd.f32 0.0, %v468
  %v470 = vpop.f32.mrf.mxu0
  %471 = vmatprep.mubr.f32.mxu0 0.0
  %472 = vmatmul.mubr.f32.gmra.mxu0 %v380
  %v473 = vpop.f32.mrf.mxu0
  %v474 = vadd.f32 0.0, %v473
  %v475 = vpop.f32.mrf.mxu0
  %476 = vdwg.mxu0
  %v477 = vld [vmem:[%s10] sm:$0xff]
  %v478 = vld [vmem:[%s10 + $0x8] sm:$0xff]
  %v479 = vld [vmem:[%s10 + $0x10] sm:$0xff]
  %v480 = vld [vmem:[%s10 + $0x18] sm:$0xff]
  %v481 = vld [vmem:[%s10 + $0x20] sm:$0xff]
  %v482 = vld [vmem:[%s10 + $0x28] sm:$0xff]
  %484 = vset.pattern.permute.xlu0 4
  %485 = vperm.xlu0 %484, %v477
  %v486 = vpop.permute.xlu0 %485
  %489 = vset.pattern.permute.xlu0 4
  %490 = vperm.xlu0 %489, %v478
  %v491 = vpop.permute.xlu0 %490
  %494 = vset.pattern.permute.xlu0 4
  %495 = vperm.xlu0 %494, %v479
  %v496 = vpop.permute.xlu0 %495
  %499 = vset.pattern.permute.xlu0 4
  %500 = vperm.xlu0 %499, %v480
  %v501 = vpop.permute.xlu0 %500
  %504 = vset.pattern.permute.xlu0 4
  %505 = vperm.xlu0 %504, %v481
  %v506 = vpop.permute.xlu0 %505
  %509 = vset.pattern.permute.xlu0 4
  %510 = vperm.xlu0 %509, %v482
  %v511 = vpop.permute.xlu0 %510
  %v513 = vmul.f32 %v449, %v486
  %v514 = vmul.f32 %v454, %v491
  %v515 = vmul.f32 %v459, %v496
  %v516 = vmul.f32 %v464, %v501
  %v517 = vmul.f32 %v469, %v506
  %v518 = vmul.f32 %v474, %v511
  %519 = vrot.lane.b32.xlu0 %v449, 9
  %v520 = vpop.permute.xlu0 %519
  %521 = vrot.lane.b32.xlu0 %v454, 9
  %v522 = vpop.permute.xlu0 %521
  %523 = vrot.lane.b32.xlu0 %v459, 9
  %v524 = vpop.permute.xlu0 %523
  %525 = vrot.lane.b32.xlu0 %v464, 9
  %v526 = vpop.permute.xlu0 %525
  %527 = vrot.lane.b32.xlu0 %v469, 9
  %v528 = vpop.permute.xlu0 %527
  %529 = vrot.lane.b32.xlu0 %v474, 9
  %v530 = vpop.permute.xlu0 %529
  %v532 = vlaneseq
  %v533 = vshrl.u32 %v532, 7
  %v534 = vsub.s32 0, %v533
  %v535 = vrot.slane %v89, %v534
  %v537 = vmul.f32 %v520, %v535
  %v538 = vmul.f32 %v522, %v535
  %v539 = vmul.f32 %v524, %v535
  %v540 = vmul.f32 %v526, %v535
  %v541 = vmul.f32 %v528, %v535
  %v542 = vmul.f32 %v530, %v535
  %543 = vset.pattern.permute.xlu0 0
  %544 = vperm.xlu0 %543, %v477
  %v545 = vpop.permute.xlu0 %544
  %547 = vset.pattern.permute.xlu0 0
  %548 = vperm.xlu0 %547, %v478
  %v549 = vpop.permute.xlu0 %548
  %551 = vset.pattern.permute.xlu0 0
  %552 = vperm.xlu0 %551, %v479
  %v553 = vpop.permute.xlu0 %552
  %555 = vset.pattern.permute.xlu0 0
  %556 = vperm.xlu0 %555, %v480
  %v557 = vpop.permute.xlu0 %556
  %559 = vset.pattern.permute.xlu0 0
  %560 = vperm.xlu0 %559, %v481
  %v561 = vpop.permute.xlu0 %560
  %563 = vset.pattern.permute.xlu0 0
  %564 = vperm.xlu0 %563, %v482
  %v565 = vpop.permute.xlu0 %564
  %v567 = vmul.f32 %v537, %v545
  %v568 = vmul.f32 %v538, %v549
  %v569 = vmul.f32 %v539, %v553
  %v570 = vmul.f32 %v540, %v557
  %v571 = vmul.f32 %v541, %v561
  %v572 = vmul.f32 %v542, %v565
  %v573 = vadd.f32 %v513, %v567
  %v574 = vadd.f32 %v514, %v568
  %v575 = vadd.f32 %v515, %v569
  %v576 = vadd.f32 %v516, %v570
  %v577 = vadd.f32 %v517, %v571
  %v578 = vadd.f32 %v518, %v572
  %579 = vrot.lane.b32.xlu0 %v449, 8
  %v580 = vpop.permute.xlu0 %579
  %581 = vrot.lane.b32.xlu0 %v454, 8
  %v582 = vpop.permute.xlu0 %581
  %583 = vrot.lane.b32.xlu0 %v459, 8
  %v584 = vpop.permute.xlu0 %583
  %585 = vrot.lane.b32.xlu0 %v464, 8
  %v586 = vpop.permute.xlu0 %585
  %587 = vrot.lane.b32.xlu0 %v469, 8
  %v588 = vpop.permute.xlu0 %587
  %589 = vrot.lane.b32.xlu0 %v474, 8
  %v590 = vpop.permute.xlu0 %589
  %v592 = vlaneseq
  %v593 = vshrl.u32 %v592, 7
  %v594 = vsub.s32 0, %v593
  %v595 = vrot.slane %v95, %v594
  %v597 = vmul.f32 %v580, %v595
  %v598 = vmul.f32 %v582, %v595
  %v599 = vmul.f32 %v584, %v595
  %v600 = vmul.f32 %v586, %v595
  %v601 = vmul.f32 %v588, %v595
  %v602 = vmul.f32 %v590, %v595
  %603 = vset.pattern.permute.xlu0 1
  %604 = vperm.xlu0 %603, %v477
  %v605 = vpop.permute.xlu0 %604
  %607 = vset.pattern.permute.xlu0 1
  %608 = vperm.xlu0 %607, %v478
  %v609 = vpop.permute.xlu0 %608
  %611 = vset.pattern.permute.xlu0 1
  %612 = vperm.xlu0 %611, %v479
  %v613 = vpop.permute.xlu0 %612
  %615 = vset.pattern.permute.xlu0 1
  %616 = vperm.xlu0 %615, %v480
  %v617 = vpop.permute.xlu0 %616
  %619 = vset.pattern.permute.xlu0 1
  %620 = vperm.xlu0 %619, %v481
  %v621 = vpop.permute.xlu0 %620
  %623 = vset.pattern.permute.xlu0 1
  %624 = vperm.xlu0 %623, %v482
  %v625 = vpop.permute.xlu0 %624
  %v627 = vmul.f32 %v597, %v605
  %v628 = vmul.f32 %v598, %v609
  %v629 = vmul.f32 %v599, %v613
  %v630 = vmul.f32 %v600, %v617
  %v631 = vmul.f32 %v601, %v621
  %v632 = vmul.f32 %v602, %v625
  %v633 = vadd.f32 %v573, %v627
  %v634 = vadd.f32 %v574, %v628
  %v635 = vadd.f32 %v575, %v629
  %v636 = vadd.f32 %v576, %v630
  %v637 = vadd.f32 %v577, %v631
  %v638 = vadd.f32 %v578, %v632
  %639 = vrot.lane.b32.xlu0 %v449, 7
  %v640 = vpop.permute.xlu0 %639
  %641 = vrot.lane.b32.xlu0 %v454, 7
  %v642 = vpop.permute.xlu0 %641
  %643 = vrot.lane.b32.xlu0 %v459, 7
  %v644 = vpop.permute.xlu0 %643
  %645 = vrot.lane.b32.xlu0 %v464, 7
  %v646 = vpop.permute.xlu0 %645
  %647 = vrot.lane.b32.xlu0 %v469, 7
  %v648 = vpop.permute.xlu0 %647
  %649 = vrot.lane.b32.xlu0 %v474, 7
  %v650 = vpop.permute.xlu0 %649
  %v652 = vlaneseq
  %v653 = vshrl.u32 %v652, 7
  %v654 = vsub.s32 0, %v653
  %v655 = vrot.slane %v102, %v654
  %v657 = vmul.f32 %v640, %v655
  %v658 = vmul.f32 %v642, %v655
  %v659 = vmul.f32 %v644, %v655
  %v660 = vmul.f32 %v646, %v655
  %v661 = vmul.f32 %v648, %v655
  %v662 = vmul.f32 %v650, %v655
  %663 = vset.pattern.permute.xlu0 2
  %664 = vperm.xlu0 %663, %v477
  %v665 = vpop.permute.xlu0 %664
  %667 = vset.pattern.permute.xlu0 2
  %668 = vperm.xlu0 %667, %v478
  %v669 = vpop.permute.xlu0 %668
  %671 = vset.pattern.permute.xlu0 2
  %672 = vperm.xlu0 %671, %v479
  %v673 = vpop.permute.xlu0 %672
  %675 = vset.pattern.permute.xlu0 2
  %676 = vperm.xlu0 %675, %v480
  %v677 = vpop.permute.xlu0 %676
  %679 = vset.pattern.permute.xlu0 2
  %680 = vperm.xlu0 %679, %v481
  %v681 = vpop.permute.xlu0 %680
  %683 = vset.pattern.permute.xlu0 2
  %684 = vperm.xlu0 %683, %v482
  %v685 = vpop.permute.xlu0 %684
  %v687 = vmul.f32 %v657, %v665
  %v688 = vmul.f32 %v658, %v669
  %v689 = vmul.f32 %v659, %v673
  %v690 = vmul.f32 %v660, %v677
  %v691 = vmul.f32 %v661, %v681
  %v692 = vmul.f32 %v662, %v685
  %v693 = vadd.f32 %v633, %v687
  %v694 = vadd.f32 %v634, %v688
  %v695 = vadd.f32 %v635, %v689
  %v696 = vadd.f32 %v636, %v690
  %v697 = vadd.f32 %v637, %v691
  %v698 = vadd.f32 %v638, %v692
  %699 = vrot.lane.b32.xlu0 %v449, 1
  %v700 = vpop.permute.xlu0 %699
  %701 = vrot.lane.b32.xlu0 %v454, 1
  %v702 = vpop.permute.xlu0 %701
  %703 = vrot.lane.b32.xlu0 %v459, 1
  %v704 = vpop.permute.xlu0 %703
  %705 = vrot.lane.b32.xlu0 %v464, 1
  %v706 = vpop.permute.xlu0 %705
  %707 = vrot.lane.b32.xlu0 %v469, 1
  %v708 = vpop.permute.xlu0 %707
  %709 = vrot.lane.b32.xlu0 %v474, 1
  %v710 = vpop.permute.xlu0 %709
  %v712 = vlaneseq
  %v713 = vshrl.u32 %v712, 7
  %v714 = vsub.s32 0, %v713
  %v715 = vrot.slane %v109, %v714
  %v717 = vmul.f32 %v700, %v715
  %v718 = vmul.f32 %v702, %v715
  %v719 = vmul.f32 %v704, %v715
  %v720 = vmul.f32 %v706, %v715
  %v721 = vmul.f32 %v708, %v715
  %v722 = vmul.f32 %v710, %v715
  %723 = vset.pattern.permute.xlu0 3
  %724 = vperm.xlu0 %723, %v477
  %v725 = vpop.permute.xlu0 %724
  %727 = vset.pattern.permute.xlu0 3
  %728 = vperm.xlu0 %727, %v478
  %v729 = vpop.permute.xlu0 %728
  %731 = vset.pattern.permute.xlu0 3
  %732 = vperm.xlu0 %731, %v479
  %v733 = vpop.permute.xlu0 %732
  %735 = vset.pattern.permute.xlu0 3
  %736 = vperm.xlu0 %735, %v480
  %v737 = vpop.permute.xlu0 %736
  %739 = vset.pattern.permute.xlu0 3
  %740 = vperm.xlu0 %739, %v481
  %v741 = vpop.permute.xlu0 %740
  %743 = vset.pattern.permute.xlu0 3
  %744 = vperm.xlu0 %743, %v482
  %v745 = vpop.permute.xlu0 %744
  %v747 = vmul.f32 %v717, %v725
  %v748 = vmul.f32 %v718, %v729
  %v749 = vmul.f32 %v719, %v733
  %v750 = vmul.f32 %v720, %v737
  %v751 = vmul.f32 %v721, %v741
  %v752 = vmul.f32 %v722, %v745
  %v753 = vadd.f32 %v693, %v747
  %v754 = vadd.f32 %v694, %v748
  %v755 = vadd.f32 %v695, %v749
  %v756 = vadd.f32 %v696, %v750
  %v757 = vadd.f32 %v697, %v751
  %v758 = vadd.f32 %v698, %v752
  %759 = vrot.lane.b32.xlu0 %v449, 127
  %v760 = vpop.permute.xlu0 %759
  %761 = vrot.lane.b32.xlu0 %v454, 127
  %v762 = vpop.permute.xlu0 %761
  %763 = vrot.lane.b32.xlu0 %v459, 127
  %v764 = vpop.permute.xlu0 %763
  %765 = vrot.lane.b32.xlu0 %v464, 127
  %v766 = vpop.permute.xlu0 %765
  %767 = vrot.lane.b32.xlu0 %v469, 127
  %v768 = vpop.permute.xlu0 %767
  %769 = vrot.lane.b32.xlu0 %v474, 127
  %v770 = vpop.permute.xlu0 %769
  %v772 = vlaneseq
  %v773 = vshrl.u32 %v772, 7
  %v774 = vsub.s32 0, %v773
  %v775 = vrot.slane %v113, %v774
  %v777 = vmul.f32 %v760, %v775
  %v778 = vmul.f32 %v762, %v775
  %v779 = vmul.f32 %v764, %v775
  %v780 = vmul.f32 %v766, %v775
  %v781 = vmul.f32 %v768, %v775
  %v782 = vmul.f32 %v770, %v775
  %783 = vset.pattern.permute.xlu0 5
  %784 = vperm.xlu0 %783, %v477
  %v785 = vpop.permute.xlu0 %784
  %787 = vset.pattern.permute.xlu0 5
  %788 = vperm.xlu0 %787, %v478
  %v789 = vpop.permute.xlu0 %788
  %791 = vset.pattern.permute.xlu0 5
  %792 = vperm.xlu0 %791, %v479
  %v793 = vpop.permute.xlu0 %792
  %795 = vset.pattern.permute.xlu0 5
  %796 = vperm.xlu0 %795, %v480
  %v797 = vpop.permute.xlu0 %796
  %799 = vset.pattern.permute.xlu0 5
  %800 = vperm.xlu0 %799, %v481
  %v801 = vpop.permute.xlu0 %800
  %803 = vset.pattern.permute.xlu0 5
  %804 = vperm.xlu0 %803, %v482
  %v805 = vpop.permute.xlu0 %804
  %v807 = vmul.f32 %v777, %v785
  %v808 = vmul.f32 %v778, %v789
  %v809 = vmul.f32 %v779, %v793
  %v810 = vmul.f32 %v780, %v797
  %v811 = vmul.f32 %v781, %v801
  %v812 = vmul.f32 %v782, %v805
  %v813 = vadd.f32 %v753, %v807
  %v814 = vadd.f32 %v754, %v808
  %v815 = vadd.f32 %v755, %v809
  %v816 = vadd.f32 %v756, %v810
  %v817 = vadd.f32 %v757, %v811
  %v818 = vadd.f32 %v758, %v812
  %819 = vrot.lane.b32.xlu0 %v449, 121
  %v820 = vpop.permute.xlu0 %819
  %821 = vrot.lane.b32.xlu0 %v454, 121
  %v822 = vpop.permute.xlu0 %821
  %823 = vrot.lane.b32.xlu0 %v459, 121
  %v824 = vpop.permute.xlu0 %823
  %825 = vrot.lane.b32.xlu0 %v464, 121
  %v826 = vpop.permute.xlu0 %825
  %827 = vrot.lane.b32.xlu0 %v469, 121
  %v828 = vpop.permute.xlu0 %827
  %829 = vrot.lane.b32.xlu0 %v474, 121
  %v830 = vpop.permute.xlu0 %829
  %v832 = vlaneseq
  %v833 = vshrl.u32 %v832, 7
  %v834 = vsub.s32 0, %v833
  %v835 = vrot.slane %v121, %v834
  %v837 = vmul.f32 %v820, %v835
  %v838 = vmul.f32 %v822, %v835
  %v839 = vmul.f32 %v824, %v835
  %v840 = vmul.f32 %v826, %v835
  %v841 = vmul.f32 %v828, %v835
  %v842 = vmul.f32 %v830, %v835
  %843 = vset.pattern.permute.xlu0 6
  %844 = vperm.xlu0 %843, %v477
  %v845 = vpop.permute.xlu0 %844
  %847 = vset.pattern.permute.xlu0 6
  %848 = vperm.xlu0 %847, %v478
  %v849 = vpop.permute.xlu0 %848
  %851 = vset.pattern.permute.xlu0 6
  %852 = vperm.xlu0 %851, %v479
  %v853 = vpop.permute.xlu0 %852
  %855 = vset.pattern.permute.xlu0 6
  %856 = vperm.xlu0 %855, %v480
  %v857 = vpop.permute.xlu0 %856
  %859 = vset.pattern.permute.xlu0 6
  %860 = vperm.xlu0 %859, %v481
  %v861 = vpop.permute.xlu0 %860
  %863 = vset.pattern.permute.xlu0 6
  %864 = vperm.xlu0 %863, %v482
  %v865 = vpop.permute.xlu0 %864
  %v867 = vmul.f32 %v837, %v845
  %v868 = vmul.f32 %v838, %v849
  %v869 = vmul.f32 %v839, %v853
  %v870 = vmul.f32 %v840, %v857
  %v871 = vmul.f32 %v841, %v861
  %v872 = vmul.f32 %v842, %v865
  %v873 = vadd.f32 %v813, %v867
  %v874 = vadd.f32 %v814, %v868
  %v875 = vadd.f32 %v815, %v869
  %v876 = vadd.f32 %v816, %v870
  %v877 = vadd.f32 %v817, %v871
  %v878 = vadd.f32 %v818, %v872
  %879 = vrot.lane.b32.xlu0 %v449, 120
  %v880 = vpop.permute.xlu0 %879
  %881 = vrot.lane.b32.xlu0 %v454, 120
  %v882 = vpop.permute.xlu0 %881
  %883 = vrot.lane.b32.xlu0 %v459, 120
  %v884 = vpop.permute.xlu0 %883
  %885 = vrot.lane.b32.xlu0 %v464, 120
  %v886 = vpop.permute.xlu0 %885
  %887 = vrot.lane.b32.xlu0 %v469, 120
  %v888 = vpop.permute.xlu0 %887
  %889 = vrot.lane.b32.xlu0 %v474, 120
  %v890 = vpop.permute.xlu0 %889
  %v892 = vlaneseq
  %v893 = vshrl.u32 %v892, 7
  %v894 = vsub.s32 0, %v893
  %v895 = vrot.slane %v125, %v894
  %v897 = vmul.f32 %v880, %v895
  %v898 = vmul.f32 %v882, %v895
  %v899 = vmul.f32 %v884, %v895
  %v900 = vmul.f32 %v886, %v895
  %v901 = vmul.f32 %v888, %v895
  %v902 = vmul.f32 %v890, %v895
  %903 = vset.pattern.permute.xlu0 7
  %904 = vperm.xlu0 %903, %v477
  %v905 = vpop.permute.xlu0 %904
  %907 = vset.pattern.permute.xlu0 7
  %908 = vperm.xlu0 %907, %v478
  %v909 = vpop.permute.xlu0 %908
  %911 = vset.pattern.permute.xlu0 7
  %912 = vperm.xlu0 %911, %v479
  %v913 = vpop.permute.xlu0 %912
  %915 = vset.pattern.permute.xlu0 7
  %916 = vperm.xlu0 %915, %v480
  %v917 = vpop.permute.xlu0 %916
  %919 = vset.pattern.permute.xlu0 7
  %920 = vperm.xlu0 %919, %v481
  %v921 = vpop.permute.xlu0 %920
  %923 = vset.pattern.permute.xlu0 7
  %924 = vperm.xlu0 %923, %v482
  %v925 = vpop.permute.xlu0 %924
  %v927 = vmul.f32 %v897, %v905
  %v928 = vmul.f32 %v898, %v909
  %v929 = vmul.f32 %v899, %v913
  %v930 = vmul.f32 %v900, %v917
  %v931 = vmul.f32 %v901, %v921
  %v932 = vmul.f32 %v902, %v925
  %v933 = vadd.f32 %v873, %v927
  %v934 = vadd.f32 %v874, %v928
  %v935 = vadd.f32 %v875, %v929
  %v936 = vadd.f32 %v876, %v930
  %v937 = vadd.f32 %v877, %v931
  %v938 = vadd.f32 %v878, %v932
  %939 = vrot.lane.b32.xlu0 %v449, 119
  %v940 = vpop.permute.xlu0 %939
  %941 = vrot.lane.b32.xlu0 %v454, 119
  %v942 = vpop.permute.xlu0 %941
  %943 = vrot.lane.b32.xlu0 %v459, 119
  %v944 = vpop.permute.xlu0 %943
  %945 = vrot.lane.b32.xlu0 %v464, 119
  %v946 = vpop.permute.xlu0 %945
  %947 = vrot.lane.b32.xlu0 %v469, 119
  %v948 = vpop.permute.xlu0 %947
  %949 = vrot.lane.b32.xlu0 %v474, 119
  %v950 = vpop.permute.xlu0 %949
  %v952 = vlaneseq
  %v953 = vshrl.u32 %v952, 7
  %v954 = vsub.s32 0, %v953
  %v955 = vrot.slane %v129, %v954
  %v957 = vmul.f32 %v940, %v955
  %v958 = vmul.f32 %v942, %v955
  %v959 = vmul.f32 %v944, %v955
  %v960 = vmul.f32 %v946, %v955
  %v961 = vmul.f32 %v948, %v955
  %v962 = vmul.f32 %v950, %v955
  %963 = vset.pattern.permute.xlu0 8
  %964 = vperm.xlu0 %963, %v477
  %v965 = vpop.permute.xlu0 %964
  %967 = vset.pattern.permute.xlu0 8
  %968 = vperm.xlu0 %967, %v478
  %v969 = vpop.permute.xlu0 %968
  %971 = vset.pattern.permute.xlu0 8
  %972 = vperm.xlu0 %971, %v479
  %v973 = vpop.permute.xlu0 %972
  %975 = vset.pattern.permute.xlu0 8
  %976 = vperm.xlu0 %975, %v480
  %v977 = vpop.permute.xlu0 %976
  %979 = vset.pattern.permute.xlu0 8
  %980 = vperm.xlu0 %979, %v481
  %v981 = vpop.permute.xlu0 %980
  %983 = vset.pattern.permute.xlu0 8
  %984 = vperm.xlu0 %983, %v482
  %v985 = vpop.permute.xlu0 %984
  %v987 = vmul.f32 %v957, %v965
  %v988 = vmul.f32 %v958, %v969
  %v989 = vmul.f32 %v959, %v973
  %v990 = vmul.f32 %v960, %v977
  %v991 = vmul.f32 %v961, %v981
  %v992 = vmul.f32 %v962, %v985
  %v993 = vadd.f32 %v933, %v987
  %v994 = vadd.f32 %v934, %v988
  %v995 = vadd.f32 %v935, %v989
  %v996 = vadd.f32 %v936, %v990
  %v997 = vadd.f32 %v937, %v991
  %v998 = vadd.f32 %v938, %v992
  %v999 = vmul.f32 %v993, %v73
  %v1000 = vmul.f32 %v994, %v73
  %v1001 = vmul.f32 %v993, %v78
  %v1002 = vmul.f32 %v994, %v78
  %v1003 = vmul.f32 %v995, %v73
  %v1004 = vmul.f32 %v996, %v73
  %v1005 = vmul.f32 %v995, %v78
  %v1006 = vmul.f32 %v996, %v78
  %v1007 = vld [vmem:[%s11] sm:$0xff]
  %v1008 = vld [vmem:[%s11 + $0x8] sm:$0xff]
  %v1009 = vmul.f32 %v999, %v999
  %v1010 = vmul.f32 %v1000, %v1000
  %v1011 = vmul.f32 %v1001, %v1001
  %v1012 = vmul.f32 %v1002, %v1002
  %1013 = vadd.xlane.f32.xlu0 %v1009
  %v1014 = vpop.xlane.xlu0 %1013
  %1015 = vadd.xlane.f32.xlu0 %v1010
  %v1016 = vpop.xlane.xlu0 %1015
  %1017 = vadd.xlane.f32.xlu0 %v1011
  %v1018 = vpop.xlane.xlu0 %1017
  %1019 = vadd.xlane.f32.xlu0 %v1012
  %v1020 = vpop.xlane.xlu0 %1019
  %v1021 = vmax.f32 %v1014, 1e-24
  %v1022 = vmax.f32 %v1016, 1e-24
  %v1023 = vmax.f32 %v1018, 1e-24
  %v1024 = vmax.f32 %v1020, 1e-24
  %v1025 = vrsqrt.pop %v1021
  %v1026 = vrsqrt.pop %v1022
  %v1027 = vrsqrt.pop %v1023
  %v1028 = vrsqrt.pop %v1024
  %v1029 = vmul.f32 %v999, %v1025
  %v1030 = vmul.f32 %v1000, %v1026
  %v1031 = vmul.f32 %v1001, %v1027
  %v1032 = vmul.f32 %v1002, %v1028
  %v1033 = vmul.f32 %v1003, %v1003
  %v1034 = vmul.f32 %v1004, %v1004
  %v1035 = vmul.f32 %v1005, %v1005
  %v1036 = vmul.f32 %v1006, %v1006
  %1037 = vadd.xlane.f32.xlu0 %v1033
  %v1038 = vpop.xlane.xlu0 %1037
  %1039 = vadd.xlane.f32.xlu0 %v1034
  %v1040 = vpop.xlane.xlu0 %1039
  %1041 = vadd.xlane.f32.xlu0 %v1035
  %v1042 = vpop.xlane.xlu0 %1041
  %1043 = vadd.xlane.f32.xlu0 %v1036
  %v1044 = vpop.xlane.xlu0 %1043
  %v1045 = vmax.f32 %v1038, 1e-24
  %v1046 = vmax.f32 %v1040, 1e-24
  %v1047 = vmax.f32 %v1042, 1e-24
  %v1048 = vmax.f32 %v1044, 1e-24
  %v1049 = vrsqrt.pop %v1045
  %v1050 = vrsqrt.pop %v1046
  %v1051 = vrsqrt.pop %v1047
  %v1052 = vrsqrt.pop %v1048
  %v1053 = vmul.f32 %v1003, %v1049
  %v1054 = vmul.f32 %v1004, %v1050
  %v1055 = vmul.f32 %v1005, %v1051
  %v1056 = vmul.f32 %v1006, %v1052
  %1057 = vmatprep.subr.mxu0 0.0
  %1058 = vmatpush1.xpose.msra.mxu0 0.0
  %1059 = vmatprep.subr.mxu0 0.0
  %1060 = vmatpush1.xpose.msra.mxu0 0.0
  %1061 = vmatprep.subr.mxu0 0.0
  %1062 = vmatpush1.xpose.msra.mxu0 0.0
  %1063 = vmatprep.subr.mxu0 0.0
  %1064 = vmatpush1.xpose.msra.mxu0 0.0
  %1065 = vmatprep.subr.mxu0 0.0
  %1066 = vmatpush1.xpose.msra.mxu0 0.0
  %1067 = vmatprep.subr.mxu0 0.0
  %1068 = vmatpush1.xpose.msra.mxu0 0.0
  %1069 = vmatprep.subr.mxu0 0.0
  %1070 = vmatpush1.xpose.msra.mxu0 0.0
  %1071 = vmatprep.subr.mxu0 0.0
  %1072 = vmatpush1.xpose.msra.mxu0 0.0
  %1073 = vmatprep.subr.mxu0 0.0
  %1074 = vmatpush1.xpose.msra.mxu0 0.0
  %1075 = vmatprep.subr.mxu0 0.0
  %1076 = vmatpush1.xpose.msra.mxu0 0.0
  %1077 = vmatprep.subr.mxu0 0.0
  %1078 = vmatpush1.xpose.msra.mxu0 0.0
  %1079 = vmatprep.subr.mxu0 0.0
  %1080 = vmatpush1.xpose.msra.mxu0 0.0
  %1081 = vmatprep.subr.mxu0 0.0
  %1082 = vmatpush1.xpose.msra.mxu0 %v1056
  %1083 = vmatprep.subr.mxu0 0.0
  %1084 = vmatpush1.xpose.msra.mxu0 %v1055
  %1085 = vmatprep.subr.mxu0 0.0
  %1086 = vmatpush1.xpose.msra.mxu0 %v1054
  %1087 = vmatprep.subr.mxu0 0.0
  %1088 = vmatpush1.xpose.msra.mxu0 %v1053
  %1089 = vmatprep.subr.mxu0 0.0
  %1090 = vmatpush2.xpose.msra.mxu0 0.0
  %1091 = vmatprep.subr.mxu0 0.0
  %1092 = vmatpush2.xpose.msra.mxu0 0.0
  %1093 = vmatprep.subr.mxu0 0.0
  %1094 = vmatpush2.xpose.msra.mxu0 0.0
  %1095 = vmatprep.subr.mxu0 0.0
  %1096 = vmatpush2.xpose.msra.mxu0 0.0
  %1097 = vmatprep.subr.mxu0 0.0
  %1098 = vmatpush2.xpose.msra.mxu0 0.0
  %1099 = vmatprep.subr.mxu0 0.0
  %1100 = vmatpush2.xpose.msra.mxu0 0.0
  %1101 = vmatprep.subr.mxu0 0.0
  %1102 = vmatpush2.xpose.msra.mxu0 0.0
  %1103 = vmatprep.subr.mxu0 0.0
  %1104 = vmatpush2.xpose.msra.mxu0 0.0
  %1105 = vmatprep.subr.mxu0 0.0
  %1106 = vmatpush2.xpose.msra.mxu0 0.0
  %1107 = vmatprep.subr.mxu0 0.0
  %1108 = vmatpush2.xpose.msra.mxu0 0.0
  %1109 = vmatprep.subr.mxu0 0.0
  %1110 = vmatpush2.xpose.msra.mxu0 0.0
  %1111 = vmatprep.subr.mxu0 0.0
  %1112 = vmatpush2.xpose.msra.mxu0 0.0
  %1113 = vmatprep.subr.mxu0 0.0
  %1114 = vmatpush2.xpose.msra.mxu0 0.0
  %1115 = vmatprep.subr.mxu0 0.0
  %1116 = vmatpush2.xpose.msra.mxu0 0.0
  %1117 = vmatprep.subr.mxu0 0.0
  %1118 = vmatpush2.xpose.msra.mxu0 0.0
  %1119 = vmatprep.subr.mxu0 0.0
  %1120 = vmatpush2.xpose.msra.mxu0 0.0
  %1121 = vmatprep.mubr.f32.mxu0 0.0
  %1122 = vmatmul.mubr.f32.gmra.mxu0 %v1029
  %v1123 = vpop.f32.mrf.mxu0
  %v1124 = vadd.f32 0.0, %v1123
  %v1125 = vpop.f32.mrf.mxu0
  %1126 = vmatprep.mubr.f32.mxu0 0.0
  %1127 = vmatmul.mubr.f32.gmra.mxu0 %v1030
  %v1128 = vpop.f32.mrf.mxu0
  %v1129 = vadd.f32 0.0, %v1128
  %v1130 = vpop.f32.mrf.mxu0
  %1131 = vmatprep.mubr.f32.mxu0 0.0
  %1132 = vmatmul.mubr.f32.gmra.mxu0 %v1031
  %v1133 = vpop.f32.mrf.mxu0
  %v1134 = vadd.f32 0.0, %v1133
  %v1135 = vpop.f32.mrf.mxu0
  %1136 = vmatprep.mubr.f32.mxu0 0.0
  %1137 = vmatmul.mubr.f32.gmra.mxu0 %v1032
  %v1138 = vpop.f32.mrf.mxu0
  %v1139 = vadd.f32 0.0, %v1138
  %v1140 = vpop.f32.mrf.mxu0
  %1141 = vdwg.mxu0
  %1143 = vset.pattern.permute.xlu0 0
  %1144 = vperm.xlu0 %1143, %v1007
  %v1145 = vpop.permute.xlu0 %1144
  %1148 = vset.pattern.permute.xlu0 0
  %1149 = vperm.xlu0 %1148, %v1008
  %v1150 = vpop.permute.xlu0 %1149
  %v1152 = vmul.f32 %v1124, %v1145
  %v1153 = vmul.f32 %v1129, %v1150
  %v1154 = vmul.f32 %v1134, %v1145
  %v1155 = vmul.f32 %v1139, %v1150
  %v1156 = vadd.f32 %v1152, %v130
  %v1157 = vadd.f32 %v1153, %v131
  %v1158 = vadd.f32 %v1154, %v132
  %v1159 = vadd.f32 %v1155, %v133
  %vm1160 = vcmask 261120
  %v1161 = vsel %vm1160, %v1156, -inf
  %1162 = vmax.xlane.f32.xlu0 %v1161
  %v1163 = vpop.xlane.xlu0 %1162
  %v1164 = vsel %vm1160, %v1157, -inf
  %1165 = vmax.xlane.f32.xlu0 %v1164
  %v1166 = vpop.xlane.xlu0 %1165
  %v1167 = vsel %vm1160, %v1158, -inf
  %1168 = vmax.xlane.f32.xlu0 %v1167
  %v1169 = vpop.xlane.xlu0 %1168
  %v1170 = vsel %vm1160, %v1159, -inf
  %1171 = vmax.xlane.f32.xlu0 %v1170
  %v1172 = vpop.xlane.xlu0 %1171
  %v1173 = vsub.f32 %v1156, %v1163
  %v1174 = vsub.f32 %v1157, %v1166
  %v1175 = vsub.f32 %v1158, %v1169
  %v1176 = vsub.f32 %v1159, %v1172
  %v1177 = vmul.f32 %v1173, 1.442695
  %v1178 = vpow.pop %v1177
  %v1179 = vmul.f32 %v1174, 1.442695
  %v1180 = vpow.pop %v1179
  %v1181 = vmul.f32 %v1175, 1.442695
  %v1182 = vpow.pop %v1181
  %v1183 = vmul.f32 %v1176, 1.442695
  %v1184 = vpow.pop %v1183
  %v1185 = vsel %vm1160, %v1178, 0.0
  %1186 = vadd.xlane.f32.xlu0 %v1185
  %v1187 = vpop.xlane.xlu0 %1186
  %v1188 = vsel %vm1160, %v1180, 0.0
  %1189 = vadd.xlane.f32.xlu0 %v1188
  %v1190 = vpop.xlane.xlu0 %1189
  %v1191 = vsel %vm1160, %v1182, 0.0
  %1192 = vadd.xlane.f32.xlu0 %v1191
  %v1193 = vpop.xlane.xlu0 %1192
  %v1194 = vsel %vm1160, %v1184, 0.0
  %1195 = vadd.xlane.f32.xlu0 %v1194
  %v1196 = vpop.xlane.xlu0 %1195
  %v1197 = vrcp.pop %v1187
  %v1198 = vrcp.pop %v1190
  %v1199 = vrcp.pop %v1193
  %v1200 = vrcp.pop %v1196
  %v1201 = vmul.f32 %v1178, %v1197
  %v1202 = vmul.f32 %v1180, %v1198
  %v1203 = vmul.f32 %v1182, %v1199
  %v1204 = vmul.f32 %v1184, %v1200
  %v1206 = vsel %vm1160, %v1201, 0
  %v1209 = vsel %vm1160, %v1202, 0
  %v1212 = vsel %vm1160, %v1203, 0
  %v1215 = vsel %vm1160, %v1204, 0
  %1217 = vmatprep.subr.mxu0 0.0
  %1218 = vmatpush1.msra.mxu0 0.0
  %1219 = vmatprep.subr.mxu0 0.0
  %1220 = vmatpush1.msra.mxu0 0.0
  %1221 = vmatprep.subr.mxu0 0.0
  %1222 = vmatpush1.msra.mxu0 0.0
  %1223 = vmatprep.subr.mxu0 0.0
  %1224 = vmatpush1.msra.mxu0 0.0
  %1225 = vmatprep.subr.mxu0 0.0
  %1226 = vmatpush1.msra.mxu0 0.0
  %1227 = vmatprep.subr.mxu0 0.0
  %1228 = vmatpush1.msra.mxu0 0.0
  %1229 = vmatprep.subr.mxu0 0.0
  %1230 = vmatpush1.msra.mxu0 0.0
  %1231 = vmatprep.subr.mxu0 0.0
  %1232 = vmatpush1.msra.mxu0 0.0
  %1233 = vmatprep.subr.mxu0 0.0
  %1234 = vmatpush1.msra.mxu0 0.0
  %1235 = vmatprep.subr.mxu0 0.0
  %1236 = vmatpush1.msra.mxu0 0.0
  %1237 = vmatprep.subr.mxu0 0.0
  %1238 = vmatpush1.msra.mxu0 0.0
  %1239 = vmatprep.subr.mxu0 0.0
  %1240 = vmatpush1.msra.mxu0 0.0
  %1241 = vmatprep.subr.mxu0 0.0
  %1242 = vmatpush1.msra.mxu0 %v998
  %1243 = vmatprep.subr.mxu0 0.0
  %1244 = vmatpush1.msra.mxu0 %v997
  %1245 = vmatprep.subr.mxu0 0.0
  %1246 = vmatpush1.msra.mxu0 %v998
  %1247 = vmatprep.subr.mxu0 0.0
  %1248 = vmatpush1.msra.mxu0 %v997
  %1249 = vmatprep.subr.mxu0 0.0
  %1250 = vmatpush2.msra.mxu0 0.0
  %1251 = vmatprep.subr.mxu0 0.0
  %1252 = vmatpush2.msra.mxu0 0.0
  %1253 = vmatprep.subr.mxu0 0.0
  %1254 = vmatpush2.msra.mxu0 0.0
  %1255 = vmatprep.subr.mxu0 0.0
  %1256 = vmatpush2.msra.mxu0 0.0
  %1257 = vmatprep.subr.mxu0 0.0
  %1258 = vmatpush2.msra.mxu0 0.0
  %1259 = vmatprep.subr.mxu0 0.0
  %1260 = vmatpush2.msra.mxu0 0.0
  %1261 = vmatprep.subr.mxu0 0.0
  %1262 = vmatpush2.msra.mxu0 0.0
  %1263 = vmatprep.subr.mxu0 0.0
  %1264 = vmatpush2.msra.mxu0 0.0
  %1265 = vmatprep.subr.mxu0 0.0
  %1266 = vmatpush2.msra.mxu0 0.0
  %1267 = vmatprep.subr.mxu0 0.0
  %1268 = vmatpush2.msra.mxu0 0.0
  %1269 = vmatprep.subr.mxu0 0.0
  %1270 = vmatpush2.msra.mxu0 0.0
  %1271 = vmatprep.subr.mxu0 0.0
  %1272 = vmatpush2.msra.mxu0 0.0
  %1273 = vmatprep.subr.mxu0 0.0
  %1274 = vmatpush2.msra.mxu0 0.0
  %1275 = vmatprep.subr.mxu0 0.0
  %1276 = vmatpush2.msra.mxu0 0.0
  %1277 = vmatprep.subr.mxu0 0.0
  %1278 = vmatpush2.msra.mxu0 0.0
  %1279 = vmatprep.subr.mxu0 0.0
  %1280 = vmatpush2.msra.mxu0 0.0
  %1281 = vmatprep.mubr.f32.mxu0 0.0
  %1282 = vmatmul.mubr.f32.gmra.mxu0 %v1206
  %v1283 = vpop.f32.mrf.mxu0
  %v1284 = vadd.f32 0.0, %v1283
  %v1285 = vpop.f32.mrf.mxu0
  %1286 = vmatprep.mubr.f32.mxu0 0.0
  %1287 = vmatmul.mubr.f32.gmra.mxu0 %v1209
  %v1288 = vpop.f32.mrf.mxu0
  %v1289 = vadd.f32 0.0, %v1288
  %v1290 = vpop.f32.mrf.mxu0
  %1291 = vmatprep.mubr.f32.mxu0 0.0
  %1292 = vmatmul.mubr.f32.gmra.mxu0 %v1212
  %v1293 = vpop.f32.mrf.mxu0
  %v1294 = vadd.f32 0.0, %v1293
  %v1295 = vpop.f32.mrf.mxu0
  %1296 = vmatprep.mubr.f32.mxu0 0.0
  %1297 = vmatmul.mubr.f32.gmra.mxu0 %v1215
  %v1298 = vpop.f32.mrf.mxu0
  %v1299 = vadd.f32 0.0, %v1298
  %v1300 = vpop.f32.mrf.mxu0
  %1301 = vdwg.mxu0
  %v1302 = vmul.f32 %v1284, %v73
  %v1303 = vmul.f32 %v1289, %v73
  %v1304 = vmul.f32 %v1294, %v78
  %v1305 = vmul.f32 %v1299, %v78
  %v1306 = vadd.f32 %v1302, %v1304
  %v1307 = vadd.f32 %v1303, %v1305
  %v1308 = vld [vmem:[%s12] sm:$0xff]
  %v1309 = vld [vmem:[%s12 + $0x8] sm:$0xff]
  %v1311 = vsel %vm142, %v1308, 0
  %v1314 = vsel %vm142, %v1309, 0
  %1316 = vmatprep.subr.mxu0 0.0
  %1317 = vmatpush1.msra.mxu0 0.0
  %1318 = vmatprep.subr.mxu0 0.0
  %1319 = vmatpush1.msra.mxu0 0.0
  %1320 = vmatprep.subr.mxu0 0.0
  %1321 = vmatpush1.msra.mxu0 0.0
  %1322 = vmatprep.subr.mxu0 0.0
  %1323 = vmatpush1.msra.mxu0 0.0
  %1324 = vmatprep.subr.mxu0 0.0
  %1325 = vmatpush1.msra.mxu0 0.0
  %1326 = vmatprep.subr.mxu0 0.0
  %1327 = vmatpush1.msra.mxu0 0.0
  %1328 = vmatprep.subr.mxu0 0.0
  %1329 = vmatpush1.msra.mxu0 0.0
  %1330 = vmatprep.subr.mxu0 0.0
  %1331 = vmatpush1.msra.mxu0 0.0
  %1332 = vmatprep.subr.mxu0 0.0
  %1333 = vmatpush1.msra.mxu0 0.0
  %1334 = vmatprep.subr.mxu0 0.0
  %1335 = vmatpush1.msra.mxu0 0.0
  %1336 = vmatprep.subr.mxu0 0.0
  %1337 = vmatpush1.msra.mxu0 0.0
  %1338 = vmatprep.subr.mxu0 0.0
  %1339 = vmatpush1.msra.mxu0 0.0
  %1340 = vmatprep.subr.mxu0 0.0
  %1341 = vmatpush1.msra.mxu0 0.0
  %1342 = vmatprep.subr.mxu0 0.0
  %1343 = vmatpush1.msra.mxu0 0.0
  %1344 = vmatprep.subr.mxu0 0.0
  %1345 = vmatpush1.msra.mxu0 %v1307
  %1346 = vmatprep.subr.mxu0 0.0
  %1347 = vmatpush1.msra.mxu0 %v1306
  %1348 = vmatprep.subr.mxu0 0.0
  %1349 = vmatpush2.msra.mxu0 0.0
  %1350 = vmatprep.subr.mxu0 0.0
  %1351 = vmatpush2.msra.mxu0 0.0
  %1352 = vmatprep.subr.mxu0 0.0
  %1353 = vmatpush2.msra.mxu0 0.0
  %1354 = vmatprep.subr.mxu0 0.0
  %1355 = vmatpush2.msra.mxu0 0.0
  %1356 = vmatprep.subr.mxu0 0.0
  %1357 = vmatpush2.msra.mxu0 0.0
  %1358 = vmatprep.subr.mxu0 0.0
  %1359 = vmatpush2.msra.mxu0 0.0
  %1360 = vmatprep.subr.mxu0 0.0
  %1361 = vmatpush2.msra.mxu0 0.0
  %1362 = vmatprep.subr.mxu0 0.0
  %1363 = vmatpush2.msra.mxu0 0.0
  %1364 = vmatprep.subr.mxu0 0.0
  %1365 = vmatpush2.msra.mxu0 0.0
  %1366 = vmatprep.subr.mxu0 0.0
  %1367 = vmatpush2.msra.mxu0 0.0
  %1368 = vmatprep.subr.mxu0 0.0
  %1369 = vmatpush2.msra.mxu0 0.0
  %1370 = vmatprep.subr.mxu0 0.0
  %1371 = vmatpush2.msra.mxu0 0.0
  %1372 = vmatprep.subr.mxu0 0.0
  %1373 = vmatpush2.msra.mxu0 0.0
  %1374 = vmatprep.subr.mxu0 0.0
  %1375 = vmatpush2.msra.mxu0 0.0
  %1376 = vmatprep.subr.mxu0 0.0
  %1377 = vmatpush2.msra.mxu0 0.0
  %1378 = vmatprep.subr.mxu0 0.0
  %1379 = vmatpush2.msra.mxu0 0.0
  %1380 = vmatprep.mubr.f32.mxu0 0.0
  %1381 = vmatmul.mubr.f32.gmra.mxu0 %v1311
  %v1382 = vpop.f32.mrf.mxu0
  %v1383 = vadd.f32 0.0, %v1382
  %v1384 = vpop.f32.mrf.mxu0
  %1385 = vmatprep.mubr.f32.mxu0 0.0
  %1386 = vmatmul.mubr.f32.gmra.mxu0 %v1314
  %v1387 = vpop.f32.mrf.mxu0
  %v1388 = vadd.f32 0.0, %v1387
  %v1389 = vpop.f32.mrf.mxu0
  %1390 = vdwg.mxu0
  %v1391 = vadd.f32 %v297, %v1383
  %v1392 = vadd.f32 %v302, %v1388
  %v1393 = vld [vmem:[%s13] sm:$0xff]
  %v1394 = vld [vmem:[%s13 + $0x8] sm:$0xff]
  %v1395 = vld [vmem:[%s14] sm:$0xff]
  %v1396 = vld [vmem:[%s14 + $0x8] sm:$0xff]
  %v1397 = vadd.f32 %v1391, %v1392
  %v1398 = vrot.slane %v1397, 4
  %v1399 = vadd.f32 %v1397, %v1398
  %v1400 = vrot.slane %v1399, 2
  %v1401 = vadd.f32 %v1399, %v1400
  %v1402 = vrot.slane %v1401, 1
  %v1403 = vadd.f32 %v1401, %v1402
  %v1404 = vmul.f32 %v1403, %v316
  %v1405 = vsub.f32 %v1391, %v1404
  %v1406 = vsub.f32 %v1392, %v1404
  %v1407 = vmul.f32 %v1405, %v1405
  %v1408 = vmul.f32 %v1406, %v1406
  %v1409 = vadd.f32 %v1407, %v1408
  %v1410 = vrot.slane %v1409, 4
  %v1411 = vadd.f32 %v1409, %v1410
  %v1412 = vrot.slane %v1411, 2
  %v1413 = vadd.f32 %v1411, %v1412
  %v1414 = vrot.slane %v1413, 1
  %v1415 = vadd.f32 %v1413, %v1414
  %v1416 = vmul.f32 %v1415, %v316
  %v1417 = vadd.f32 %v1416, 1e-05
  %v1418 = vrsqrt.pop %v1417
  %v1419 = vmul.f32 %v1405, %v1418
  %v1420 = vmul.f32 %v1406, %v1418
  %1422 = vset.pattern.permute.xlu0 0
  %1423 = vperm.xlu0 %1422, %v1393
  %v1424 = vpop.permute.xlu0 %1423
  %1427 = vset.pattern.permute.xlu0 0
  %1428 = vperm.xlu0 %1427, %v1394
  %v1429 = vpop.permute.xlu0 %1428
  %v1431 = vmul.f32 %v1419, %v1424
  %v1432 = vmul.f32 %v1420, %v1429
  %1434 = vset.pattern.permute.xlu0 0
  %1435 = vperm.xlu0 %1434, %v1395
  %v1436 = vpop.permute.xlu0 %1435
  %1439 = vset.pattern.permute.xlu0 0
  %1440 = vperm.xlu0 %1439, %v1396
  %v1441 = vpop.permute.xlu0 %1440
  %v1443 = vadd.f32 %v1431, %v1436
  %v1444 = vadd.f32 %v1432, %v1441
  %v1445 = vld [vmem:[%s15] sm:$0xff]
  %v1446 = vld [vmem:[%s15 + $0x8] sm:$0xff]
  %v1447 = vld [vmem:[%s15 + $0x10] sm:$0xff]
  %v1448 = vld [vmem:[%s15 + $0x18] sm:$0xff]
  %v1449 = vld [vmem:[%s15 + $0x20] sm:$0xff]
  %v1450 = vld [vmem:[%s15 + $0x28] sm:$0xff]
  %v1451 = vld [vmem:[%s15 + $0x30] sm:$0xff]
  %v1452 = vld [vmem:[%s15 + $0x38] sm:$0xff]
  %v1454 = vsel %vm142, %v1445, 0
  %v1457 = vsel %vm142, %v1446, 0
  %v1460 = vsel %vm142, %v1447, 0
  %v1463 = vsel %vm142, %v1448, 0
  %v1466 = vsel %vm142, %v1449, 0
  %v1469 = vsel %vm142, %v1450, 0
  %v1472 = vsel %vm142, %v1451, 0
  %v1475 = vsel %vm142, %v1452, 0
  %1477 = vmatprep.subr.mxu0 0.0
  %1478 = vmatpush1.msra.mxu0 0.0
  %1479 = vmatprep.subr.mxu0 0.0
  %1480 = vmatpush1.msra.mxu0 0.0
  %1481 = vmatprep.subr.mxu0 0.0
  %1482 = vmatpush1.msra.mxu0 0.0
  %1483 = vmatprep.subr.mxu0 0.0
  %1484 = vmatpush1.msra.mxu0 0.0
  %1485 = vmatprep.subr.mxu0 0.0
  %1486 = vmatpush1.msra.mxu0 0.0
  %1487 = vmatprep.subr.mxu0 0.0
  %1488 = vmatpush1.msra.mxu0 0.0
  %1489 = vmatprep.subr.mxu0 0.0
  %1490 = vmatpush1.msra.mxu0 0.0
  %1491 = vmatprep.subr.mxu0 0.0
  %1492 = vmatpush1.msra.mxu0 0.0
  %1493 = vmatprep.subr.mxu0 0.0
  %1494 = vmatpush1.msra.mxu0 0.0
  %1495 = vmatprep.subr.mxu0 0.0
  %1496 = vmatpush1.msra.mxu0 0.0
  %1497 = vmatprep.subr.mxu0 0.0
  %1498 = vmatpush1.msra.mxu0 0.0
  %1499 = vmatprep.subr.mxu0 0.0
  %1500 = vmatpush1.msra.mxu0 0.0
  %1501 = vmatprep.subr.mxu0 0.0
  %1502 = vmatpush1.msra.mxu0 0.0
  %1503 = vmatprep.subr.mxu0 0.0
  %1504 = vmatpush1.msra.mxu0 0.0
  %1505 = vmatprep.subr.mxu0 0.0
  %1506 = vmatpush1.msra.mxu0 %v1444
  %1507 = vmatprep.subr.mxu0 0.0
  %1508 = vmatpush1.msra.mxu0 %v1443
  %1509 = vmatprep.subr.mxu0 0.0
  %1510 = vmatpush2.msra.mxu0 0.0
  %1511 = vmatprep.subr.mxu0 0.0
  %1512 = vmatpush2.msra.mxu0 0.0
  %1513 = vmatprep.subr.mxu0 0.0
  %1514 = vmatpush2.msra.mxu0 0.0
  %1515 = vmatprep.subr.mxu0 0.0
  %1516 = vmatpush2.msra.mxu0 0.0
  %1517 = vmatprep.subr.mxu0 0.0
  %1518 = vmatpush2.msra.mxu0 0.0
  %1519 = vmatprep.subr.mxu0 0.0
  %1520 = vmatpush2.msra.mxu0 0.0
  %1521 = vmatprep.subr.mxu0 0.0
  %1522 = vmatpush2.msra.mxu0 0.0
  %1523 = vmatprep.subr.mxu0 0.0
  %1524 = vmatpush2.msra.mxu0 0.0
  %1525 = vmatprep.subr.mxu0 0.0
  %1526 = vmatpush2.msra.mxu0 0.0
  %1527 = vmatprep.subr.mxu0 0.0
  %1528 = vmatpush2.msra.mxu0 0.0
  %1529 = vmatprep.subr.mxu0 0.0
  %1530 = vmatpush2.msra.mxu0 0.0
  %1531 = vmatprep.subr.mxu0 0.0
  %1532 = vmatpush2.msra.mxu0 0.0
  %1533 = vmatprep.subr.mxu0 0.0
  %1534 = vmatpush2.msra.mxu0 0.0
  %1535 = vmatprep.subr.mxu0 0.0
  %1536 = vmatpush2.msra.mxu0 0.0
  %1537 = vmatprep.subr.mxu0 0.0
  %1538 = vmatpush2.msra.mxu0 0.0
  %1539 = vmatprep.subr.mxu0 0.0
  %1540 = vmatpush2.msra.mxu0 0.0
  %1541 = vmatprep.mubr.f32.mxu0 0.0
  %1542 = vmatmul.mubr.f32.gmra.mxu0 %v1454
  %v1543 = vpop.f32.mrf.mxu0
  %v1544 = vadd.f32 0.0, %v1543
  %v1545 = vpop.f32.mrf.mxu0
  %1546 = vmatprep.mubr.f32.mxu0 0.0
  %1547 = vmatmul.mubr.f32.gmra.mxu0 %v1457
  %v1548 = vpop.f32.mrf.mxu0
  %v1549 = vadd.f32 0.0, %v1548
  %v1550 = vpop.f32.mrf.mxu0
  %1551 = vmatprep.mubr.f32.mxu0 0.0
  %1552 = vmatmul.mubr.f32.gmra.mxu0 %v1460
  %v1553 = vpop.f32.mrf.mxu0
  %v1554 = vadd.f32 0.0, %v1553
  %v1555 = vpop.f32.mrf.mxu0
  %1556 = vmatprep.mubr.f32.mxu0 0.0
  %1557 = vmatmul.mubr.f32.gmra.mxu0 %v1463
  %v1558 = vpop.f32.mrf.mxu0
  %v1559 = vadd.f32 0.0, %v1558
  %v1560 = vpop.f32.mrf.mxu0
  %1561 = vmatprep.mubr.f32.mxu0 0.0
  %1562 = vmatmul.mubr.f32.gmra.mxu0 %v1466
  %v1563 = vpop.f32.mrf.mxu0
  %v1564 = vadd.f32 0.0, %v1563
  %v1565 = vpop.f32.mrf.mxu0
  %1566 = vmatprep.mubr.f32.mxu0 0.0
  %1567 = vmatmul.mubr.f32.gmra.mxu0 %v1469
  %v1568 = vpop.f32.mrf.mxu0
  %v1569 = vadd.f32 0.0, %v1568
  %v1570 = vpop.f32.mrf.mxu0
  %1571 = vmatprep.mubr.f32.mxu0 0.0
  %1572 = vmatmul.mubr.f32.gmra.mxu0 %v1472
  %v1573 = vpop.f32.mrf.mxu0
  %v1574 = vadd.f32 0.0, %v1573
  %v1575 = vpop.f32.mrf.mxu0
  %1576 = vmatprep.mubr.f32.mxu0 0.0
  %1577 = vmatmul.mubr.f32.gmra.mxu0 %v1475
  %v1578 = vpop.f32.mrf.mxu0
  %v1579 = vadd.f32 0.0, %v1578
  %v1580 = vpop.f32.mrf.mxu0
  %1581 = vdwg.mxu0
  %v1582 = vld [vmem:[%s16] sm:$0xff]
  %v1583 = vld [vmem:[%s16 + $0x8] sm:$0xff]
  %v1584 = vld [vmem:[%s16 + $0x10] sm:$0xff]
  %v1585 = vld [vmem:[%s16 + $0x18] sm:$0xff]
  %v1586 = vld [vmem:[%s16 + $0x20] sm:$0xff]
  %v1587 = vld [vmem:[%s16 + $0x28] sm:$0xff]
  %v1588 = vld [vmem:[%s16 + $0x30] sm:$0xff]
  %v1589 = vld [vmem:[%s16 + $0x38] sm:$0xff]
  %1591 = vset.pattern.permute.xlu0 4
  %1592 = vperm.xlu0 %1591, %v1582
  %v1593 = vpop.permute.xlu0 %1592
  %1596 = vset.pattern.permute.xlu0 4
  %1597 = vperm.xlu0 %1596, %v1583
  %v1598 = vpop.permute.xlu0 %1597
  %1601 = vset.pattern.permute.xlu0 4
  %1602 = vperm.xlu0 %1601, %v1584
  %v1603 = vpop.permute.xlu0 %1602
  %1606 = vset.pattern.permute.xlu0 4
  %1607 = vperm.xlu0 %1606, %v1585
  %v1608 = vpop.permute.xlu0 %1607
  %1611 = vset.pattern.permute.xlu0 4
  %1612 = vperm.xlu0 %1611, %v1586
  %v1613 = vpop.permute.xlu0 %1612
  %1616 = vset.pattern.permute.xlu0 4
  %1617 = vperm.xlu0 %1616, %v1587
  %v1618 = vpop.permute.xlu0 %1617
  %1621 = vset.pattern.permute.xlu0 4
  %1622 = vperm.xlu0 %1621, %v1588
  %v1623 = vpop.permute.xlu0 %1622
  %1626 = vset.pattern.permute.xlu0 4
  %1627 = vperm.xlu0 %1626, %v1589
  %v1628 = vpop.permute.xlu0 %1627
  %v1630 = vmul.f32 %v1544, %v1593
  %v1631 = vmul.f32 %v1549, %v1598
  %v1632 = vmul.f32 %v1554, %v1603
  %v1633 = vmul.f32 %v1559, %v1608
  %v1634 = vmul.f32 %v1564, %v1613
  %v1635 = vmul.f32 %v1569, %v1618
  %v1636 = vmul.f32 %v1574, %v1623
  %v1637 = vmul.f32 %v1579, %v1628
  %1638 = vrot.lane.b32.xlu0 %v1544, 9
  %v1639 = vpop.permute.xlu0 %1638
  %1640 = vrot.lane.b32.xlu0 %v1549, 9
  %v1641 = vpop.permute.xlu0 %1640
  %1642 = vrot.lane.b32.xlu0 %v1554, 9
  %v1643 = vpop.permute.xlu0 %1642
  %1644 = vrot.lane.b32.xlu0 %v1559, 9
  %v1645 = vpop.permute.xlu0 %1644
  %1646 = vrot.lane.b32.xlu0 %v1564, 9
  %v1647 = vpop.permute.xlu0 %1646
  %1648 = vrot.lane.b32.xlu0 %v1569, 9
  %v1649 = vpop.permute.xlu0 %1648
  %1650 = vrot.lane.b32.xlu0 %v1574, 9
  %v1651 = vpop.permute.xlu0 %1650
  %1652 = vrot.lane.b32.xlu0 %v1579, 9
  %v1653 = vpop.permute.xlu0 %1652
  %v1654 = vmul.f32 %v1639, %v535
  %v1655 = vmul.f32 %v1641, %v535
  %v1656 = vmul.f32 %v1643, %v535
  %v1657 = vmul.f32 %v1645, %v535
  %v1658 = vmul.f32 %v1647, %v535
  %v1659 = vmul.f32 %v1649, %v535
  %v1660 = vmul.f32 %v1651, %v535
  %v1661 = vmul.f32 %v1653, %v535
  %1662 = vset.pattern.permute.xlu0 0
  %1663 = vperm.xlu0 %1662, %v1582
  %v1664 = vpop.permute.xlu0 %1663
  %1666 = vset.pattern.permute.xlu0 0
  %1667 = vperm.xlu0 %1666, %v1583
  %v1668 = vpop.permute.xlu0 %1667
  %1670 = vset.pattern.permute.xlu0 0
  %1671 = vperm.xlu0 %1670, %v1584
  %v1672 = vpop.permute.xlu0 %1671
  %1674 = vset.pattern.permute.xlu0 0
  %1675 = vperm.xlu0 %1674, %v1585
  %v1676 = vpop.permute.xlu0 %1675
  %1678 = vset.pattern.permute.xlu0 0
  %1679 = vperm.xlu0 %1678, %v1586
  %v1680 = vpop.permute.xlu0 %1679
  %1682 = vset.pattern.permute.xlu0 0
  %1683 = vperm.xlu0 %1682, %v1587
  %v1684 = vpop.permute.xlu0 %1683
  %1686 = vset.pattern.permute.xlu0 0
  %1687 = vperm.xlu0 %1686, %v1588
  %v1688 = vpop.permute.xlu0 %1687
  %1690 = vset.pattern.permute.xlu0 0
  %1691 = vperm.xlu0 %1690, %v1589
  %v1692 = vpop.permute.xlu0 %1691
  %v1694 = vmul.f32 %v1654, %v1664
  %v1695 = vmul.f32 %v1655, %v1668
  %v1696 = vmul.f32 %v1656, %v1672
  %v1697 = vmul.f32 %v1657, %v1676
  %v1698 = vmul.f32 %v1658, %v1680
  %v1699 = vmul.f32 %v1659, %v1684
  %v1700 = vmul.f32 %v1660, %v1688
  %v1701 = vmul.f32 %v1661, %v1692
  %v1702 = vadd.f32 %v1630, %v1694
  %v1703 = vadd.f32 %v1631, %v1695
  %v1704 = vadd.f32 %v1632, %v1696
  %v1705 = vadd.f32 %v1633, %v1697
  %v1706 = vadd.f32 %v1634, %v1698
  %v1707 = vadd.f32 %v1635, %v1699
  %v1708 = vadd.f32 %v1636, %v1700
  %v1709 = vadd.f32 %v1637, %v1701
  %1710 = vrot.lane.b32.xlu0 %v1544, 8
  %v1711 = vpop.permute.xlu0 %1710
  %1712 = vrot.lane.b32.xlu0 %v1549, 8
  %v1713 = vpop.permute.xlu0 %1712
  %1714 = vrot.lane.b32.xlu0 %v1554, 8
  %v1715 = vpop.permute.xlu0 %1714
  %1716 = vrot.lane.b32.xlu0 %v1559, 8
  %v1717 = vpop.permute.xlu0 %1716
  %1718 = vrot.lane.b32.xlu0 %v1564, 8
  %v1719 = vpop.permute.xlu0 %1718
  %1720 = vrot.lane.b32.xlu0 %v1569, 8
  %v1721 = vpop.permute.xlu0 %1720
  %1722 = vrot.lane.b32.xlu0 %v1574, 8
  %v1723 = vpop.permute.xlu0 %1722
  %1724 = vrot.lane.b32.xlu0 %v1579, 8
  %v1725 = vpop.permute.xlu0 %1724
  %v1726 = vmul.f32 %v1711, %v595
  %v1727 = vmul.f32 %v1713, %v595
  %v1728 = vmul.f32 %v1715, %v595
  %v1729 = vmul.f32 %v1717, %v595
  %v1730 = vmul.f32 %v1719, %v595
  %v1731 = vmul.f32 %v1721, %v595
  %v1732 = vmul.f32 %v1723, %v595
  %v1733 = vmul.f32 %v1725, %v595
  %1734 = vset.pattern.permute.xlu0 1
  %1735 = vperm.xlu0 %1734, %v1582
  %v1736 = vpop.permute.xlu0 %1735
  %1738 = vset.pattern.permute.xlu0 1
  %1739 = vperm.xlu0 %1738, %v1583
  %v1740 = vpop.permute.xlu0 %1739
  %1742 = vset.pattern.permute.xlu0 1
  %1743 = vperm.xlu0 %1742, %v1584
  %v1744 = vpop.permute.xlu0 %1743
  %1746 = vset.pattern.permute.xlu0 1
  %1747 = vperm.xlu0 %1746, %v1585
  %v1748 = vpop.permute.xlu0 %1747
  %1750 = vset.pattern.permute.xlu0 1
  %1751 = vperm.xlu0 %1750, %v1586
  %v1752 = vpop.permute.xlu0 %1751
  %1754 = vset.pattern.permute.xlu0 1
  %1755 = vperm.xlu0 %1754, %v1587
  %v1756 = vpop.permute.xlu0 %1755
  %1758 = vset.pattern.permute.xlu0 1
  %1759 = vperm.xlu0 %1758, %v1588
  %v1760 = vpop.permute.xlu0 %1759
  %1762 = vset.pattern.permute.xlu0 1
  %1763 = vperm.xlu0 %1762, %v1589
  %v1764 = vpop.permute.xlu0 %1763
  %v1766 = vmul.f32 %v1726, %v1736
  %v1767 = vmul.f32 %v1727, %v1740
  %v1768 = vmul.f32 %v1728, %v1744
  %v1769 = vmul.f32 %v1729, %v1748
  %v1770 = vmul.f32 %v1730, %v1752
  %v1771 = vmul.f32 %v1731, %v1756
  %v1772 = vmul.f32 %v1732, %v1760
  %v1773 = vmul.f32 %v1733, %v1764
  %v1774 = vadd.f32 %v1702, %v1766
  %v1775 = vadd.f32 %v1703, %v1767
  %v1776 = vadd.f32 %v1704, %v1768
  %v1777 = vadd.f32 %v1705, %v1769
  %v1778 = vadd.f32 %v1706, %v1770
  %v1779 = vadd.f32 %v1707, %v1771
  %v1780 = vadd.f32 %v1708, %v1772
  %v1781 = vadd.f32 %v1709, %v1773
  %1782 = vrot.lane.b32.xlu0 %v1544, 7
  %v1783 = vpop.permute.xlu0 %1782
  %1784 = vrot.lane.b32.xlu0 %v1549, 7
  %v1785 = vpop.permute.xlu0 %1784
  %1786 = vrot.lane.b32.xlu0 %v1554, 7
  %v1787 = vpop.permute.xlu0 %1786
  %1788 = vrot.lane.b32.xlu0 %v1559, 7
  %v1789 = vpop.permute.xlu0 %1788
  %1790 = vrot.lane.b32.xlu0 %v1564, 7
  %v1791 = vpop.permute.xlu0 %1790
  %1792 = vrot.lane.b32.xlu0 %v1569, 7
  %v1793 = vpop.permute.xlu0 %1792
  %1794 = vrot.lane.b32.xlu0 %v1574, 7
  %v1795 = vpop.permute.xlu0 %1794
  %1796 = vrot.lane.b32.xlu0 %v1579, 7
  %v1797 = vpop.permute.xlu0 %1796
  %v1798 = vmul.f32 %v1783, %v655
  %v1799 = vmul.f32 %v1785, %v655
  %v1800 = vmul.f32 %v1787, %v655
  %v1801 = vmul.f32 %v1789, %v655
  %v1802 = vmul.f32 %v1791, %v655
  %v1803 = vmul.f32 %v1793, %v655
  %v1804 = vmul.f32 %v1795, %v655
  %v1805 = vmul.f32 %v1797, %v655
  %1806 = vset.pattern.permute.xlu0 2
  %1807 = vperm.xlu0 %1806, %v1582
  %v1808 = vpop.permute.xlu0 %1807
  %1810 = vset.pattern.permute.xlu0 2
  %1811 = vperm.xlu0 %1810, %v1583
  %v1812 = vpop.permute.xlu0 %1811
  %1814 = vset.pattern.permute.xlu0 2
  %1815 = vperm.xlu0 %1814, %v1584
  %v1816 = vpop.permute.xlu0 %1815
  %1818 = vset.pattern.permute.xlu0 2
  %1819 = vperm.xlu0 %1818, %v1585
  %v1820 = vpop.permute.xlu0 %1819
  %1822 = vset.pattern.permute.xlu0 2
  %1823 = vperm.xlu0 %1822, %v1586
  %v1824 = vpop.permute.xlu0 %1823
  %1826 = vset.pattern.permute.xlu0 2
  %1827 = vperm.xlu0 %1826, %v1587
  %v1828 = vpop.permute.xlu0 %1827
  %1830 = vset.pattern.permute.xlu0 2
  %1831 = vperm.xlu0 %1830, %v1588
  %v1832 = vpop.permute.xlu0 %1831
  %1834 = vset.pattern.permute.xlu0 2
  %1835 = vperm.xlu0 %1834, %v1589
  %v1836 = vpop.permute.xlu0 %1835
  %v1838 = vmul.f32 %v1798, %v1808
  %v1839 = vmul.f32 %v1799, %v1812
  %v1840 = vmul.f32 %v1800, %v1816
  %v1841 = vmul.f32 %v1801, %v1820
  %v1842 = vmul.f32 %v1802, %v1824
  %v1843 = vmul.f32 %v1803, %v1828
  %v1844 = vmul.f32 %v1804, %v1832
  %v1845 = vmul.f32 %v1805, %v1836
  %v1846 = vadd.f32 %v1774, %v1838
  %v1847 = vadd.f32 %v1775, %v1839
  %v1848 = vadd.f32 %v1776, %v1840
  %v1849 = vadd.f32 %v1777, %v1841
  %v1850 = vadd.f32 %v1778, %v1842
  %v1851 = vadd.f32 %v1779, %v1843
  %v1852 = vadd.f32 %v1780, %v1844
  %v1853 = vadd.f32 %v1781, %v1845
  %1854 = vrot.lane.b32.xlu0 %v1544, 1
  %v1855 = vpop.permute.xlu0 %1854
  %1856 = vrot.lane.b32.xlu0 %v1549, 1
  %v1857 = vpop.permute.xlu0 %1856
  %1858 = vrot.lane.b32.xlu0 %v1554, 1
  %v1859 = vpop.permute.xlu0 %1858
  %1860 = vrot.lane.b32.xlu0 %v1559, 1
  %v1861 = vpop.permute.xlu0 %1860
  %1862 = vrot.lane.b32.xlu0 %v1564, 1
  %v1863 = vpop.permute.xlu0 %1862
  %1864 = vrot.lane.b32.xlu0 %v1569, 1
  %v1865 = vpop.permute.xlu0 %1864
  %1866 = vrot.lane.b32.xlu0 %v1574, 1
  %v1867 = vpop.permute.xlu0 %1866
  %1868 = vrot.lane.b32.xlu0 %v1579, 1
  %v1869 = vpop.permute.xlu0 %1868
  %v1870 = vmul.f32 %v1855, %v715
  %v1871 = vmul.f32 %v1857, %v715
  %v1872 = vmul.f32 %v1859, %v715
  %v1873 = vmul.f32 %v1861, %v715
  %v1874 = vmul.f32 %v1863, %v715
  %v1875 = vmul.f32 %v1865, %v715
  %v1876 = vmul.f32 %v1867, %v715
  %v1877 = vmul.f32 %v1869, %v715
  %1878 = vset.pattern.permute.xlu0 3
  %1879 = vperm.xlu0 %1878, %v1582
  %v1880 = vpop.permute.xlu0 %1879
  %1882 = vset.pattern.permute.xlu0 3
  %1883 = vperm.xlu0 %1882, %v1583
  %v1884 = vpop.permute.xlu0 %1883
  %1886 = vset.pattern.permute.xlu0 3
  %1887 = vperm.xlu0 %1886, %v1584
  %v1888 = vpop.permute.xlu0 %1887
  %1890 = vset.pattern.permute.xlu0 3
  %1891 = vperm.xlu0 %1890, %v1585
  %v1892 = vpop.permute.xlu0 %1891
  %1894 = vset.pattern.permute.xlu0 3
  %1895 = vperm.xlu0 %1894, %v1586
  %v1896 = vpop.permute.xlu0 %1895
  %1898 = vset.pattern.permute.xlu0 3
  %1899 = vperm.xlu0 %1898, %v1587
  %v1900 = vpop.permute.xlu0 %1899
  %1902 = vset.pattern.permute.xlu0 3
  %1903 = vperm.xlu0 %1902, %v1588
  %v1904 = vpop.permute.xlu0 %1903
  %1906 = vset.pattern.permute.xlu0 3
  %1907 = vperm.xlu0 %1906, %v1589
  %v1908 = vpop.permute.xlu0 %1907
  %v1910 = vmul.f32 %v1870, %v1880
  %v1911 = vmul.f32 %v1871, %v1884
  %v1912 = vmul.f32 %v1872, %v1888
  %v1913 = vmul.f32 %v1873, %v1892
  %v1914 = vmul.f32 %v1874, %v1896
  %v1915 = vmul.f32 %v1875, %v1900
  %v1916 = vmul.f32 %v1876, %v1904
  %v1917 = vmul.f32 %v1877, %v1908
  %v1918 = vadd.f32 %v1846, %v1910
  %v1919 = vadd.f32 %v1847, %v1911
  %v1920 = vadd.f32 %v1848, %v1912
  %v1921 = vadd.f32 %v1849, %v1913
  %v1922 = vadd.f32 %v1850, %v1914
  %v1923 = vadd.f32 %v1851, %v1915
  %v1924 = vadd.f32 %v1852, %v1916
  %v1925 = vadd.f32 %v1853, %v1917
  %1926 = vrot.lane.b32.xlu0 %v1544, 127
  %v1927 = vpop.permute.xlu0 %1926
  %1928 = vrot.lane.b32.xlu0 %v1549, 127
  %v1929 = vpop.permute.xlu0 %1928
  %1930 = vrot.lane.b32.xlu0 %v1554, 127
  %v1931 = vpop.permute.xlu0 %1930
  %1932 = vrot.lane.b32.xlu0 %v1559, 127
  %v1933 = vpop.permute.xlu0 %1932
  %1934 = vrot.lane.b32.xlu0 %v1564, 127
  %v1935 = vpop.permute.xlu0 %1934
  %1936 = vrot.lane.b32.xlu0 %v1569, 127
  %v1937 = vpop.permute.xlu0 %1936
  %1938 = vrot.lane.b32.xlu0 %v1574, 127
  %v1939 = vpop.permute.xlu0 %1938
  %1940 = vrot.lane.b32.xlu0 %v1579, 127
  %v1941 = vpop.permute.xlu0 %1940
  %v1942 = vmul.f32 %v1927, %v775
  %v1943 = vmul.f32 %v1929, %v775
  %v1944 = vmul.f32 %v1931, %v775
  %v1945 = vmul.f32 %v1933, %v775
  %v1946 = vmul.f32 %v1935, %v775
  %v1947 = vmul.f32 %v1937, %v775
  %v1948 = vmul.f32 %v1939, %v775
  %v1949 = vmul.f32 %v1941, %v775
  %1950 = vset.pattern.permute.xlu0 5
  %1951 = vperm.xlu0 %1950, %v1582
  %v1952 = vpop.permute.xlu0 %1951
  %1954 = vset.pattern.permute.xlu0 5
  %1955 = vperm.xlu0 %1954, %v1583
  %v1956 = vpop.permute.xlu0 %1955
  %1958 = vset.pattern.permute.xlu0 5
  %1959 = vperm.xlu0 %1958, %v1584
  %v1960 = vpop.permute.xlu0 %1959
  %1962 = vset.pattern.permute.xlu0 5
  %1963 = vperm.xlu0 %1962, %v1585
  %v1964 = vpop.permute.xlu0 %1963
  %1966 = vset.pattern.permute.xlu0 5
  %1967 = vperm.xlu0 %1966, %v1586
  %v1968 = vpop.permute.xlu0 %1967
  %1970 = vset.pattern.permute.xlu0 5
  %1971 = vperm.xlu0 %1970, %v1587
  %v1972 = vpop.permute.xlu0 %1971
  %1974 = vset.pattern.permute.xlu0 5
  %1975 = vperm.xlu0 %1974, %v1588
  %v1976 = vpop.permute.xlu0 %1975
  %1978 = vset.pattern.permute.xlu0 5
  %1979 = vperm.xlu0 %1978, %v1589
  %v1980 = vpop.permute.xlu0 %1979
  %v1982 = vmul.f32 %v1942, %v1952
  %v1983 = vmul.f32 %v1943, %v1956
  %v1984 = vmul.f32 %v1944, %v1960
  %v1985 = vmul.f32 %v1945, %v1964
  %v1986 = vmul.f32 %v1946, %v1968
  %v1987 = vmul.f32 %v1947, %v1972
  %v1988 = vmul.f32 %v1948, %v1976
  %v1989 = vmul.f32 %v1949, %v1980
  %v1990 = vadd.f32 %v1918, %v1982
  %v1991 = vadd.f32 %v1919, %v1983
  %v1992 = vadd.f32 %v1920, %v1984
  %v1993 = vadd.f32 %v1921, %v1985
  %v1994 = vadd.f32 %v1922, %v1986
  %v1995 = vadd.f32 %v1923, %v1987
  %v1996 = vadd.f32 %v1924, %v1988
  %v1997 = vadd.f32 %v1925, %v1989
  %1998 = vrot.lane.b32.xlu0 %v1544, 121
  %v1999 = vpop.permute.xlu0 %1998
  %2000 = vrot.lane.b32.xlu0 %v1549, 121
  %v2001 = vpop.permute.xlu0 %2000
  %2002 = vrot.lane.b32.xlu0 %v1554, 121
  %v2003 = vpop.permute.xlu0 %2002
  %2004 = vrot.lane.b32.xlu0 %v1559, 121
  %v2005 = vpop.permute.xlu0 %2004
  %2006 = vrot.lane.b32.xlu0 %v1564, 121
  %v2007 = vpop.permute.xlu0 %2006
  %2008 = vrot.lane.b32.xlu0 %v1569, 121
  %v2009 = vpop.permute.xlu0 %2008
  %2010 = vrot.lane.b32.xlu0 %v1574, 121
  %v2011 = vpop.permute.xlu0 %2010
  %2012 = vrot.lane.b32.xlu0 %v1579, 121
  %v2013 = vpop.permute.xlu0 %2012
  %v2014 = vmul.f32 %v1999, %v835
  %v2015 = vmul.f32 %v2001, %v835
  %v2016 = vmul.f32 %v2003, %v835
  %v2017 = vmul.f32 %v2005, %v835
  %v2018 = vmul.f32 %v2007, %v835
  %v2019 = vmul.f32 %v2009, %v835
  %v2020 = vmul.f32 %v2011, %v835
  %v2021 = vmul.f32 %v2013, %v835
  %2022 = vset.pattern.permute.xlu0 6
  %2023 = vperm.xlu0 %2022, %v1582
  %v2024 = vpop.permute.xlu0 %2023
  %2026 = vset.pattern.permute.xlu0 6
  %2027 = vperm.xlu0 %2026, %v1583
  %v2028 = vpop.permute.xlu0 %2027
  %2030 = vset.pattern.permute.xlu0 6
  %2031 = vperm.xlu0 %2030, %v1584
  %v2032 = vpop.permute.xlu0 %2031
  %2034 = vset.pattern.permute.xlu0 6
  %2035 = vperm.xlu0 %2034, %v1585
  %v2036 = vpop.permute.xlu0 %2035
  %2038 = vset.pattern.permute.xlu0 6
  %2039 = vperm.xlu0 %2038, %v1586
  %v2040 = vpop.permute.xlu0 %2039
  %2042 = vset.pattern.permute.xlu0 6
  %2043 = vperm.xlu0 %2042, %v1587
  %v2044 = vpop.permute.xlu0 %2043
  %2046 = vset.pattern.permute.xlu0 6
  %2047 = vperm.xlu0 %2046, %v1588
  %v2048 = vpop.permute.xlu0 %2047
  %2050 = vset.pattern.permute.xlu0 6
  %2051 = vperm.xlu0 %2050, %v1589
  %v2052 = vpop.permute.xlu0 %2051
  %v2054 = vmul.f32 %v2014, %v2024
  %v2055 = vmul.f32 %v2015, %v2028
  %v2056 = vmul.f32 %v2016, %v2032
  %v2057 = vmul.f32 %v2017, %v2036
  %v2058 = vmul.f32 %v2018, %v2040
  %v2059 = vmul.f32 %v2019, %v2044
  %v2060 = vmul.f32 %v2020, %v2048
  %v2061 = vmul.f32 %v2021, %v2052
  %v2062 = vadd.f32 %v1990, %v2054
  %v2063 = vadd.f32 %v1991, %v2055
  %v2064 = vadd.f32 %v1992, %v2056
  %v2065 = vadd.f32 %v1993, %v2057
  %v2066 = vadd.f32 %v1994, %v2058
  %v2067 = vadd.f32 %v1995, %v2059
  %v2068 = vadd.f32 %v1996, %v2060
  %v2069 = vadd.f32 %v1997, %v2061
  %2070 = vrot.lane.b32.xlu0 %v1544, 120
  %v2071 = vpop.permute.xlu0 %2070
  %2072 = vrot.lane.b32.xlu0 %v1549, 120
  %v2073 = vpop.permute.xlu0 %2072
  %2074 = vrot.lane.b32.xlu0 %v1554, 120
  %v2075 = vpop.permute.xlu0 %2074
  %2076 = vrot.lane.b32.xlu0 %v1559, 120
  %v2077 = vpop.permute.xlu0 %2076
  %2078 = vrot.lane.b32.xlu0 %v1564, 120
  %v2079 = vpop.permute.xlu0 %2078
  %2080 = vrot.lane.b32.xlu0 %v1569, 120
  %v2081 = vpop.permute.xlu0 %2080
  %2082 = vrot.lane.b32.xlu0 %v1574, 120
  %v2083 = vpop.permute.xlu0 %2082
  %2084 = vrot.lane.b32.xlu0 %v1579, 120
  %v2085 = vpop.permute.xlu0 %2084
  %v2086 = vmul.f32 %v2071, %v895
  %v2087 = vmul.f32 %v2073, %v895
  %v2088 = vmul.f32 %v2075, %v895
  %v2089 = vmul.f32 %v2077, %v895
  %v2090 = vmul.f32 %v2079, %v895
  %v2091 = vmul.f32 %v2081, %v895
  %v2092 = vmul.f32 %v2083, %v895
  %v2093 = vmul.f32 %v2085, %v895
  %2094 = vset.pattern.permute.xlu0 7
  %2095 = vperm.xlu0 %2094, %v1582
  %v2096 = vpop.permute.xlu0 %2095
  %2098 = vset.pattern.permute.xlu0 7
  %2099 = vperm.xlu0 %2098, %v1583
  %v2100 = vpop.permute.xlu0 %2099
  %2102 = vset.pattern.permute.xlu0 7
  %2103 = vperm.xlu0 %2102, %v1584
  %v2104 = vpop.permute.xlu0 %2103
  %2106 = vset.pattern.permute.xlu0 7
  %2107 = vperm.xlu0 %2106, %v1585
  %v2108 = vpop.permute.xlu0 %2107
  %2110 = vset.pattern.permute.xlu0 7
  %2111 = vperm.xlu0 %2110, %v1586
  %v2112 = vpop.permute.xlu0 %2111
  %2114 = vset.pattern.permute.xlu0 7
  %2115 = vperm.xlu0 %2114, %v1587
  %v2116 = vpop.permute.xlu0 %2115
  %2118 = vset.pattern.permute.xlu0 7
  %2119 = vperm.xlu0 %2118, %v1588
  %v2120 = vpop.permute.xlu0 %2119
  %2122 = vset.pattern.permute.xlu0 7
  %2123 = vperm.xlu0 %2122, %v1589
  %v2124 = vpop.permute.xlu0 %2123
  %v2126 = vmul.f32 %v2086, %v2096
  %v2127 = vmul.f32 %v2087, %v2100
  %v2128 = vmul.f32 %v2088, %v2104
  %v2129 = vmul.f32 %v2089, %v2108
  %v2130 = vmul.f32 %v2090, %v2112
  %v2131 = vmul.f32 %v2091, %v2116
  %v2132 = vmul.f32 %v2092, %v2120
  %v2133 = vmul.f32 %v2093, %v2124
  %v2134 = vadd.f32 %v2062, %v2126
  %v2135 = vadd.f32 %v2063, %v2127
  %v2136 = vadd.f32 %v2064, %v2128
  %v2137 = vadd.f32 %v2065, %v2129
  %v2138 = vadd.f32 %v2066, %v2130
  %v2139 = vadd.f32 %v2067, %v2131
  %v2140 = vadd.f32 %v2068, %v2132
  %v2141 = vadd.f32 %v2069, %v2133
  %2142 = vrot.lane.b32.xlu0 %v1544, 119
  %v2143 = vpop.permute.xlu0 %2142
  %2144 = vrot.lane.b32.xlu0 %v1549, 119
  %v2145 = vpop.permute.xlu0 %2144
  %2146 = vrot.lane.b32.xlu0 %v1554, 119
  %v2147 = vpop.permute.xlu0 %2146
  %2148 = vrot.lane.b32.xlu0 %v1559, 119
  %v2149 = vpop.permute.xlu0 %2148
  %2150 = vrot.lane.b32.xlu0 %v1564, 119
  %v2151 = vpop.permute.xlu0 %2150
  %2152 = vrot.lane.b32.xlu0 %v1569, 119
  %v2153 = vpop.permute.xlu0 %2152
  %2154 = vrot.lane.b32.xlu0 %v1574, 119
  %v2155 = vpop.permute.xlu0 %2154
  %2156 = vrot.lane.b32.xlu0 %v1579, 119
  %v2157 = vpop.permute.xlu0 %2156
  %v2158 = vmul.f32 %v2143, %v955
  %v2159 = vmul.f32 %v2145, %v955
  %v2160 = vmul.f32 %v2147, %v955
  %v2161 = vmul.f32 %v2149, %v955
  %v2162 = vmul.f32 %v2151, %v955
  %v2163 = vmul.f32 %v2153, %v955
  %v2164 = vmul.f32 %v2155, %v955
  %v2165 = vmul.f32 %v2157, %v955
  %2166 = vset.pattern.permute.xlu0 8
  %2167 = vperm.xlu0 %2166, %v1582
  %v2168 = vpop.permute.xlu0 %2167
  %2170 = vset.pattern.permute.xlu0 8
  %2171 = vperm.xlu0 %2170, %v1583
  %v2172 = vpop.permute.xlu0 %2171
  %2174 = vset.pattern.permute.xlu0 8
  %2175 = vperm.xlu0 %2174, %v1584
  %v2176 = vpop.permute.xlu0 %2175
  %2178 = vset.pattern.permute.xlu0 8
  %2179 = vperm.xlu0 %2178, %v1585
  %v2180 = vpop.permute.xlu0 %2179
  %2182 = vset.pattern.permute.xlu0 8
  %2183 = vperm.xlu0 %2182, %v1586
  %v2184 = vpop.permute.xlu0 %2183
  %2186 = vset.pattern.permute.xlu0 8
  %2187 = vperm.xlu0 %2186, %v1587
  %v2188 = vpop.permute.xlu0 %2187
  %2190 = vset.pattern.permute.xlu0 8
  %2191 = vperm.xlu0 %2190, %v1588
  %v2192 = vpop.permute.xlu0 %2191
  %2194 = vset.pattern.permute.xlu0 8
  %2195 = vperm.xlu0 %2194, %v1589
  %v2196 = vpop.permute.xlu0 %2195
  %v2198 = vmul.f32 %v2158, %v2168
  %v2199 = vmul.f32 %v2159, %v2172
  %v2200 = vmul.f32 %v2160, %v2176
  %v2201 = vmul.f32 %v2161, %v2180
  %v2202 = vmul.f32 %v2162, %v2184
  %v2203 = vmul.f32 %v2163, %v2188
  %v2204 = vmul.f32 %v2164, %v2192
  %v2205 = vmul.f32 %v2165, %v2196
  %v2206 = vadd.f32 %v2134, %v2198
  %v2207 = vadd.f32 %v2135, %v2199
  %v2208 = vadd.f32 %v2136, %v2200
  %v2209 = vadd.f32 %v2137, %v2201
  %v2210 = vadd.f32 %v2138, %v2202
  %v2211 = vadd.f32 %v2139, %v2203
  %v2212 = vadd.f32 %v2140, %v2204
  %v2213 = vadd.f32 %v2141, %v2205
  %v2214 = vand.u32 2147483647, %v2206
  %v2215 = vand.u32 2147483647, %v2207
  %v2216 = vand.u32 2147483647, %v2208
  %v2217 = vand.u32 2147483647, %v2209
  %v2218 = vmul.f32 %v2214, 0.5
  %v2219 = vmul.f32 %v2215, 0.5
  %v2220 = vmul.f32 %v2216, 0.5
  %v2221 = vmul.f32 %v2217, 0.5
  %v2222 = vadd.f32 %v2218, 1.0
  %v2223 = vadd.f32 %v2219, 1.0
  %v2224 = vadd.f32 %v2220, 1.0
  %v2225 = vadd.f32 %v2221, 1.0
  %v2226 = vrcp.pop %v2222
  %v2227 = vmul.f32 1.0, %v2226
  %v2228 = vrcp.pop %v2223
  %v2229 = vmul.f32 1.0, %v2228
  %v2230 = vrcp.pop %v2224
  %v2231 = vmul.f32 1.0, %v2230
  %v2232 = vrcp.pop %v2225
  %v2233 = vmul.f32 1.0, %v2232
  %v2234 = vsub.f32 0.0, %v2214
  %v2235 = vsub.f32 0.0, %v2215
  %v2236 = vsub.f32 0.0, %v2216
  %v2237 = vsub.f32 0.0, %v2217
  %v2238 = vmul.f32 %v2234, %v2214
  %v2239 = vmul.f32 %v2235, %v2215
  %v2240 = vmul.f32 %v2236, %v2216
  %v2241 = vmul.f32 %v2237, %v2217
  %v2242 = vsub.f32 %v2238, 1.2655122
  %v2243 = vsub.f32 %v2239, 1.2655122
  %v2244 = vsub.f32 %v2240, 1.2655122
  %v2245 = vsub.f32 %v2241, 1.2655122
  %v2246 = vmul.f32 %v2227, 0.17087276
  %v2247 = vmul.f32 %v2229, 0.17087276
  %v2248 = vmul.f32 %v2231, 0.17087276
  %v2249 = vmul.f32 %v2233, 0.17087276
  %v2250 = vadd.f32 %v2246, -0.82215226
  %v2251 = vadd.f32 %v2247, -0.82215226
  %v2252 = vadd.f32 %v2248, -0.82215226
  %v2253 = vadd.f32 %v2249, -0.82215226
  %v2254 = vmul.f32 %v2227, %v2250
  %v2255 = vmul.f32 %v2229, %v2251
  %v2256 = vmul.f32 %v2231, %v2252
  %v2257 = vmul.f32 %v2233, %v2253
  %v2258 = vadd.f32 %v2254, 1.4885159
  %v2259 = vadd.f32 %v2255, 1.4885159
  %v2260 = vadd.f32 %v2256, 1.4885159
  %v2261 = vadd.f32 %v2257, 1.4885159
  %v2262 = vmul.f32 %v2227, %v2258
  %v2263 = vmul.f32 %v2229, %v2259
  %v2264 = vmul.f32 %v2231, %v2260
  %v2265 = vmul.f32 %v2233, %v2261
  %v2266 = vadd.f32 %v2262, -1.135204
  %v2267 = vadd.f32 %v2263, -1.135204
  %v2268 = vadd.f32 %v2264, -1.135204
  %v2269 = vadd.f32 %v2265, -1.135204
  %v2270 = vmul.f32 %v2227, %v2266
  %v2271 = vmul.f32 %v2229, %v2267
  %v2272 = vmul.f32 %v2231, %v2268
  %v2273 = vmul.f32 %v2233, %v2269
  %v2274 = vadd.f32 %v2270, 0.27886808
  %v2275 = vadd.f32 %v2271, 0.27886808
  %v2276 = vadd.f32 %v2272, 0.27886808
  %v2277 = vadd.f32 %v2273, 0.27886808
  %v2278 = vmul.f32 %v2227, %v2274
  %v2279 = vmul.f32 %v2229, %v2275
  %v2280 = vmul.f32 %v2231, %v2276
  %v2281 = vmul.f32 %v2233, %v2277
  %v2282 = vadd.f32 %v2278, -0.18628806
  %v2283 = vadd.f32 %v2279, -0.18628806
  %v2284 = vadd.f32 %v2280, -0.18628806
  %v2285 = vadd.f32 %v2281, -0.18628806
  %v2286 = vmul.f32 %v2227, %v2282
  %v2287 = vmul.f32 %v2229, %v2283
  %v2288 = vmul.f32 %v2231, %v2284
  %v2289 = vmul.f32 %v2233, %v2285
  %v2290 = vadd.f32 %v2286, 0.09678418
  %v2291 = vadd.f32 %v2287, 0.09678418
  %v2292 = vadd.f32 %v2288, 0.09678418
  %v2293 = vadd.f32 %v2289, 0.09678418
  %v2294 = vmul.f32 %v2227, %v2290
  %v2295 = vmul.f32 %v2229, %v2291
  %v2296 = vmul.f32 %v2231, %v2292
  %v2297 = vmul.f32 %v2233, %v2293
  %v2298 = vadd.f32 %v2294, 0.37409195
  %v2299 = vadd.f32 %v2295, 0.37409195
  %v2300 = vadd.f32 %v2296, 0.37409195
  %v2301 = vadd.f32 %v2297, 0.37409195
  %v2302 = vmul.f32 %v2227, %v2298
  %v2303 = vmul.f32 %v2229, %v2299
  %v2304 = vmul.f32 %v2231, %v2300
  %v2305 = vmul.f32 %v2233, %v2301
  %v2306 = vadd.f32 %v2302, 1.0000237
  %v2307 = vadd.f32 %v2303, 1.0000237
  %v2308 = vadd.f32 %v2304, 1.0000237
  %v2309 = vadd.f32 %v2305, 1.0000237
  %v2310 = vmul.f32 %v2227, %v2306
  %v2311 = vmul.f32 %v2229, %v2307
  %v2312 = vmul.f32 %v2231, %v2308
  %v2313 = vmul.f32 %v2233, %v2309
  %v2314 = vadd.f32 %v2242, %v2310
  %v2315 = vadd.f32 %v2243, %v2311
  %v2316 = vadd.f32 %v2244, %v2312
  %v2317 = vadd.f32 %v2245, %v2313
  %v2318 = vmul.f32 %v2314, 1.442695
  %v2319 = vpow.pop %v2318
  %v2320 = vmul.f32 %v2315, 1.442695
  %v2321 = vpow.pop %v2320
  %v2322 = vmul.f32 %v2316, 1.442695
  %v2323 = vpow.pop %v2322
  %v2324 = vmul.f32 %v2317, 1.442695
  %v2325 = vpow.pop %v2324
  %v2326 = vmul.f32 %v2227, %v2319
  %v2327 = vmul.f32 %v2229, %v2321
  %v2328 = vmul.f32 %v2231, %v2323
  %v2329 = vmul.f32 %v2233, %v2325
  %vm2330 = vcmp.ge.f32.partialorder %v2206, 0.0
  %vm2331 = vcmp.ge.f32.partialorder %v2207, 0.0
  %vm2332 = vcmp.ge.f32.partialorder %v2208, 0.0
  %vm2333 = vcmp.ge.f32.partialorder %v2209, 0.0
  %v2334 = vsub.f32 1.0, %v2326
  %v2335 = vsub.f32 1.0, %v2327
  %v2336 = vsub.f32 1.0, %v2328
  %v2337 = vsub.f32 1.0, %v2329
  %v2338 = vsub.f32 %v2326, 1.0
  %v2339 = vsub.f32 %v2327, 1.0
  %v2340 = vsub.f32 %v2328, 1.0
  %v2341 = vsub.f32 %v2329, 1.0
  %v2342 = vsel %vm2330, %v2334, %v2338
  %v2343 = vsel %vm2331, %v2335, %v2339
  %v2344 = vsel %vm2332, %v2336, %v2340
  %v2345 = vsel %vm2333, %v2337, %v2341
  %v2346 = vmul.f32 %v2206, 0.5
  %v2347 = vmul.f32 %v2207, 0.5
  %v2348 = vmul.f32 %v2208, 0.5
  %v2349 = vmul.f32 %v2209, 0.5
  %v2350 = vadd.f32 %v2342, 1.0
  %v2351 = vadd.f32 %v2343, 1.0
  %v2352 = vadd.f32 %v2344, 1.0
  %v2353 = vadd.f32 %v2345, 1.0
  %v2354 = vmul.f32 %v2346, %v2350
  %v2355 = vmul.f32 %v2347, %v2351
  %v2356 = vmul.f32 %v2348, %v2352
  %v2357 = vmul.f32 %v2349, %v2353
  %v2358 = vmul.f32 %v2354, %v2210
  %v2359 = vmul.f32 %v2355, %v2211
  %v2360 = vmul.f32 %v2356, %v2212
  %v2361 = vmul.f32 %v2357, %v2213
  %v2362 = vld [vmem:[%s17] sm:$0xff]
  %v2363 = vld [vmem:[%s17 + $0x8] sm:$0xff]
  %v2365 = vsel %vm1160, %v2362, 0
  %v2368 = vsel %vm1160, %v2363, 0
  %2370 = vmatprep.subr.mxu0 0.0
  %2371 = vmatpush1.msra.mxu0 0.0
  %2372 = vmatprep.subr.mxu0 0.0
  %2373 = vmatpush1.msra.mxu0 0.0
  %2374 = vmatprep.subr.mxu0 0.0
  %2375 = vmatpush1.msra.mxu0 0.0
  %2376 = vmatprep.subr.mxu0 0.0
  %2377 = vmatpush1.msra.mxu0 0.0
  %2378 = vmatprep.subr.mxu0 0.0
  %2379 = vmatpush1.msra.mxu0 0.0
  %2380 = vmatprep.subr.mxu0 0.0
  %2381 = vmatpush1.msra.mxu0 0.0
  %2382 = vmatprep.subr.mxu0 0.0
  %2383 = vmatpush1.msra.mxu0 0.0
  %2384 = vmatprep.subr.mxu0 0.0
  %2385 = vmatpush1.msra.mxu0 0.0
  %2386 = vmatprep.subr.mxu0 0.0
  %2387 = vmatpush1.msra.mxu0 0.0
  %2388 = vmatprep.subr.mxu0 0.0
  %2389 = vmatpush1.msra.mxu0 0.0
  %2390 = vmatprep.subr.mxu0 0.0
  %2391 = vmatpush1.msra.mxu0 0.0
  %2392 = vmatprep.subr.mxu0 0.0
  %2393 = vmatpush1.msra.mxu0 0.0
  %2394 = vmatprep.subr.mxu0 0.0
  %2395 = vmatpush1.msra.mxu0 %v2361
  %2396 = vmatprep.subr.mxu0 0.0
  %2397 = vmatpush1.msra.mxu0 %v2360
  %2398 = vmatprep.subr.mxu0 0.0
  %2399 = vmatpush1.msra.mxu0 %v2359
  %2400 = vmatprep.subr.mxu0 0.0
  %2401 = vmatpush1.msra.mxu0 %v2358
  %2402 = vmatprep.subr.mxu0 0.0
  %2403 = vmatpush2.msra.mxu0 0.0
  %2404 = vmatprep.subr.mxu0 0.0
  %2405 = vmatpush2.msra.mxu0 0.0
  %2406 = vmatprep.subr.mxu0 0.0
  %2407 = vmatpush2.msra.mxu0 0.0
  %2408 = vmatprep.subr.mxu0 0.0
  %2409 = vmatpush2.msra.mxu0 0.0
  %2410 = vmatprep.subr.mxu0 0.0
  %2411 = vmatpush2.msra.mxu0 0.0
  %2412 = vmatprep.subr.mxu0 0.0
  %2413 = vmatpush2.msra.mxu0 0.0
  %2414 = vmatprep.subr.mxu0 0.0
  %2415 = vmatpush2.msra.mxu0 0.0
  %2416 = vmatprep.subr.mxu0 0.0
  %2417 = vmatpush2.msra.mxu0 0.0
  %2418 = vmatprep.subr.mxu0 0.0
  %2419 = vmatpush2.msra.mxu0 0.0
  %2420 = vmatprep.subr.mxu0 0.0
  %2421 = vmatpush2.msra.mxu0 0.0
  %2422 = vmatprep.subr.mxu0 0.0
  %2423 = vmatpush2.msra.mxu0 0.0
  %2424 = vmatprep.subr.mxu0 0.0
  %2425 = vmatpush2.msra.mxu0 0.0
  %2426 = vmatprep.subr.mxu0 0.0
  %2427 = vmatpush2.msra.mxu0 0.0
  %2428 = vmatprep.subr.mxu0 0.0
  %2429 = vmatpush2.msra.mxu0 0.0
  %2430 = vmatprep.subr.mxu0 0.0
  %2431 = vmatpush2.msra.mxu0 0.0
  %2432 = vmatprep.subr.mxu0 0.0
  %2433 = vmatpush2.msra.mxu0 0.0
  %2434 = vmatprep.mubr.f32.mxu0 0.0
  %2435 = vmatmul.mubr.f32.gmra.mxu0 %v2365
  %v2436 = vpop.f32.mrf.mxu0
  %v2437 = vadd.f32 0.0, %v2436
  %v2438 = vpop.f32.mrf.mxu0
  %2439 = vmatprep.mubr.f32.mxu0 0.0
  %2440 = vmatmul.mubr.f32.gmra.mxu0 %v2368
  %v2441 = vpop.f32.mrf.mxu0
  %v2442 = vadd.f32 0.0, %v2441
  %v2443 = vpop.f32.mrf.mxu0
  %2444 = vdwg.mxu0
  %v2445 = vadd.f32 %v1391, %v2437
  %v2446 = vadd.f32 %v1392, %v2442
  %s2447 = scalar_lea.vmem %s7, 16
  %v2448 = vld [vmem:[%s2447] sm:$0xff]
  %v2449 = vld [vmem:[%s2447 + $0x8] sm:$0xff]
  %s2450 = scalar_lea.vmem %s8, 16
  %v2451 = vld [vmem:[%s2450] sm:$0xff]
  %v2452 = vld [vmem:[%s2450 + $0x8] sm:$0xff]
  %v2453 = vadd.f32 %v2445, %v2446
  %v2454 = vrot.slane %v2453, 4
  %v2455 = vadd.f32 %v2453, %v2454
  %v2456 = vrot.slane %v2455, 2
  %v2457 = vadd.f32 %v2455, %v2456
  %v2458 = vrot.slane %v2457, 1
  %v2459 = vadd.f32 %v2457, %v2458
  %v2460 = vmul.f32 %v2459, %v316
  %v2461 = vsub.f32 %v2445, %v2460
  %v2462 = vsub.f32 %v2446, %v2460
  %v2463 = vmul.f32 %v2461, %v2461
  %v2464 = vmul.f32 %v2462, %v2462
  %v2465 = vadd.f32 %v2463, %v2464
  %v2466 = vrot.slane %v2465, 4
  %v2467 = vadd.f32 %v2465, %v2466
  %v2468 = vrot.slane %v2467, 2
  %v2469 = vadd.f32 %v2467, %v2468
  %v2470 = vrot.slane %v2469, 1
  %v2471 = vadd.f32 %v2469, %v2470
  %v2472 = vmul.f32 %v2471, %v316
  %v2473 = vadd.f32 %v2472, 1e-05
  %v2474 = vrsqrt.pop %v2473
  %v2475 = vmul.f32 %v2461, %v2474
  %v2476 = vmul.f32 %v2462, %v2474
  %2478 = vset.pattern.permute.xlu0 0
  %2479 = vperm.xlu0 %2478, %v2448
  %v2480 = vpop.permute.xlu0 %2479
  %2483 = vset.pattern.permute.xlu0 0
  %2484 = vperm.xlu0 %2483, %v2449
  %v2485 = vpop.permute.xlu0 %2484
  %v2487 = vmul.f32 %v2475, %v2480
  %v2488 = vmul.f32 %v2476, %v2485
  %2490 = vset.pattern.permute.xlu0 0
  %2491 = vperm.xlu0 %2490, %v2451
  %v2492 = vpop.permute.xlu0 %2491
  %2495 = vset.pattern.permute.xlu0 0
  %2496 = vperm.xlu0 %2495, %v2452
  %v2497 = vpop.permute.xlu0 %2496
  %v2499 = vadd.f32 %v2487, %v2492
  %v2500 = vadd.f32 %v2488, %v2497
  %s2501 = scalar_lea.vmem %s9, 48
  %v2502 = vld [vmem:[%s2501] sm:$0xff]
  %v2503 = vld [vmem:[%s2501 + $0x8] sm:$0xff]
  %v2504 = vld [vmem:[%s2501 + $0x10] sm:$0xff]
  %v2505 = vld [vmem:[%s2501 + $0x18] sm:$0xff]
  %v2506 = vld [vmem:[%s2501 + $0x20] sm:$0xff]
  %v2507 = vld [vmem:[%s2501 + $0x28] sm:$0xff]
  %v2509 = vsel %vm142, %v2502, 0
  %v2512 = vsel %vm142, %v2503, 0
  %v2515 = vsel %vm142, %v2504, 0
  %v2518 = vsel %vm142, %v2505, 0
  %v2521 = vsel %vm142, %v2506, 0
  %v2524 = vsel %vm142, %v2507, 0
  %2526 = vmatprep.subr.mxu0 0.0
  %2527 = vmatpush1.msra.mxu0 0.0
  %2528 = vmatprep.subr.mxu0 0.0
  %2529 = vmatpush1.msra.mxu0 0.0
  %2530 = vmatprep.subr.mxu0 0.0
  %2531 = vmatpush1.msra.mxu0 0.0
  %2532 = vmatprep.subr.mxu0 0.0
  %2533 = vmatpush1.msra.mxu0 0.0
  %2534 = vmatprep.subr.mxu0 0.0
  %2535 = vmatpush1.msra.mxu0 0.0
  %2536 = vmatprep.subr.mxu0 0.0
  %2537 = vmatpush1.msra.mxu0 0.0
  %2538 = vmatprep.subr.mxu0 0.0
  %2539 = vmatpush1.msra.mxu0 0.0
  %2540 = vmatprep.subr.mxu0 0.0
  %2541 = vmatpush1.msra.mxu0 0.0
  %2542 = vmatprep.subr.mxu0 0.0
  %2543 = vmatpush1.msra.mxu0 0.0
  %2544 = vmatprep.subr.mxu0 0.0
  %2545 = vmatpush1.msra.mxu0 0.0
  %2546 = vmatprep.subr.mxu0 0.0
  %2547 = vmatpush1.msra.mxu0 0.0
  %2548 = vmatprep.subr.mxu0 0.0
  %2549 = vmatpush1.msra.mxu0 0.0
  %2550 = vmatprep.subr.mxu0 0.0
  %2551 = vmatpush1.msra.mxu0 0.0
  %2552 = vmatprep.subr.mxu0 0.0
  %2553 = vmatpush1.msra.mxu0 0.0
  %2554 = vmatprep.subr.mxu0 0.0
  %2555 = vmatpush1.msra.mxu0 %v2500
  %2556 = vmatprep.subr.mxu0 0.0
  %2557 = vmatpush1.msra.mxu0 %v2499
  %2558 = vmatprep.subr.mxu0 0.0
  %2559 = vmatpush2.msra.mxu0 0.0
  %2560 = vmatprep.subr.mxu0 0.0
  %2561 = vmatpush2.msra.mxu0 0.0
  %2562 = vmatprep.subr.mxu0 0.0
  %2563 = vmatpush2.msra.mxu0 0.0
  %2564 = vmatprep.subr.mxu0 0.0
  %2565 = vmatpush2.msra.mxu0 0.0
  %2566 = vmatprep.subr.mxu0 0.0
  %2567 = vmatpush2.msra.mxu0 0.0
  %2568 = vmatprep.subr.mxu0 0.0
  %2569 = vmatpush2.msra.mxu0 0.0
  %2570 = vmatprep.subr.mxu0 0.0
  %2571 = vmatpush2.msra.mxu0 0.0
  %2572 = vmatprep.subr.mxu0 0.0
  %2573 = vmatpush2.msra.mxu0 0.0
  %2574 = vmatprep.subr.mxu0 0.0
  %2575 = vmatpush2.msra.mxu0 0.0
  %2576 = vmatprep.subr.mxu0 0.0
  %2577 = vmatpush2.msra.mxu0 0.0
  %2578 = vmatprep.subr.mxu0 0.0
  %2579 = vmatpush2.msra.mxu0 0.0
  %2580 = vmatprep.subr.mxu0 0.0
  %2581 = vmatpush2.msra.mxu0 0.0
  %2582 = vmatprep.subr.mxu0 0.0
  %2583 = vmatpush2.msra.mxu0 0.0
  %2584 = vmatprep.subr.mxu0 0.0
  %2585 = vmatpush2.msra.mxu0 0.0
  %2586 = vmatprep.subr.mxu0 0.0
  %2587 = vmatpush2.msra.mxu0 0.0
  %2588 = vmatprep.subr.mxu0 0.0
  %2589 = vmatpush2.msra.mxu0 0.0
  %2590 = vmatprep.mubr.f32.mxu0 0.0
  %2591 = vmatmul.mubr.f32.gmra.mxu0 %v2509
  %v2592 = vpop.f32.mrf.mxu0
  %v2593 = vadd.f32 0.0, %v2592
  %v2594 = vpop.f32.mrf.mxu0
  %2595 = vmatprep.mubr.f32.mxu0 0.0
  %2596 = vmatmul.mubr.f32.gmra.mxu0 %v2512
  %v2597 = vpop.f32.mrf.mxu0
  %v2598 = vadd.f32 0.0, %v2597
  %v2599 = vpop.f32.mrf.mxu0
  %2600 = vmatprep.mubr.f32.mxu0 0.0
  %2601 = vmatmul.mubr.f32.gmra.mxu0 %v2515
  %v2602 = vpop.f32.mrf.mxu0
  %v2603 = vadd.f32 0.0, %v2602
  %v2604 = vpop.f32.mrf.mxu0
  %2605 = vmatprep.mubr.f32.mxu0 0.0
  %2606 = vmatmul.mubr.f32.gmra.mxu0 %v2518
  %v2607 = vpop.f32.mrf.mxu0
  %v2608 = vadd.f32 0.0, %v2607
  %v2609 = vpop.f32.mrf.mxu0
  %2610 = vmatprep.mubr.f32.mxu0 0.0
  %2611 = vmatmul.mubr.f32.gmra.mxu0 %v2521
  %v2612 = vpop.f32.mrf.mxu0
  %v2613 = vadd.f32 0.0, %v2612
  %v2614 = vpop.f32.mrf.mxu0
  %2615 = vmatprep.mubr.f32.mxu0 0.0
  %2616 = vmatmul.mubr.f32.gmra.mxu0 %v2524
  %v2617 = vpop.f32.mrf.mxu0
  %v2618 = vadd.f32 0.0, %v2617
  %v2619 = vpop.f32.mrf.mxu0
  %2620 = vdwg.mxu0
  %s2621 = scalar_lea.vmem %s10, 48
  %v2622 = vld [vmem:[%s2621] sm:$0xff]
  %v2623 = vld [vmem:[%s2621 + $0x8] sm:$0xff]
  %v2624 = vld [vmem:[%s2621 + $0x10] sm:$0xff]
  %v2625 = vld [vmem:[%s2621 + $0x18] sm:$0xff]
  %v2626 = vld [vmem:[%s2621 + $0x20] sm:$0xff]
  %v2627 = vld [vmem:[%s2621 + $0x28] sm:$0xff]
  %2629 = vset.pattern.permute.xlu0 4
  %2630 = vperm.xlu0 %2629, %v2622
  %v2631 = vpop.permute.xlu0 %2630
  %2634 = vset.pattern.permute.xlu0 4
  %2635 = vperm.xlu0 %2634, %v2623
  %v2636 = vpop.permute.xlu0 %2635
  %2639 = vset.pattern.permute.xlu0 4
  %2640 = vperm.xlu0 %2639, %v2624
  %v2641 = vpop.permute.xlu0 %2640
  %2644 = vset.pattern.permute.xlu0 4
  %2645 = vperm.xlu0 %2644, %v2625
  %v2646 = vpop.permute.xlu0 %2645
  %2649 = vset.pattern.permute.xlu0 4
  %2650 = vperm.xlu0 %2649, %v2626
  %v2651 = vpop.permute.xlu0 %2650
  %2654 = vset.pattern.permute.xlu0 4
  %2655 = vperm.xlu0 %2654, %v2627
  %v2656 = vpop.permute.xlu0 %2655
  %v2658 = vmul.f32 %v2593, %v2631
  %v2659 = vmul.f32 %v2598, %v2636
  %v2660 = vmul.f32 %v2603, %v2641
  %v2661 = vmul.f32 %v2608, %v2646
  %v2662 = vmul.f32 %v2613, %v2651
  %v2663 = vmul.f32 %v2618, %v2656
  %2664 = vrot.lane.b32.xlu0 %v2593, 9
  %v2665 = vpop.permute.xlu0 %2664
  %2666 = vrot.lane.b32.xlu0 %v2598, 9
  %v2667 = vpop.permute.xlu0 %2666
  %2668 = vrot.lane.b32.xlu0 %v2603, 9
  %v2669 = vpop.permute.xlu0 %2668
  %2670 = vrot.lane.b32.xlu0 %v2608, 9
  %v2671 = vpop.permute.xlu0 %2670
  %2672 = vrot.lane.b32.xlu0 %v2613, 9
  %v2673 = vpop.permute.xlu0 %2672
  %2674 = vrot.lane.b32.xlu0 %v2618, 9
  %v2675 = vpop.permute.xlu0 %2674
  %v2676 = vmul.f32 %v2665, %v535
  %v2677 = vmul.f32 %v2667, %v535
  %v2678 = vmul.f32 %v2669, %v535
  %v2679 = vmul.f32 %v2671, %v535
  %v2680 = vmul.f32 %v2673, %v535
  %v2681 = vmul.f32 %v2675, %v535
  %2682 = vset.pattern.permute.xlu0 0
  %2683 = vperm.xlu0 %2682, %v2622
  %v2684 = vpop.permute.xlu0 %2683
  %2686 = vset.pattern.permute.xlu0 0
  %2687 = vperm.xlu0 %2686, %v2623
  %v2688 = vpop.permute.xlu0 %2687
  %2690 = vset.pattern.permute.xlu0 0
  %2691 = vperm.xlu0 %2690, %v2624
  %v2692 = vpop.permute.xlu0 %2691
  %2694 = vset.pattern.permute.xlu0 0
  %2695 = vperm.xlu0 %2694, %v2625
  %v2696 = vpop.permute.xlu0 %2695
  %2698 = vset.pattern.permute.xlu0 0
  %2699 = vperm.xlu0 %2698, %v2626
  %v2700 = vpop.permute.xlu0 %2699
  %2702 = vset.pattern.permute.xlu0 0
  %2703 = vperm.xlu0 %2702, %v2627
  %v2704 = vpop.permute.xlu0 %2703
  %v2706 = vmul.f32 %v2676, %v2684
  %v2707 = vmul.f32 %v2677, %v2688
  %v2708 = vmul.f32 %v2678, %v2692
  %v2709 = vmul.f32 %v2679, %v2696
  %v2710 = vmul.f32 %v2680, %v2700
  %v2711 = vmul.f32 %v2681, %v2704
  %v2712 = vadd.f32 %v2658, %v2706
  %v2713 = vadd.f32 %v2659, %v2707
  %v2714 = vadd.f32 %v2660, %v2708
  %v2715 = vadd.f32 %v2661, %v2709
  %v2716 = vadd.f32 %v2662, %v2710
  %v2717 = vadd.f32 %v2663, %v2711
  %2718 = vrot.lane.b32.xlu0 %v2593, 8
  %v2719 = vpop.permute.xlu0 %2718
  %2720 = vrot.lane.b32.xlu0 %v2598, 8
  %v2721 = vpop.permute.xlu0 %2720
  %2722 = vrot.lane.b32.xlu0 %v2603, 8
  %v2723 = vpop.permute.xlu0 %2722
  %2724 = vrot.lane.b32.xlu0 %v2608, 8
  %v2725 = vpop.permute.xlu0 %2724
  %2726 = vrot.lane.b32.xlu0 %v2613, 8
  %v2727 = vpop.permute.xlu0 %2726
  %2728 = vrot.lane.b32.xlu0 %v2618, 8
  %v2729 = vpop.permute.xlu0 %2728
  %v2730 = vmul.f32 %v2719, %v595
  %v2731 = vmul.f32 %v2721, %v595
  %v2732 = vmul.f32 %v2723, %v595
  %v2733 = vmul.f32 %v2725, %v595
  %v2734 = vmul.f32 %v2727, %v595
  %v2735 = vmul.f32 %v2729, %v595
  %2736 = vset.pattern.permute.xlu0 1
  %2737 = vperm.xlu0 %2736, %v2622
  %v2738 = vpop.permute.xlu0 %2737
  %2740 = vset.pattern.permute.xlu0 1
  %2741 = vperm.xlu0 %2740, %v2623
  %v2742 = vpop.permute.xlu0 %2741
  %2744 = vset.pattern.permute.xlu0 1
  %2745 = vperm.xlu0 %2744, %v2624
  %v2746 = vpop.permute.xlu0 %2745
  %2748 = vset.pattern.permute.xlu0 1
  %2749 = vperm.xlu0 %2748, %v2625
  %v2750 = vpop.permute.xlu0 %2749
  %2752 = vset.pattern.permute.xlu0 1
  %2753 = vperm.xlu0 %2752, %v2626
  %v2754 = vpop.permute.xlu0 %2753
  %2756 = vset.pattern.permute.xlu0 1
  %2757 = vperm.xlu0 %2756, %v2627
  %v2758 = vpop.permute.xlu0 %2757
  %v2760 = vmul.f32 %v2730, %v2738
  %v2761 = vmul.f32 %v2731, %v2742
  %v2762 = vmul.f32 %v2732, %v2746
  %v2763 = vmul.f32 %v2733, %v2750
  %v2764 = vmul.f32 %v2734, %v2754
  %v2765 = vmul.f32 %v2735, %v2758
  %v2766 = vadd.f32 %v2712, %v2760
  %v2767 = vadd.f32 %v2713, %v2761
  %v2768 = vadd.f32 %v2714, %v2762
  %v2769 = vadd.f32 %v2715, %v2763
  %v2770 = vadd.f32 %v2716, %v2764
  %v2771 = vadd.f32 %v2717, %v2765
  %2772 = vrot.lane.b32.xlu0 %v2593, 7
  %v2773 = vpop.permute.xlu0 %2772
  %2774 = vrot.lane.b32.xlu0 %v2598, 7
  %v2775 = vpop.permute.xlu0 %2774
  %2776 = vrot.lane.b32.xlu0 %v2603, 7
  %v2777 = vpop.permute.xlu0 %2776
  %2778 = vrot.lane.b32.xlu0 %v2608, 7
  %v2779 = vpop.permute.xlu0 %2778
  %2780 = vrot.lane.b32.xlu0 %v2613, 7
  %v2781 = vpop.permute.xlu0 %2780
  %2782 = vrot.lane.b32.xlu0 %v2618, 7
  %v2783 = vpop.permute.xlu0 %2782
  %v2784 = vmul.f32 %v2773, %v655
  %v2785 = vmul.f32 %v2775, %v655
  %v2786 = vmul.f32 %v2777, %v655
  %v2787 = vmul.f32 %v2779, %v655
  %v2788 = vmul.f32 %v2781, %v655
  %v2789 = vmul.f32 %v2783, %v655
  %2790 = vset.pattern.permute.xlu0 2
  %2791 = vperm.xlu0 %2790, %v2622
  %v2792 = vpop.permute.xlu0 %2791
  %2794 = vset.pattern.permute.xlu0 2
  %2795 = vperm.xlu0 %2794, %v2623
  %v2796 = vpop.permute.xlu0 %2795
  %2798 = vset.pattern.permute.xlu0 2
  %2799 = vperm.xlu0 %2798, %v2624
  %v2800 = vpop.permute.xlu0 %2799
  %2802 = vset.pattern.permute.xlu0 2
  %2803 = vperm.xlu0 %2802, %v2625
  %v2804 = vpop.permute.xlu0 %2803
  %2806 = vset.pattern.permute.xlu0 2
  %2807 = vperm.xlu0 %2806, %v2626
  %v2808 = vpop.permute.xlu0 %2807
  %2810 = vset.pattern.permute.xlu0 2
  %2811 = vperm.xlu0 %2810, %v2627
  %v2812 = vpop.permute.xlu0 %2811
  %v2814 = vmul.f32 %v2784, %v2792
  %v2815 = vmul.f32 %v2785, %v2796
  %v2816 = vmul.f32 %v2786, %v2800
  %v2817 = vmul.f32 %v2787, %v2804
  %v2818 = vmul.f32 %v2788, %v2808
  %v2819 = vmul.f32 %v2789, %v2812
  %v2820 = vadd.f32 %v2766, %v2814
  %v2821 = vadd.f32 %v2767, %v2815
  %v2822 = vadd.f32 %v2768, %v2816
  %v2823 = vadd.f32 %v2769, %v2817
  %v2824 = vadd.f32 %v2770, %v2818
  %v2825 = vadd.f32 %v2771, %v2819
  %2826 = vrot.lane.b32.xlu0 %v2593, 1
  %v2827 = vpop.permute.xlu0 %2826
  %2828 = vrot.lane.b32.xlu0 %v2598, 1
  %v2829 = vpop.permute.xlu0 %2828
  %2830 = vrot.lane.b32.xlu0 %v2603, 1
  %v2831 = vpop.permute.xlu0 %2830
  %2832 = vrot.lane.b32.xlu0 %v2608, 1
  %v2833 = vpop.permute.xlu0 %2832
  %2834 = vrot.lane.b32.xlu0 %v2613, 1
  %v2835 = vpop.permute.xlu0 %2834
  %2836 = vrot.lane.b32.xlu0 %v2618, 1
  %v2837 = vpop.permute.xlu0 %2836
  %v2838 = vmul.f32 %v2827, %v715
  %v2839 = vmul.f32 %v2829, %v715
  %v2840 = vmul.f32 %v2831, %v715
  %v2841 = vmul.f32 %v2833, %v715
  %v2842 = vmul.f32 %v2835, %v715
  %v2843 = vmul.f32 %v2837, %v715
  %2844 = vset.pattern.permute.xlu0 3
  %2845 = vperm.xlu0 %2844, %v2622
  %v2846 = vpop.permute.xlu0 %2845
  %2848 = vset.pattern.permute.xlu0 3
  %2849 = vperm.xlu0 %2848, %v2623
  %v2850 = vpop.permute.xlu0 %2849
  %2852 = vset.pattern.permute.xlu0 3
  %2853 = vperm.xlu0 %2852, %v2624
  %v2854 = vpop.permute.xlu0 %2853
  %2856 = vset.pattern.permute.xlu0 3
  %2857 = vperm.xlu0 %2856, %v2625
  %v2858 = vpop.permute.xlu0 %2857
  %2860 = vset.pattern.permute.xlu0 3
  %2861 = vperm.xlu0 %2860, %v2626
  %v2862 = vpop.permute.xlu0 %2861
  %2864 = vset.pattern.permute.xlu0 3
  %2865 = vperm.xlu0 %2864, %v2627
  %v2866 = vpop.permute.xlu0 %2865
  %v2868 = vmul.f32 %v2838, %v2846
  %v2869 = vmul.f32 %v2839, %v2850
  %v2870 = vmul.f32 %v2840, %v2854
  %v2871 = vmul.f32 %v2841, %v2858
  %v2872 = vmul.f32 %v2842, %v2862
  %v2873 = vmul.f32 %v2843, %v2866
  %v2874 = vadd.f32 %v2820, %v2868
  %v2875 = vadd.f32 %v2821, %v2869
  %v2876 = vadd.f32 %v2822, %v2870
  %v2877 = vadd.f32 %v2823, %v2871
  %v2878 = vadd.f32 %v2824, %v2872
  %v2879 = vadd.f32 %v2825, %v2873
  %2880 = vrot.lane.b32.xlu0 %v2593, 127
  %v2881 = vpop.permute.xlu0 %2880
  %2882 = vrot.lane.b32.xlu0 %v2598, 127
  %v2883 = vpop.permute.xlu0 %2882
  %2884 = vrot.lane.b32.xlu0 %v2603, 127
  %v2885 = vpop.permute.xlu0 %2884
  %2886 = vrot.lane.b32.xlu0 %v2608, 127
  %v2887 = vpop.permute.xlu0 %2886
  %2888 = vrot.lane.b32.xlu0 %v2613, 127
  %v2889 = vpop.permute.xlu0 %2888
  %2890 = vrot.lane.b32.xlu0 %v2618, 127
  %v2891 = vpop.permute.xlu0 %2890
  %v2892 = vmul.f32 %v2881, %v775
  %v2893 = vmul.f32 %v2883, %v775
  %v2894 = vmul.f32 %v2885, %v775
  %v2895 = vmul.f32 %v2887, %v775
  %v2896 = vmul.f32 %v2889, %v775
  %v2897 = vmul.f32 %v2891, %v775
  %2898 = vset.pattern.permute.xlu0 5
  %2899 = vperm.xlu0 %2898, %v2622
  %v2900 = vpop.permute.xlu0 %2899
  %2902 = vset.pattern.permute.xlu0 5
  %2903 = vperm.xlu0 %2902, %v2623
  %v2904 = vpop.permute.xlu0 %2903
  %2906 = vset.pattern.permute.xlu0 5
  %2907 = vperm.xlu0 %2906, %v2624
  %v2908 = vpop.permute.xlu0 %2907
  %2910 = vset.pattern.permute.xlu0 5
  %2911 = vperm.xlu0 %2910, %v2625
  %v2912 = vpop.permute.xlu0 %2911
  %2914 = vset.pattern.permute.xlu0 5
  %2915 = vperm.xlu0 %2914, %v2626
  %v2916 = vpop.permute.xlu0 %2915
  %2918 = vset.pattern.permute.xlu0 5
  %2919 = vperm.xlu0 %2918, %v2627
  %v2920 = vpop.permute.xlu0 %2919
  %v2922 = vmul.f32 %v2892, %v2900
  %v2923 = vmul.f32 %v2893, %v2904
  %v2924 = vmul.f32 %v2894, %v2908
  %v2925 = vmul.f32 %v2895, %v2912
  %v2926 = vmul.f32 %v2896, %v2916
  %v2927 = vmul.f32 %v2897, %v2920
  %v2928 = vadd.f32 %v2874, %v2922
  %v2929 = vadd.f32 %v2875, %v2923
  %v2930 = vadd.f32 %v2876, %v2924
  %v2931 = vadd.f32 %v2877, %v2925
  %v2932 = vadd.f32 %v2878, %v2926
  %v2933 = vadd.f32 %v2879, %v2927
  %2934 = vrot.lane.b32.xlu0 %v2593, 121
  %v2935 = vpop.permute.xlu0 %2934
  %2936 = vrot.lane.b32.xlu0 %v2598, 121
  %v2937 = vpop.permute.xlu0 %2936
  %2938 = vrot.lane.b32.xlu0 %v2603, 121
  %v2939 = vpop.permute.xlu0 %2938
  %2940 = vrot.lane.b32.xlu0 %v2608, 121
  %v2941 = vpop.permute.xlu0 %2940
  %2942 = vrot.lane.b32.xlu0 %v2613, 121
  %v2943 = vpop.permute.xlu0 %2942
  %2944 = vrot.lane.b32.xlu0 %v2618, 121
  %v2945 = vpop.permute.xlu0 %2944
  %v2946 = vmul.f32 %v2935, %v835
  %v2947 = vmul.f32 %v2937, %v835
  %v2948 = vmul.f32 %v2939, %v835
  %v2949 = vmul.f32 %v2941, %v835
  %v2950 = vmul.f32 %v2943, %v835
  %v2951 = vmul.f32 %v2945, %v835
  %2952 = vset.pattern.permute.xlu0 6
  %2953 = vperm.xlu0 %2952, %v2622
  %v2954 = vpop.permute.xlu0 %2953
  %2956 = vset.pattern.permute.xlu0 6
  %2957 = vperm.xlu0 %2956, %v2623
  %v2958 = vpop.permute.xlu0 %2957
  %2960 = vset.pattern.permute.xlu0 6
  %2961 = vperm.xlu0 %2960, %v2624
  %v2962 = vpop.permute.xlu0 %2961
  %2964 = vset.pattern.permute.xlu0 6
  %2965 = vperm.xlu0 %2964, %v2625
  %v2966 = vpop.permute.xlu0 %2965
  %2968 = vset.pattern.permute.xlu0 6
  %2969 = vperm.xlu0 %2968, %v2626
  %v2970 = vpop.permute.xlu0 %2969
  %2972 = vset.pattern.permute.xlu0 6
  %2973 = vperm.xlu0 %2972, %v2627
  %v2974 = vpop.permute.xlu0 %2973
  %v2976 = vmul.f32 %v2946, %v2954
  %v2977 = vmul.f32 %v2947, %v2958
  %v2978 = vmul.f32 %v2948, %v2962
  %v2979 = vmul.f32 %v2949, %v2966
  %v2980 = vmul.f32 %v2950, %v2970
  %v2981 = vmul.f32 %v2951, %v2974
  %v2982 = vadd.f32 %v2928, %v2976
  %v2983 = vadd.f32 %v2929, %v2977
  %v2984 = vadd.f32 %v2930, %v2978
  %v2985 = vadd.f32 %v2931, %v2979
  %v2986 = vadd.f32 %v2932, %v2980
  %v2987 = vadd.f32 %v2933, %v2981
  %2988 = vrot.lane.b32.xlu0 %v2593, 120
  %v2989 = vpop.permute.xlu0 %2988
  %2990 = vrot.lane.b32.xlu0 %v2598, 120
  %v2991 = vpop.permute.xlu0 %2990
  %2992 = vrot.lane.b32.xlu0 %v2603, 120
  %v2993 = vpop.permute.xlu0 %2992
  %2994 = vrot.lane.b32.xlu0 %v2608, 120
  %v2995 = vpop.permute.xlu0 %2994
  %2996 = vrot.lane.b32.xlu0 %v2613, 120
  %v2997 = vpop.permute.xlu0 %2996
  %2998 = vrot.lane.b32.xlu0 %v2618, 120
  %v2999 = vpop.permute.xlu0 %2998
  %v3000 = vmul.f32 %v2989, %v895
  %v3001 = vmul.f32 %v2991, %v895
  %v3002 = vmul.f32 %v2993, %v895
  %v3003 = vmul.f32 %v2995, %v895
  %v3004 = vmul.f32 %v2997, %v895
  %v3005 = vmul.f32 %v2999, %v895
  %3006 = vset.pattern.permute.xlu0 7
  %3007 = vperm.xlu0 %3006, %v2622
  %v3008 = vpop.permute.xlu0 %3007
  %3010 = vset.pattern.permute.xlu0 7
  %3011 = vperm.xlu0 %3010, %v2623
  %v3012 = vpop.permute.xlu0 %3011
  %3014 = vset.pattern.permute.xlu0 7
  %3015 = vperm.xlu0 %3014, %v2624
  %v3016 = vpop.permute.xlu0 %3015
  %3018 = vset.pattern.permute.xlu0 7
  %3019 = vperm.xlu0 %3018, %v2625
  %v3020 = vpop.permute.xlu0 %3019
  %3022 = vset.pattern.permute.xlu0 7
  %3023 = vperm.xlu0 %3022, %v2626
  %v3024 = vpop.permute.xlu0 %3023
  %3026 = vset.pattern.permute.xlu0 7
  %3027 = vperm.xlu0 %3026, %v2627
  %v3028 = vpop.permute.xlu0 %3027
  %v3030 = vmul.f32 %v3000, %v3008
  %v3031 = vmul.f32 %v3001, %v3012
  %v3032 = vmul.f32 %v3002, %v3016
  %v3033 = vmul.f32 %v3003, %v3020
  %v3034 = vmul.f32 %v3004, %v3024
  %v3035 = vmul.f32 %v3005, %v3028
  %v3036 = vadd.f32 %v2982, %v3030
  %v3037 = vadd.f32 %v2983, %v3031
  %v3038 = vadd.f32 %v2984, %v3032
  %v3039 = vadd.f32 %v2985, %v3033
  %v3040 = vadd.f32 %v2986, %v3034
  %v3041 = vadd.f32 %v2987, %v3035
  %3042 = vrot.lane.b32.xlu0 %v2593, 119
  %v3043 = vpop.permute.xlu0 %3042
  %3044 = vrot.lane.b32.xlu0 %v2598, 119
  %v3045 = vpop.permute.xlu0 %3044
  %3046 = vrot.lane.b32.xlu0 %v2603, 119
  %v3047 = vpop.permute.xlu0 %3046
  %3048 = vrot.lane.b32.xlu0 %v2608, 119
  %v3049 = vpop.permute.xlu0 %3048
  %3050 = vrot.lane.b32.xlu0 %v2613, 119
  %v3051 = vpop.permute.xlu0 %3050
  %3052 = vrot.lane.b32.xlu0 %v2618, 119
  %v3053 = vpop.permute.xlu0 %3052
  %v3054 = vmul.f32 %v3043, %v955
  %v3055 = vmul.f32 %v3045, %v955
  %v3056 = vmul.f32 %v3047, %v955
  %v3057 = vmul.f32 %v3049, %v955
  %v3058 = vmul.f32 %v3051, %v955
  %v3059 = vmul.f32 %v3053, %v955
  %3060 = vset.pattern.permute.xlu0 8
  %3061 = vperm.xlu0 %3060, %v2622
  %v3062 = vpop.permute.xlu0 %3061
  %3064 = vset.pattern.permute.xlu0 8
  %3065 = vperm.xlu0 %3064, %v2623
  %v3066 = vpop.permute.xlu0 %3065
  %3068 = vset.pattern.permute.xlu0 8
  %3069 = vperm.xlu0 %3068, %v2624
  %v3070 = vpop.permute.xlu0 %3069
  %3072 = vset.pattern.permute.xlu0 8
  %3073 = vperm.xlu0 %3072, %v2625
  %v3074 = vpop.permute.xlu0 %3073
  %3076 = vset.pattern.permute.xlu0 8
  %3077 = vperm.xlu0 %3076, %v2626
  %v3078 = vpop.permute.xlu0 %3077
  %3080 = vset.pattern.permute.xlu0 8
  %3081 = vperm.xlu0 %3080, %v2627
  %v3082 = vpop.permute.xlu0 %3081
  %v3084 = vmul.f32 %v3054, %v3062
  %v3085 = vmul.f32 %v3055, %v3066
  %v3086 = vmul.f32 %v3056, %v3070
  %v3087 = vmul.f32 %v3057, %v3074
  %v3088 = vmul.f32 %v3058, %v3078
  %v3089 = vmul.f32 %v3059, %v3082
  %v3090 = vadd.f32 %v3036, %v3084
  %v3091 = vadd.f32 %v3037, %v3085
  %v3092 = vadd.f32 %v3038, %v3086
  %v3093 = vadd.f32 %v3039, %v3087
  %v3094 = vadd.f32 %v3040, %v3088
  %v3095 = vadd.f32 %v3041, %v3089
  %v3096 = vmul.f32 %v3090, %v73
  %v3097 = vmul.f32 %v3091, %v73
  %v3098 = vmul.f32 %v3090, %v78
  %v3099 = vmul.f32 %v3091, %v78
  %v3100 = vmul.f32 %v3092, %v73
  %v3101 = vmul.f32 %v3093, %v73
  %v3102 = vmul.f32 %v3092, %v78
  %v3103 = vmul.f32 %v3093, %v78
  %s3104 = scalar_lea.vmem %s11, 16
  %v3105 = vld [vmem:[%s3104] sm:$0xff]
  %v3106 = vld [vmem:[%s3104 + $0x8] sm:$0xff]
  %v3107 = vmul.f32 %v3096, %v3096
  %v3108 = vmul.f32 %v3097, %v3097
  %v3109 = vmul.f32 %v3098, %v3098
  %v3110 = vmul.f32 %v3099, %v3099
  %3111 = vadd.xlane.f32.xlu0 %v3107
  %v3112 = vpop.xlane.xlu0 %3111
  %3113 = vadd.xlane.f32.xlu0 %v3108
  %v3114 = vpop.xlane.xlu0 %3113
  %3115 = vadd.xlane.f32.xlu0 %v3109
  %v3116 = vpop.xlane.xlu0 %3115
  %3117 = vadd.xlane.f32.xlu0 %v3110
  %v3118 = vpop.xlane.xlu0 %3117
  %v3119 = vmax.f32 %v3112, 1e-24
  %v3120 = vmax.f32 %v3114, 1e-24
  %v3121 = vmax.f32 %v3116, 1e-24
  %v3122 = vmax.f32 %v3118, 1e-24
  %v3123 = vrsqrt.pop %v3119
  %v3124 = vrsqrt.pop %v3120
  %v3125 = vrsqrt.pop %v3121
  %v3126 = vrsqrt.pop %v3122
  %v3127 = vmul.f32 %v3096, %v3123
  %v3128 = vmul.f32 %v3097, %v3124
  %v3129 = vmul.f32 %v3098, %v3125
  %v3130 = vmul.f32 %v3099, %v3126
  %v3131 = vmul.f32 %v3100, %v3100
  %v3132 = vmul.f32 %v3101, %v3101
  %v3133 = vmul.f32 %v3102, %v3102
  %v3134 = vmul.f32 %v3103, %v3103
  %3135 = vadd.xlane.f32.xlu0 %v3131
  %v3136 = vpop.xlane.xlu0 %3135
  %3137 = vadd.xlane.f32.xlu0 %v3132
  %v3138 = vpop.xlane.xlu0 %3137
  %3139 = vadd.xlane.f32.xlu0 %v3133
  %v3140 = vpop.xlane.xlu0 %3139
  %3141 = vadd.xlane.f32.xlu0 %v3134
  %v3142 = vpop.xlane.xlu0 %3141
  %v3143 = vmax.f32 %v3136, 1e-24
  %v3144 = vmax.f32 %v3138, 1e-24
  %v3145 = vmax.f32 %v3140, 1e-24
  %v3146 = vmax.f32 %v3142, 1e-24
  %v3147 = vrsqrt.pop %v3143
  %v3148 = vrsqrt.pop %v3144
  %v3149 = vrsqrt.pop %v3145
  %v3150 = vrsqrt.pop %v3146
  %v3151 = vmul.f32 %v3100, %v3147
  %v3152 = vmul.f32 %v3101, %v3148
  %v3153 = vmul.f32 %v3102, %v3149
  %v3154 = vmul.f32 %v3103, %v3150
  %3155 = vmatprep.subr.mxu0 0.0
  %3156 = vmatpush1.xpose.msra.mxu0 0.0
  %3157 = vmatprep.subr.mxu0 0.0
  %3158 = vmatpush1.xpose.msra.mxu0 0.0
  %3159 = vmatprep.subr.mxu0 0.0
  %3160 = vmatpush1.xpose.msra.mxu0 0.0
  %3161 = vmatprep.subr.mxu0 0.0
  %3162 = vmatpush1.xpose.msra.mxu0 0.0
  %3163 = vmatprep.subr.mxu0 0.0
  %3164 = vmatpush1.xpose.msra.mxu0 0.0
  %3165 = vmatprep.subr.mxu0 0.0
  %3166 = vmatpush1.xpose.msra.mxu0 0.0
  %3167 = vmatprep.subr.mxu0 0.0
  %3168 = vmatpush1.xpose.msra.mxu0 0.0
  %3169 = vmatprep.subr.mxu0 0.0
  %3170 = vmatpush1.xpose.msra.mxu0 0.0
  %3171 = vmatprep.subr.mxu0 0.0
  %3172 = vmatpush1.xpose.msra.mxu0 0.0
  %3173 = vmatprep.subr.mxu0 0.0
  %3174 = vmatpush1.xpose.msra.mxu0 0.0
  %3175 = vmatprep.subr.mxu0 0.0
  %3176 = vmatpush1.xpose.msra.mxu0 0.0
  %3177 = vmatprep.subr.mxu0 0.0
  %3178 = vmatpush1.xpose.msra.mxu0 0.0
  %3179 = vmatprep.subr.mxu0 0.0
  %3180 = vmatpush1.xpose.msra.mxu0 %v3154
  %3181 = vmatprep.subr.mxu0 0.0
  %3182 = vmatpush1.xpose.msra.mxu0 %v3153
  %3183 = vmatprep.subr.mxu0 0.0
  %3184 = vmatpush1.xpose.msra.mxu0 %v3152
  %3185 = vmatprep.subr.mxu0 0.0
  %3186 = vmatpush1.xpose.msra.mxu0 %v3151
  %3187 = vmatprep.subr.mxu0 0.0
  %3188 = vmatpush2.xpose.msra.mxu0 0.0
  %3189 = vmatprep.subr.mxu0 0.0
  %3190 = vmatpush2.xpose.msra.mxu0 0.0
  %3191 = vmatprep.subr.mxu0 0.0
  %3192 = vmatpush2.xpose.msra.mxu0 0.0
  %3193 = vmatprep.subr.mxu0 0.0
  %3194 = vmatpush2.xpose.msra.mxu0 0.0
  %3195 = vmatprep.subr.mxu0 0.0
  %3196 = vmatpush2.xpose.msra.mxu0 0.0
  %3197 = vmatprep.subr.mxu0 0.0
  %3198 = vmatpush2.xpose.msra.mxu0 0.0
  %3199 = vmatprep.subr.mxu0 0.0
  %3200 = vmatpush2.xpose.msra.mxu0 0.0
  %3201 = vmatprep.subr.mxu0 0.0
  %3202 = vmatpush2.xpose.msra.mxu0 0.0
  %3203 = vmatprep.subr.mxu0 0.0
  %3204 = vmatpush2.xpose.msra.mxu0 0.0
  %3205 = vmatprep.subr.mxu0 0.0
  %3206 = vmatpush2.xpose.msra.mxu0 0.0
  %3207 = vmatprep.subr.mxu0 0.0
  %3208 = vmatpush2.xpose.msra.mxu0 0.0
  %3209 = vmatprep.subr.mxu0 0.0
  %3210 = vmatpush2.xpose.msra.mxu0 0.0
  %3211 = vmatprep.subr.mxu0 0.0
  %3212 = vmatpush2.xpose.msra.mxu0 0.0
  %3213 = vmatprep.subr.mxu0 0.0
  %3214 = vmatpush2.xpose.msra.mxu0 0.0
  %3215 = vmatprep.subr.mxu0 0.0
  %3216 = vmatpush2.xpose.msra.mxu0 0.0
  %3217 = vmatprep.subr.mxu0 0.0
  %3218 = vmatpush2.xpose.msra.mxu0 0.0
  %3219 = vmatprep.mubr.f32.mxu0 0.0
  %3220 = vmatmul.mubr.f32.gmra.mxu0 %v3127
  %v3221 = vpop.f32.mrf.mxu0
  %v3222 = vadd.f32 0.0, %v3221
  %v3223 = vpop.f32.mrf.mxu0
  %3224 = vmatprep.mubr.f32.mxu0 0.0
  %3225 = vmatmul.mubr.f32.gmra.mxu0 %v3128
  %v3226 = vpop.f32.mrf.mxu0
  %v3227 = vadd.f32 0.0, %v3226
  %v3228 = vpop.f32.mrf.mxu0
  %3229 = vmatprep.mubr.f32.mxu0 0.0
  %3230 = vmatmul.mubr.f32.gmra.mxu0 %v3129
  %v3231 = vpop.f32.mrf.mxu0
  %v3232 = vadd.f32 0.0, %v3231
  %v3233 = vpop.f32.mrf.mxu0
  %3234 = vmatprep.mubr.f32.mxu0 0.0
  %3235 = vmatmul.mubr.f32.gmra.mxu0 %v3130
  %v3236 = vpop.f32.mrf.mxu0
  %v3237 = vadd.f32 0.0, %v3236
  %v3238 = vpop.f32.mrf.mxu0
  %3239 = vdwg.mxu0
  %3241 = vset.pattern.permute.xlu0 0
  %3242 = vperm.xlu0 %3241, %v3105
  %v3243 = vpop.permute.xlu0 %3242
  %3246 = vset.pattern.permute.xlu0 0
  %3247 = vperm.xlu0 %3246, %v3106
  %v3248 = vpop.permute.xlu0 %3247
  %v3250 = vmul.f32 %v3222, %v3243
  %v3251 = vmul.f32 %v3227, %v3248
  %v3252 = vmul.f32 %v3232, %v3243
  %v3253 = vmul.f32 %v3237, %v3248
  %v3254 = vadd.f32 %v3250, %v130
  %v3255 = vadd.f32 %v3251, %v131
  %v3256 = vadd.f32 %v3252, %v132
  %v3257 = vadd.f32 %v3253, %v133
  %v3258 = vsel %vm1160, %v3254, -inf
  %3259 = vmax.xlane.f32.xlu0 %v3258
  %v3260 = vpop.xlane.xlu0 %3259
  %v3261 = vsel %vm1160, %v3255, -inf
  %3262 = vmax.xlane.f32.xlu0 %v3261
  %v3263 = vpop.xlane.xlu0 %3262
  %v3264 = vsel %vm1160, %v3256, -inf
  %3265 = vmax.xlane.f32.xlu0 %v3264
  %v3266 = vpop.xlane.xlu0 %3265
  %v3267 = vsel %vm1160, %v3257, -inf
  %3268 = vmax.xlane.f32.xlu0 %v3267
  %v3269 = vpop.xlane.xlu0 %3268
  %v3270 = vsub.f32 %v3254, %v3260
  %v3271 = vsub.f32 %v3255, %v3263
  %v3272 = vsub.f32 %v3256, %v3266
  %v3273 = vsub.f32 %v3257, %v3269
  %v3274 = vmul.f32 %v3270, 1.442695
  %v3275 = vpow.pop %v3274
  %v3276 = vmul.f32 %v3271, 1.442695
  %v3277 = vpow.pop %v3276
  %v3278 = vmul.f32 %v3272, 1.442695
  %v3279 = vpow.pop %v3278
  %v3280 = vmul.f32 %v3273, 1.442695
  %v3281 = vpow.pop %v3280
  %v3282 = vsel %vm1160, %v3275, 0.0
  %3283 = vadd.xlane.f32.xlu0 %v3282
  %v3284 = vpop.xlane.xlu0 %3283
  %v3285 = vsel %vm1160, %v3277, 0.0
  %3286 = vadd.xlane.f32.xlu0 %v3285
  %v3287 = vpop.xlane.xlu0 %3286
  %v3288 = vsel %vm1160, %v3279, 0.0
  %3289 = vadd.xlane.f32.xlu0 %v3288
  %v3290 = vpop.xlane.xlu0 %3289
  %v3291 = vsel %vm1160, %v3281, 0.0
  %3292 = vadd.xlane.f32.xlu0 %v3291
  %v3293 = vpop.xlane.xlu0 %3292
  %v3294 = vrcp.pop %v3284
  %v3295 = vrcp.pop %v3287
  %v3296 = vrcp.pop %v3290
  %v3297 = vrcp.pop %v3293
  %v3298 = vmul.f32 %v3275, %v3294
  %v3299 = vmul.f32 %v3277, %v3295
  %v3300 = vmul.f32 %v3279, %v3296
  %v3301 = vmul.f32 %v3281, %v3297
  %v3303 = vsel %vm1160, %v3298, 0
  %v3306 = vsel %vm1160, %v3299, 0
  %v3309 = vsel %vm1160, %v3300, 0
  %v3312 = vsel %vm1160, %v3301, 0
  %3314 = vmatprep.subr.mxu0 0.0
  %3315 = vmatpush1.msra.mxu0 0.0
  %3316 = vmatprep.subr.mxu0 0.0
  %3317 = vmatpush1.msra.mxu0 0.0
  %3318 = vmatprep.subr.mxu0 0.0
  %3319 = vmatpush1.msra.mxu0 0.0
  %3320 = vmatprep.subr.mxu0 0.0
  %3321 = vmatpush1.msra.mxu0 0.0
  %3322 = vmatprep.subr.mxu0 0.0
  %3323 = vmatpush1.msra.mxu0 0.0
  %3324 = vmatprep.subr.mxu0 0.0
  %3325 = vmatpush1.msra.mxu0 0.0
  %3326 = vmatprep.subr.mxu0 0.0
  %3327 = vmatpush1.msra.mxu0 0.0
  %3328 = vmatprep.subr.mxu0 0.0
  %3329 = vmatpush1.msra.mxu0 0.0
  %3330 = vmatprep.subr.mxu0 0.0
  %3331 = vmatpush1.msra.mxu0 0.0
  %3332 = vmatprep.subr.mxu0 0.0
  %3333 = vmatpush1.msra.mxu0 0.0
  %3334 = vmatprep.subr.mxu0 0.0
  %3335 = vmatpush1.msra.mxu0 0.0
  %3336 = vmatprep.subr.mxu0 0.0
  %3337 = vmatpush1.msra.mxu0 0.0
  %3338 = vmatprep.subr.mxu0 0.0
  %3339 = vmatpush1.msra.mxu0 %v3095
  %3340 = vmatprep.subr.mxu0 0.0
  %3341 = vmatpush1.msra.mxu0 %v3094
  %3342 = vmatprep.subr.mxu0 0.0
  %3343 = vmatpush1.msra.mxu0 %v3095
  %3344 = vmatprep.subr.mxu0 0.0
  %3345 = vmatpush1.msra.mxu0 %v3094
  %3346 = vmatprep.subr.mxu0 0.0
  %3347 = vmatpush2.msra.mxu0 0.0
  %3348 = vmatprep.subr.mxu0 0.0
  %3349 = vmatpush2.msra.mxu0 0.0
  %3350 = vmatprep.subr.mxu0 0.0
  %3351 = vmatpush2.msra.mxu0 0.0
  %3352 = vmatprep.subr.mxu0 0.0
  %3353 = vmatpush2.msra.mxu0 0.0
  %3354 = vmatprep.subr.mxu0 0.0
  %3355 = vmatpush2.msra.mxu0 0.0
  %3356 = vmatprep.subr.mxu0 0.0
  %3357 = vmatpush2.msra.mxu0 0.0
  %3358 = vmatprep.subr.mxu0 0.0
  %3359 = vmatpush2.msra.mxu0 0.0
  %3360 = vmatprep.subr.mxu0 0.0
  %3361 = vmatpush2.msra.mxu0 0.0
  %3362 = vmatprep.subr.mxu0 0.0
  %3363 = vmatpush2.msra.mxu0 0.0
  %3364 = vmatprep.subr.mxu0 0.0
  %3365 = vmatpush2.msra.mxu0 0.0
  %3366 = vmatprep.subr.mxu0 0.0
  %3367 = vmatpush2.msra.mxu0 0.0
  %3368 = vmatprep.subr.mxu0 0.0
  %3369 = vmatpush2.msra.mxu0 0.0
  %3370 = vmatprep.subr.mxu0 0.0
  %3371 = vmatpush2.msra.mxu0 0.0
  %3372 = vmatprep.subr.mxu0 0.0
  %3373 = vmatpush2.msra.mxu0 0.0
  %3374 = vmatprep.subr.mxu0 0.0
  %3375 = vmatpush2.msra.mxu0 0.0
  %3376 = vmatprep.subr.mxu0 0.0
  %3377 = vmatpush2.msra.mxu0 0.0
  %3378 = vmatprep.mubr.f32.mxu0 0.0
  %3379 = vmatmul.mubr.f32.gmra.mxu0 %v3303
  %v3380 = vpop.f32.mrf.mxu0
  %v3381 = vadd.f32 0.0, %v3380
  %v3382 = vpop.f32.mrf.mxu0
  %3383 = vmatprep.mubr.f32.mxu0 0.0
  %3384 = vmatmul.mubr.f32.gmra.mxu0 %v3306
  %v3385 = vpop.f32.mrf.mxu0
  %v3386 = vadd.f32 0.0, %v3385
  %v3387 = vpop.f32.mrf.mxu0
  %3388 = vmatprep.mubr.f32.mxu0 0.0
  %3389 = vmatmul.mubr.f32.gmra.mxu0 %v3309
  %v3390 = vpop.f32.mrf.mxu0
  %v3391 = vadd.f32 0.0, %v3390
  %v3392 = vpop.f32.mrf.mxu0
  %3393 = vmatprep.mubr.f32.mxu0 0.0
  %3394 = vmatmul.mubr.f32.gmra.mxu0 %v3312
  %v3395 = vpop.f32.mrf.mxu0
  %v3396 = vadd.f32 0.0, %v3395
  %v3397 = vpop.f32.mrf.mxu0
  %3398 = vdwg.mxu0
  %v3399 = vmul.f32 %v3381, %v73
  %v3400 = vmul.f32 %v3386, %v73
  %v3401 = vmul.f32 %v3391, %v78
  %v3402 = vmul.f32 %v3396, %v78
  %v3403 = vadd.f32 %v3399, %v3401
  %v3404 = vadd.f32 %v3400, %v3402
  %s3405 = scalar_lea.vmem %s12, 16
  %v3406 = vld [vmem:[%s3405] sm:$0xff]
  %v3407 = vld [vmem:[%s3405 + $0x8] sm:$0xff]
  %v3409 = vsel %vm142, %v3406, 0
  %v3412 = vsel %vm142, %v3407, 0
  %3414 = vmatprep.subr.mxu0 0.0
  %3415 = vmatpush1.msra.mxu0 0.0
  %3416 = vmatprep.subr.mxu0 0.0
  %3417 = vmatpush1.msra.mxu0 0.0
  %3418 = vmatprep.subr.mxu0 0.0
  %3419 = vmatpush1.msra.mxu0 0.0
  %3420 = vmatprep.subr.mxu0 0.0
  %3421 = vmatpush1.msra.mxu0 0.0
  %3422 = vmatprep.subr.mxu0 0.0
  %3423 = vmatpush1.msra.mxu0 0.0
  %3424 = vmatprep.subr.mxu0 0.0
  %3425 = vmatpush1.msra.mxu0 0.0
  %3426 = vmatprep.subr.mxu0 0.0
  %3427 = vmatpush1.msra.mxu0 0.0
  %3428 = vmatprep.subr.mxu0 0.0
  %3429 = vmatpush1.msra.mxu0 0.0
  %3430 = vmatprep.subr.mxu0 0.0
  %3431 = vmatpush1.msra.mxu0 0.0
  %3432 = vmatprep.subr.mxu0 0.0
  %3433 = vmatpush1.msra.mxu0 0.0
  %3434 = vmatprep.subr.mxu0 0.0
  %3435 = vmatpush1.msra.mxu0 0.0
  %3436 = vmatprep.subr.mxu0 0.0
  %3437 = vmatpush1.msra.mxu0 0.0
  %3438 = vmatprep.subr.mxu0 0.0
  %3439 = vmatpush1.msra.mxu0 0.0
  %3440 = vmatprep.subr.mxu0 0.0
  %3441 = vmatpush1.msra.mxu0 0.0
  %3442 = vmatprep.subr.mxu0 0.0
  %3443 = vmatpush1.msra.mxu0 %v3404
  %3444 = vmatprep.subr.mxu0 0.0
  %3445 = vmatpush1.msra.mxu0 %v3403
  %3446 = vmatprep.subr.mxu0 0.0
  %3447 = vmatpush2.msra.mxu0 0.0
  %3448 = vmatprep.subr.mxu0 0.0
  %3449 = vmatpush2.msra.mxu0 0.0
  %3450 = vmatprep.subr.mxu0 0.0
  %3451 = vmatpush2.msra.mxu0 0.0
  %3452 = vmatprep.subr.mxu0 0.0
  %3453 = vmatpush2.msra.mxu0 0.0
  %3454 = vmatprep.subr.mxu0 0.0
  %3455 = vmatpush2.msra.mxu0 0.0
  %3456 = vmatprep.subr.mxu0 0.0
  %3457 = vmatpush2.msra.mxu0 0.0
  %3458 = vmatprep.subr.mxu0 0.0
  %3459 = vmatpush2.msra.mxu0 0.0
  %3460 = vmatprep.subr.mxu0 0.0
  %3461 = vmatpush2.msra.mxu0 0.0
  %3462 = vmatprep.subr.mxu0 0.0
  %3463 = vmatpush2.msra.mxu0 0.0
  %3464 = vmatprep.subr.mxu0 0.0
  %3465 = vmatpush2.msra.mxu0 0.0
  %3466 = vmatprep.subr.mxu0 0.0
  %3467 = vmatpush2.msra.mxu0 0.0
  %3468 = vmatprep.subr.mxu0 0.0
  %3469 = vmatpush2.msra.mxu0 0.0
  %3470 = vmatprep.subr.mxu0 0.0
  %3471 = vmatpush2.msra.mxu0 0.0
  %3472 = vmatprep.subr.mxu0 0.0
  %3473 = vmatpush2.msra.mxu0 0.0
  %3474 = vmatprep.subr.mxu0 0.0
  %3475 = vmatpush2.msra.mxu0 0.0
  %3476 = vmatprep.subr.mxu0 0.0
  %3477 = vmatpush2.msra.mxu0 0.0
  %3478 = vmatprep.mubr.f32.mxu0 0.0
  %3479 = vmatmul.mubr.f32.gmra.mxu0 %v3409
  %v3480 = vpop.f32.mrf.mxu0
  %v3481 = vadd.f32 0.0, %v3480
  %v3482 = vpop.f32.mrf.mxu0
  %3483 = vmatprep.mubr.f32.mxu0 0.0
  %3484 = vmatmul.mubr.f32.gmra.mxu0 %v3412
  %v3485 = vpop.f32.mrf.mxu0
  %v3486 = vadd.f32 0.0, %v3485
  %v3487 = vpop.f32.mrf.mxu0
  %3488 = vdwg.mxu0
  %v3489 = vadd.f32 %v2445, %v3481
  %v3490 = vadd.f32 %v2446, %v3486
  %s3491 = scalar_lea.vmem %s13, 16
  %v3492 = vld [vmem:[%s3491] sm:$0xff]
  %v3493 = vld [vmem:[%s3491 + $0x8] sm:$0xff]
  %s3494 = scalar_lea.vmem %s14, 16
  %v3495 = vld [vmem:[%s3494] sm:$0xff]
  %v3496 = vld [vmem:[%s3494 + $0x8] sm:$0xff]
  %v3497 = vadd.f32 %v3489, %v3490
  %v3498 = vrot.slane %v3497, 4
  %v3499 = vadd.f32 %v3497, %v3498
  %v3500 = vrot.slane %v3499, 2
  %v3501 = vadd.f32 %v3499, %v3500
  %v3502 = vrot.slane %v3501, 1
  %v3503 = vadd.f32 %v3501, %v3502
  %v3504 = vmul.f32 %v3503, %v316
  %v3505 = vsub.f32 %v3489, %v3504
  %v3506 = vsub.f32 %v3490, %v3504
  %v3507 = vmul.f32 %v3505, %v3505
  %v3508 = vmul.f32 %v3506, %v3506
  %v3509 = vadd.f32 %v3507, %v3508
  %v3510 = vrot.slane %v3509, 4
  %v3511 = vadd.f32 %v3509, %v3510
  %v3512 = vrot.slane %v3511, 2
  %v3513 = vadd.f32 %v3511, %v3512
  %v3514 = vrot.slane %v3513, 1
  %v3515 = vadd.f32 %v3513, %v3514
  %v3516 = vmul.f32 %v3515, %v316
  %v3517 = vadd.f32 %v3516, 1e-05
  %v3518 = vrsqrt.pop %v3517
  %v3519 = vmul.f32 %v3505, %v3518
  %v3520 = vmul.f32 %v3506, %v3518
  %3522 = vset.pattern.permute.xlu0 0
  %3523 = vperm.xlu0 %3522, %v3492
  %v3524 = vpop.permute.xlu0 %3523
  %3527 = vset.pattern.permute.xlu0 0
  %3528 = vperm.xlu0 %3527, %v3493
  %v3529 = vpop.permute.xlu0 %3528
  %v3531 = vmul.f32 %v3519, %v3524
  %v3532 = vmul.f32 %v3520, %v3529
  %3534 = vset.pattern.permute.xlu0 0
  %3535 = vperm.xlu0 %3534, %v3495
  %v3536 = vpop.permute.xlu0 %3535
  %3539 = vset.pattern.permute.xlu0 0
  %3540 = vperm.xlu0 %3539, %v3496
  %v3541 = vpop.permute.xlu0 %3540
  %v3543 = vadd.f32 %v3531, %v3536
  %v3544 = vadd.f32 %v3532, %v3541
  %s3545 = scalar_lea.vmem %s15, 64
  %v3546 = vld [vmem:[%s3545] sm:$0xff]
  %v3547 = vld [vmem:[%s3545 + $0x8] sm:$0xff]
  %v3548 = vld [vmem:[%s3545 + $0x10] sm:$0xff]
  %v3549 = vld [vmem:[%s3545 + $0x18] sm:$0xff]
  %v3550 = vld [vmem:[%s3545 + $0x20] sm:$0xff]
  %v3551 = vld [vmem:[%s3545 + $0x28] sm:$0xff]
  %v3552 = vld [vmem:[%s3545 + $0x30] sm:$0xff]
  %v3553 = vld [vmem:[%s3545 + $0x38] sm:$0xff]
  %v3555 = vsel %vm142, %v3546, 0
  %v3558 = vsel %vm142, %v3547, 0
  %v3561 = vsel %vm142, %v3548, 0
  %v3564 = vsel %vm142, %v3549, 0
  %v3567 = vsel %vm142, %v3550, 0
  %v3570 = vsel %vm142, %v3551, 0
  %v3573 = vsel %vm142, %v3552, 0
  %v3576 = vsel %vm142, %v3553, 0
  %3578 = vmatprep.subr.mxu0 0.0
  %3579 = vmatpush1.msra.mxu0 0.0
  %3580 = vmatprep.subr.mxu0 0.0
  %3581 = vmatpush1.msra.mxu0 0.0
  %3582 = vmatprep.subr.mxu0 0.0
  %3583 = vmatpush1.msra.mxu0 0.0
  %3584 = vmatprep.subr.mxu0 0.0
  %3585 = vmatpush1.msra.mxu0 0.0
  %3586 = vmatprep.subr.mxu0 0.0
  %3587 = vmatpush1.msra.mxu0 0.0
  %3588 = vmatprep.subr.mxu0 0.0
  %3589 = vmatpush1.msra.mxu0 0.0
  %3590 = vmatprep.subr.mxu0 0.0
  %3591 = vmatpush1.msra.mxu0 0.0
  %3592 = vmatprep.subr.mxu0 0.0
  %3593 = vmatpush1.msra.mxu0 0.0
  %3594 = vmatprep.subr.mxu0 0.0
  %3595 = vmatpush1.msra.mxu0 0.0
  %3596 = vmatprep.subr.mxu0 0.0
  %3597 = vmatpush1.msra.mxu0 0.0
  %3598 = vmatprep.subr.mxu0 0.0
  %3599 = vmatpush1.msra.mxu0 0.0
  %3600 = vmatprep.subr.mxu0 0.0
  %3601 = vmatpush1.msra.mxu0 0.0
  %3602 = vmatprep.subr.mxu0 0.0
  %3603 = vmatpush1.msra.mxu0 0.0
  %3604 = vmatprep.subr.mxu0 0.0
  %3605 = vmatpush1.msra.mxu0 0.0
  %3606 = vmatprep.subr.mxu0 0.0
  %3607 = vmatpush1.msra.mxu0 %v3544
  %3608 = vmatprep.subr.mxu0 0.0
  %3609 = vmatpush1.msra.mxu0 %v3543
  %3610 = vmatprep.subr.mxu0 0.0
  %3611 = vmatpush2.msra.mxu0 0.0
  %3612 = vmatprep.subr.mxu0 0.0
  %3613 = vmatpush2.msra.mxu0 0.0
  %3614 = vmatprep.subr.mxu0 0.0
  %3615 = vmatpush2.msra.mxu0 0.0
  %3616 = vmatprep.subr.mxu0 0.0
  %3617 = vmatpush2.msra.mxu0 0.0
  %3618 = vmatprep.subr.mxu0 0.0
  %3619 = vmatpush2.msra.mxu0 0.0
  %3620 = vmatprep.subr.mxu0 0.0
  %3621 = vmatpush2.msra.mxu0 0.0
  %3622 = vmatprep.subr.mxu0 0.0
  %3623 = vmatpush2.msra.mxu0 0.0
  %3624 = vmatprep.subr.mxu0 0.0
  %3625 = vmatpush2.msra.mxu0 0.0
  %3626 = vmatprep.subr.mxu0 0.0
  %3627 = vmatpush2.msra.mxu0 0.0
  %3628 = vmatprep.subr.mxu0 0.0
  %3629 = vmatpush2.msra.mxu0 0.0
  %3630 = vmatprep.subr.mxu0 0.0
  %3631 = vmatpush2.msra.mxu0 0.0
  %3632 = vmatprep.subr.mxu0 0.0
  %3633 = vmatpush2.msra.mxu0 0.0
  %3634 = vmatprep.subr.mxu0 0.0
  %3635 = vmatpush2.msra.mxu0 0.0
  %3636 = vmatprep.subr.mxu0 0.0
  %3637 = vmatpush2.msra.mxu0 0.0
  %3638 = vmatprep.subr.mxu0 0.0
  %3639 = vmatpush2.msra.mxu0 0.0
  %3640 = vmatprep.subr.mxu0 0.0
  %3641 = vmatpush2.msra.mxu0 0.0
  %3642 = vmatprep.mubr.f32.mxu0 0.0
  %3643 = vmatmul.mubr.f32.gmra.mxu0 %v3555
  %v3644 = vpop.f32.mrf.mxu0
  %v3645 = vadd.f32 0.0, %v3644
  %v3646 = vpop.f32.mrf.mxu0
  %3647 = vmatprep.mubr.f32.mxu0 0.0
  %3648 = vmatmul.mubr.f32.gmra.mxu0 %v3558
  %v3649 = vpop.f32.mrf.mxu0
  %v3650 = vadd.f32 0.0, %v3649
  %v3651 = vpop.f32.mrf.mxu0
  %3652 = vmatprep.mubr.f32.mxu0 0.0
  %3653 = vmatmul.mubr.f32.gmra.mxu0 %v3561
  %v3654 = vpop.f32.mrf.mxu0
  %v3655 = vadd.f32 0.0, %v3654
  %v3656 = vpop.f32.mrf.mxu0
  %3657 = vmatprep.mubr.f32.mxu0 0.0
  %3658 = vmatmul.mubr.f32.gmra.mxu0 %v3564
  %v3659 = vpop.f32.mrf.mxu0
  %v3660 = vadd.f32 0.0, %v3659
  %v3661 = vpop.f32.mrf.mxu0
  %3662 = vmatprep.mubr.f32.mxu0 0.0
  %3663 = vmatmul.mubr.f32.gmra.mxu0 %v3567
  %v3664 = vpop.f32.mrf.mxu0
  %v3665 = vadd.f32 0.0, %v3664
  %v3666 = vpop.f32.mrf.mxu0
  %3667 = vmatprep.mubr.f32.mxu0 0.0
  %3668 = vmatmul.mubr.f32.gmra.mxu0 %v3570
  %v3669 = vpop.f32.mrf.mxu0
  %v3670 = vadd.f32 0.0, %v3669
  %v3671 = vpop.f32.mrf.mxu0
  %3672 = vmatprep.mubr.f32.mxu0 0.0
  %3673 = vmatmul.mubr.f32.gmra.mxu0 %v3573
  %v3674 = vpop.f32.mrf.mxu0
  %v3675 = vadd.f32 0.0, %v3674
  %v3676 = vpop.f32.mrf.mxu0
  %3677 = vmatprep.mubr.f32.mxu0 0.0
  %3678 = vmatmul.mubr.f32.gmra.mxu0 %v3576
  %v3679 = vpop.f32.mrf.mxu0
  %v3680 = vadd.f32 0.0, %v3679
  %v3681 = vpop.f32.mrf.mxu0
  %3682 = vdwg.mxu0
  %s3683 = scalar_lea.vmem %s16, 64
  %v3684 = vld [vmem:[%s3683] sm:$0xff]
  %v3685 = vld [vmem:[%s3683 + $0x8] sm:$0xff]
  %v3686 = vld [vmem:[%s3683 + $0x10] sm:$0xff]
  %v3687 = vld [vmem:[%s3683 + $0x18] sm:$0xff]
  %v3688 = vld [vmem:[%s3683 + $0x20] sm:$0xff]
  %v3689 = vld [vmem:[%s3683 + $0x28] sm:$0xff]
  %v3690 = vld [vmem:[%s3683 + $0x30] sm:$0xff]
  %v3691 = vld [vmem:[%s3683 + $0x38] sm:$0xff]
  %3693 = vset.pattern.permute.xlu0 4
  %3694 = vperm.xlu0 %3693, %v3684
  %v3695 = vpop.permute.xlu0 %3694
  %3698 = vset.pattern.permute.xlu0 4
  %3699 = vperm.xlu0 %3698, %v3685
  %v3700 = vpop.permute.xlu0 %3699
  %3703 = vset.pattern.permute.xlu0 4
  %3704 = vperm.xlu0 %3703, %v3686
  %v3705 = vpop.permute.xlu0 %3704
  %3708 = vset.pattern.permute.xlu0 4
  %3709 = vperm.xlu0 %3708, %v3687
  %v3710 = vpop.permute.xlu0 %3709
  %3713 = vset.pattern.permute.xlu0 4
  %3714 = vperm.xlu0 %3713, %v3688
  %v3715 = vpop.permute.xlu0 %3714
  %3718 = vset.pattern.permute.xlu0 4
  %3719 = vperm.xlu0 %3718, %v3689
  %v3720 = vpop.permute.xlu0 %3719
  %3723 = vset.pattern.permute.xlu0 4
  %3724 = vperm.xlu0 %3723, %v3690
  %v3725 = vpop.permute.xlu0 %3724
  %3728 = vset.pattern.permute.xlu0 4
  %3729 = vperm.xlu0 %3728, %v3691
  %v3730 = vpop.permute.xlu0 %3729
  %v3732 = vmul.f32 %v3645, %v3695
  %v3733 = vmul.f32 %v3650, %v3700
  %v3734 = vmul.f32 %v3655, %v3705
  %v3735 = vmul.f32 %v3660, %v3710
  %v3736 = vmul.f32 %v3665, %v3715
  %v3737 = vmul.f32 %v3670, %v3720
  %v3738 = vmul.f32 %v3675, %v3725
  %v3739 = vmul.f32 %v3680, %v3730
  %3740 = vrot.lane.b32.xlu0 %v3645, 9
  %v3741 = vpop.permute.xlu0 %3740
  %3742 = vrot.lane.b32.xlu0 %v3650, 9
  %v3743 = vpop.permute.xlu0 %3742
  %3744 = vrot.lane.b32.xlu0 %v3655, 9
  %v3745 = vpop.permute.xlu0 %3744
  %3746 = vrot.lane.b32.xlu0 %v3660, 9
  %v3747 = vpop.permute.xlu0 %3746
  %3748 = vrot.lane.b32.xlu0 %v3665, 9
  %v3749 = vpop.permute.xlu0 %3748
  %3750 = vrot.lane.b32.xlu0 %v3670, 9
  %v3751 = vpop.permute.xlu0 %3750
  %3752 = vrot.lane.b32.xlu0 %v3675, 9
  %v3753 = vpop.permute.xlu0 %3752
  %3754 = vrot.lane.b32.xlu0 %v3680, 9
  %v3755 = vpop.permute.xlu0 %3754
  %v3756 = vmul.f32 %v3741, %v535
  %v3757 = vmul.f32 %v3743, %v535
  %v3758 = vmul.f32 %v3745, %v535
  %v3759 = vmul.f32 %v3747, %v535
  %v3760 = vmul.f32 %v3749, %v535
  %v3761 = vmul.f32 %v3751, %v535
  %v3762 = vmul.f32 %v3753, %v535
  %v3763 = vmul.f32 %v3755, %v535
  %3764 = vset.pattern.permute.xlu0 0
  %3765 = vperm.xlu0 %3764, %v3684
  %v3766 = vpop.permute.xlu0 %3765
  %3768 = vset.pattern.permute.xlu0 0
  %3769 = vperm.xlu0 %3768, %v3685
  %v3770 = vpop.permute.xlu0 %3769
  %3772 = vset.pattern.permute.xlu0 0
  %3773 = vperm.xlu0 %3772, %v3686
  %v3774 = vpop.permute.xlu0 %3773
  %3776 = vset.pattern.permute.xlu0 0
  %3777 = vperm.xlu0 %3776, %v3687
  %v3778 = vpop.permute.xlu0 %3777
  %3780 = vset.pattern.permute.xlu0 0
  %3781 = vperm.xlu0 %3780, %v3688
  %v3782 = vpop.permute.xlu0 %3781
  %3784 = vset.pattern.permute.xlu0 0
  %3785 = vperm.xlu0 %3784, %v3689
  %v3786 = vpop.permute.xlu0 %3785
  %3788 = vset.pattern.permute.xlu0 0
  %3789 = vperm.xlu0 %3788, %v3690
  %v3790 = vpop.permute.xlu0 %3789
  %3792 = vset.pattern.permute.xlu0 0
  %3793 = vperm.xlu0 %3792, %v3691
  %v3794 = vpop.permute.xlu0 %3793
  %v3796 = vmul.f32 %v3756, %v3766
  %v3797 = vmul.f32 %v3757, %v3770
  %v3798 = vmul.f32 %v3758, %v3774
  %v3799 = vmul.f32 %v3759, %v3778
  %v3800 = vmul.f32 %v3760, %v3782
  %v3801 = vmul.f32 %v3761, %v3786
  %v3802 = vmul.f32 %v3762, %v3790
  %v3803 = vmul.f32 %v3763, %v3794
  %v3804 = vadd.f32 %v3732, %v3796
  %v3805 = vadd.f32 %v3733, %v3797
  %v3806 = vadd.f32 %v3734, %v3798
  %v3807 = vadd.f32 %v3735, %v3799
  %v3808 = vadd.f32 %v3736, %v3800
  %v3809 = vadd.f32 %v3737, %v3801
  %v3810 = vadd.f32 %v3738, %v3802
  %v3811 = vadd.f32 %v3739, %v3803
  %3812 = vrot.lane.b32.xlu0 %v3645, 8
  %v3813 = vpop.permute.xlu0 %3812
  %3814 = vrot.lane.b32.xlu0 %v3650, 8
  %v3815 = vpop.permute.xlu0 %3814
  %3816 = vrot.lane.b32.xlu0 %v3655, 8
  %v3817 = vpop.permute.xlu0 %3816
  %3818 = vrot.lane.b32.xlu0 %v3660, 8
  %v3819 = vpop.permute.xlu0 %3818
  %3820 = vrot.lane.b32.xlu0 %v3665, 8
  %v3821 = vpop.permute.xlu0 %3820
  %3822 = vrot.lane.b32.xlu0 %v3670, 8
  %v3823 = vpop.permute.xlu0 %3822
  %3824 = vrot.lane.b32.xlu0 %v3675, 8
  %v3825 = vpop.permute.xlu0 %3824
  %3826 = vrot.lane.b32.xlu0 %v3680, 8
  %v3827 = vpop.permute.xlu0 %3826
  %v3828 = vmul.f32 %v3813, %v595
  %v3829 = vmul.f32 %v3815, %v595
  %v3830 = vmul.f32 %v3817, %v595
  %v3831 = vmul.f32 %v3819, %v595
  %v3832 = vmul.f32 %v3821, %v595
  %v3833 = vmul.f32 %v3823, %v595
  %v3834 = vmul.f32 %v3825, %v595
  %v3835 = vmul.f32 %v3827, %v595
  %3836 = vset.pattern.permute.xlu0 1
  %3837 = vperm.xlu0 %3836, %v3684
  %v3838 = vpop.permute.xlu0 %3837
  %3840 = vset.pattern.permute.xlu0 1
  %3841 = vperm.xlu0 %3840, %v3685
  %v3842 = vpop.permute.xlu0 %3841
  %3844 = vset.pattern.permute.xlu0 1
  %3845 = vperm.xlu0 %3844, %v3686
  %v3846 = vpop.permute.xlu0 %3845
  %3848 = vset.pattern.permute.xlu0 1
  %3849 = vperm.xlu0 %3848, %v3687
  %v3850 = vpop.permute.xlu0 %3849
  %3852 = vset.pattern.permute.xlu0 1
  %3853 = vperm.xlu0 %3852, %v3688
  %v3854 = vpop.permute.xlu0 %3853
  %3856 = vset.pattern.permute.xlu0 1
  %3857 = vperm.xlu0 %3856, %v3689
  %v3858 = vpop.permute.xlu0 %3857
  %3860 = vset.pattern.permute.xlu0 1
  %3861 = vperm.xlu0 %3860, %v3690
  %v3862 = vpop.permute.xlu0 %3861
  %3864 = vset.pattern.permute.xlu0 1
  %3865 = vperm.xlu0 %3864, %v3691
  %v3866 = vpop.permute.xlu0 %3865
  %v3868 = vmul.f32 %v3828, %v3838
  %v3869 = vmul.f32 %v3829, %v3842
  %v3870 = vmul.f32 %v3830, %v3846
  %v3871 = vmul.f32 %v3831, %v3850
  %v3872 = vmul.f32 %v3832, %v3854
  %v3873 = vmul.f32 %v3833, %v3858
  %v3874 = vmul.f32 %v3834, %v3862
  %v3875 = vmul.f32 %v3835, %v3866
  %v3876 = vadd.f32 %v3804, %v3868
  %v3877 = vadd.f32 %v3805, %v3869
  %v3878 = vadd.f32 %v3806, %v3870
  %v3879 = vadd.f32 %v3807, %v3871
  %v3880 = vadd.f32 %v3808, %v3872
  %v3881 = vadd.f32 %v3809, %v3873
  %v3882 = vadd.f32 %v3810, %v3874
  %v3883 = vadd.f32 %v3811, %v3875
  %3884 = vrot.lane.b32.xlu0 %v3645, 7
  %v3885 = vpop.permute.xlu0 %3884
  %3886 = vrot.lane.b32.xlu0 %v3650, 7
  %v3887 = vpop.permute.xlu0 %3886
  %3888 = vrot.lane.b32.xlu0 %v3655, 7
  %v3889 = vpop.permute.xlu0 %3888
  %3890 = vrot.lane.b32.xlu0 %v3660, 7
  %v3891 = vpop.permute.xlu0 %3890
  %3892 = vrot.lane.b32.xlu0 %v3665, 7
  %v3893 = vpop.permute.xlu0 %3892
  %3894 = vrot.lane.b32.xlu0 %v3670, 7
  %v3895 = vpop.permute.xlu0 %3894
  %3896 = vrot.lane.b32.xlu0 %v3675, 7
  %v3897 = vpop.permute.xlu0 %3896
  %3898 = vrot.lane.b32.xlu0 %v3680, 7
  %v3899 = vpop.permute.xlu0 %3898
  %v3900 = vmul.f32 %v3885, %v655
  %v3901 = vmul.f32 %v3887, %v655
  %v3902 = vmul.f32 %v3889, %v655
  %v3903 = vmul.f32 %v3891, %v655
  %v3904 = vmul.f32 %v3893, %v655
  %v3905 = vmul.f32 %v3895, %v655
  %v3906 = vmul.f32 %v3897, %v655
  %v3907 = vmul.f32 %v3899, %v655
  %3908 = vset.pattern.permute.xlu0 2
  %3909 = vperm.xlu0 %3908, %v3684
  %v3910 = vpop.permute.xlu0 %3909
  %3912 = vset.pattern.permute.xlu0 2
  %3913 = vperm.xlu0 %3912, %v3685
  %v3914 = vpop.permute.xlu0 %3913
  %3916 = vset.pattern.permute.xlu0 2
  %3917 = vperm.xlu0 %3916, %v3686
  %v3918 = vpop.permute.xlu0 %3917
  %3920 = vset.pattern.permute.xlu0 2
  %3921 = vperm.xlu0 %3920, %v3687
  %v3922 = vpop.permute.xlu0 %3921
  %3924 = vset.pattern.permute.xlu0 2
  %3925 = vperm.xlu0 %3924, %v3688
  %v3926 = vpop.permute.xlu0 %3925
  %3928 = vset.pattern.permute.xlu0 2
  %3929 = vperm.xlu0 %3928, %v3689
  %v3930 = vpop.permute.xlu0 %3929
  %3932 = vset.pattern.permute.xlu0 2
  %3933 = vperm.xlu0 %3932, %v3690
  %v3934 = vpop.permute.xlu0 %3933
  %3936 = vset.pattern.permute.xlu0 2
  %3937 = vperm.xlu0 %3936, %v3691
  %v3938 = vpop.permute.xlu0 %3937
  %v3940 = vmul.f32 %v3900, %v3910
  %v3941 = vmul.f32 %v3901, %v3914
  %v3942 = vmul.f32 %v3902, %v3918
  %v3943 = vmul.f32 %v3903, %v3922
  %v3944 = vmul.f32 %v3904, %v3926
  %v3945 = vmul.f32 %v3905, %v3930
  %v3946 = vmul.f32 %v3906, %v3934
  %v3947 = vmul.f32 %v3907, %v3938
  %v3948 = vadd.f32 %v3876, %v3940
  %v3949 = vadd.f32 %v3877, %v3941
  %v3950 = vadd.f32 %v3878, %v3942
  %v3951 = vadd.f32 %v3879, %v3943
  %v3952 = vadd.f32 %v3880, %v3944
  %v3953 = vadd.f32 %v3881, %v3945
  %v3954 = vadd.f32 %v3882, %v3946
  %v3955 = vadd.f32 %v3883, %v3947
  %3956 = vrot.lane.b32.xlu0 %v3645, 1
  %v3957 = vpop.permute.xlu0 %3956
  %3958 = vrot.lane.b32.xlu0 %v3650, 1
  %v3959 = vpop.permute.xlu0 %3958
  %3960 = vrot.lane.b32.xlu0 %v3655, 1
  %v3961 = vpop.permute.xlu0 %3960
  %3962 = vrot.lane.b32.xlu0 %v3660, 1
  %v3963 = vpop.permute.xlu0 %3962
  %3964 = vrot.lane.b32.xlu0 %v3665, 1
  %v3965 = vpop.permute.xlu0 %3964
  %3966 = vrot.lane.b32.xlu0 %v3670, 1
  %v3967 = vpop.permute.xlu0 %3966
  %3968 = vrot.lane.b32.xlu0 %v3675, 1
  %v3969 = vpop.permute.xlu0 %3968
  %3970 = vrot.lane.b32.xlu0 %v3680, 1
  %v3971 = vpop.permute.xlu0 %3970
  %v3972 = vmul.f32 %v3957, %v715
  %v3973 = vmul.f32 %v3959, %v715
  %v3974 = vmul.f32 %v3961, %v715
  %v3975 = vmul.f32 %v3963, %v715
  %v3976 = vmul.f32 %v3965, %v715
  %v3977 = vmul.f32 %v3967, %v715
  %v3978 = vmul.f32 %v3969, %v715
  %v3979 = vmul.f32 %v3971, %v715
  %3980 = vset.pattern.permute.xlu0 3
  %3981 = vperm.xlu0 %3980, %v3684
  %v3982 = vpop.permute.xlu0 %3981
  %3984 = vset.pattern.permute.xlu0 3
  %3985 = vperm.xlu0 %3984, %v3685
  %v3986 = vpop.permute.xlu0 %3985
  %3988 = vset.pattern.permute.xlu0 3
  %3989 = vperm.xlu0 %3988, %v3686
  %v3990 = vpop.permute.xlu0 %3989
  %3992 = vset.pattern.permute.xlu0 3
  %3993 = vperm.xlu0 %3992, %v3687
  %v3994 = vpop.permute.xlu0 %3993
  %3996 = vset.pattern.permute.xlu0 3
  %3997 = vperm.xlu0 %3996, %v3688
  %v3998 = vpop.permute.xlu0 %3997
  %4000 = vset.pattern.permute.xlu0 3
  %4001 = vperm.xlu0 %4000, %v3689
  %v4002 = vpop.permute.xlu0 %4001
  %4004 = vset.pattern.permute.xlu0 3
  %4005 = vperm.xlu0 %4004, %v3690
  %v4006 = vpop.permute.xlu0 %4005
  %4008 = vset.pattern.permute.xlu0 3
  %4009 = vperm.xlu0 %4008, %v3691
  %v4010 = vpop.permute.xlu0 %4009
  %v4012 = vmul.f32 %v3972, %v3982
  %v4013 = vmul.f32 %v3973, %v3986
  %v4014 = vmul.f32 %v3974, %v3990
  %v4015 = vmul.f32 %v3975, %v3994
  %v4016 = vmul.f32 %v3976, %v3998
  %v4017 = vmul.f32 %v3977, %v4002
  %v4018 = vmul.f32 %v3978, %v4006
  %v4019 = vmul.f32 %v3979, %v4010
  %v4020 = vadd.f32 %v3948, %v4012
  %v4021 = vadd.f32 %v3949, %v4013
  %v4022 = vadd.f32 %v3950, %v4014
  %v4023 = vadd.f32 %v3951, %v4015
  %v4024 = vadd.f32 %v3952, %v4016
  %v4025 = vadd.f32 %v3953, %v4017
  %v4026 = vadd.f32 %v3954, %v4018
  %v4027 = vadd.f32 %v3955, %v4019
  %4028 = vrot.lane.b32.xlu0 %v3645, 127
  %v4029 = vpop.permute.xlu0 %4028
  %4030 = vrot.lane.b32.xlu0 %v3650, 127
  %v4031 = vpop.permute.xlu0 %4030
  %4032 = vrot.lane.b32.xlu0 %v3655, 127
  %v4033 = vpop.permute.xlu0 %4032
  %4034 = vrot.lane.b32.xlu0 %v3660, 127
  %v4035 = vpop.permute.xlu0 %4034
  %4036 = vrot.lane.b32.xlu0 %v3665, 127
  %v4037 = vpop.permute.xlu0 %4036
  %4038 = vrot.lane.b32.xlu0 %v3670, 127
  %v4039 = vpop.permute.xlu0 %4038
  %4040 = vrot.lane.b32.xlu0 %v3675, 127
  %v4041 = vpop.permute.xlu0 %4040
  %4042 = vrot.lane.b32.xlu0 %v3680, 127
  %v4043 = vpop.permute.xlu0 %4042
  %v4044 = vmul.f32 %v4029, %v775
  %v4045 = vmul.f32 %v4031, %v775
  %v4046 = vmul.f32 %v4033, %v775
  %v4047 = vmul.f32 %v4035, %v775
  %v4048 = vmul.f32 %v4037, %v775
  %v4049 = vmul.f32 %v4039, %v775
  %v4050 = vmul.f32 %v4041, %v775
  %v4051 = vmul.f32 %v4043, %v775
  %4052 = vset.pattern.permute.xlu0 5
  %4053 = vperm.xlu0 %4052, %v3684
  %v4054 = vpop.permute.xlu0 %4053
  %4056 = vset.pattern.permute.xlu0 5
  %4057 = vperm.xlu0 %4056, %v3685
  %v4058 = vpop.permute.xlu0 %4057
  %4060 = vset.pattern.permute.xlu0 5
  %4061 = vperm.xlu0 %4060, %v3686
  %v4062 = vpop.permute.xlu0 %4061
  %4064 = vset.pattern.permute.xlu0 5
  %4065 = vperm.xlu0 %4064, %v3687
  %v4066 = vpop.permute.xlu0 %4065
  %4068 = vset.pattern.permute.xlu0 5
  %4069 = vperm.xlu0 %4068, %v3688
  %v4070 = vpop.permute.xlu0 %4069
  %4072 = vset.pattern.permute.xlu0 5
  %4073 = vperm.xlu0 %4072, %v3689
  %v4074 = vpop.permute.xlu0 %4073
  %4076 = vset.pattern.permute.xlu0 5
  %4077 = vperm.xlu0 %4076, %v3690
  %v4078 = vpop.permute.xlu0 %4077
  %4080 = vset.pattern.permute.xlu0 5
  %4081 = vperm.xlu0 %4080, %v3691
  %v4082 = vpop.permute.xlu0 %4081
  %v4084 = vmul.f32 %v4044, %v4054
  %v4085 = vmul.f32 %v4045, %v4058
  %v4086 = vmul.f32 %v4046, %v4062
  %v4087 = vmul.f32 %v4047, %v4066
  %v4088 = vmul.f32 %v4048, %v4070
  %v4089 = vmul.f32 %v4049, %v4074
  %v4090 = vmul.f32 %v4050, %v4078
  %v4091 = vmul.f32 %v4051, %v4082
  %v4092 = vadd.f32 %v4020, %v4084
  %v4093 = vadd.f32 %v4021, %v4085
  %v4094 = vadd.f32 %v4022, %v4086
  %v4095 = vadd.f32 %v4023, %v4087
  %v4096 = vadd.f32 %v4024, %v4088
  %v4097 = vadd.f32 %v4025, %v4089
  %v4098 = vadd.f32 %v4026, %v4090
  %v4099 = vadd.f32 %v4027, %v4091
  %4100 = vrot.lane.b32.xlu0 %v3645, 121
  %v4101 = vpop.permute.xlu0 %4100
  %4102 = vrot.lane.b32.xlu0 %v3650, 121
  %v4103 = vpop.permute.xlu0 %4102
  %4104 = vrot.lane.b32.xlu0 %v3655, 121
  %v4105 = vpop.permute.xlu0 %4104
  %4106 = vrot.lane.b32.xlu0 %v3660, 121
  %v4107 = vpop.permute.xlu0 %4106
  %4108 = vrot.lane.b32.xlu0 %v3665, 121
  %v4109 = vpop.permute.xlu0 %4108
  %4110 = vrot.lane.b32.xlu0 %v3670, 121
  %v4111 = vpop.permute.xlu0 %4110
  %4112 = vrot.lane.b32.xlu0 %v3675, 121
  %v4113 = vpop.permute.xlu0 %4112
  %4114 = vrot.lane.b32.xlu0 %v3680, 121
  %v4115 = vpop.permute.xlu0 %4114
  %v4116 = vmul.f32 %v4101, %v835
  %v4117 = vmul.f32 %v4103, %v835
  %v4118 = vmul.f32 %v4105, %v835
  %v4119 = vmul.f32 %v4107, %v835
  %v4120 = vmul.f32 %v4109, %v835
  %v4121 = vmul.f32 %v4111, %v835
  %v4122 = vmul.f32 %v4113, %v835
  %v4123 = vmul.f32 %v4115, %v835
  %4124 = vset.pattern.permute.xlu0 6
  %4125 = vperm.xlu0 %4124, %v3684
  %v4126 = vpop.permute.xlu0 %4125
  %4128 = vset.pattern.permute.xlu0 6
  %4129 = vperm.xlu0 %4128, %v3685
  %v4130 = vpop.permute.xlu0 %4129
  %4132 = vset.pattern.permute.xlu0 6
  %4133 = vperm.xlu0 %4132, %v3686
  %v4134 = vpop.permute.xlu0 %4133
  %4136 = vset.pattern.permute.xlu0 6
  %4137 = vperm.xlu0 %4136, %v3687
  %v4138 = vpop.permute.xlu0 %4137
  %4140 = vset.pattern.permute.xlu0 6
  %4141 = vperm.xlu0 %4140, %v3688
  %v4142 = vpop.permute.xlu0 %4141
  %4144 = vset.pattern.permute.xlu0 6
  %4145 = vperm.xlu0 %4144, %v3689
  %v4146 = vpop.permute.xlu0 %4145
  %4148 = vset.pattern.permute.xlu0 6
  %4149 = vperm.xlu0 %4148, %v3690
  %v4150 = vpop.permute.xlu0 %4149
  %4152 = vset.pattern.permute.xlu0 6
  %4153 = vperm.xlu0 %4152, %v3691
  %v4154 = vpop.permute.xlu0 %4153
  %v4156 = vmul.f32 %v4116, %v4126
  %v4157 = vmul.f32 %v4117, %v4130
  %v4158 = vmul.f32 %v4118, %v4134
  %v4159 = vmul.f32 %v4119, %v4138
  %v4160 = vmul.f32 %v4120, %v4142
  %v4161 = vmul.f32 %v4121, %v4146
  %v4162 = vmul.f32 %v4122, %v4150
  %v4163 = vmul.f32 %v4123, %v4154
  %v4164 = vadd.f32 %v4092, %v4156
  %v4165 = vadd.f32 %v4093, %v4157
  %v4166 = vadd.f32 %v4094, %v4158
  %v4167 = vadd.f32 %v4095, %v4159
  %v4168 = vadd.f32 %v4096, %v4160
  %v4169 = vadd.f32 %v4097, %v4161
  %v4170 = vadd.f32 %v4098, %v4162
  %v4171 = vadd.f32 %v4099, %v4163
  %4172 = vrot.lane.b32.xlu0 %v3645, 120
  %v4173 = vpop.permute.xlu0 %4172
  %4174 = vrot.lane.b32.xlu0 %v3650, 120
  %v4175 = vpop.permute.xlu0 %4174
  %4176 = vrot.lane.b32.xlu0 %v3655, 120
  %v4177 = vpop.permute.xlu0 %4176
  %4178 = vrot.lane.b32.xlu0 %v3660, 120
  %v4179 = vpop.permute.xlu0 %4178
  %4180 = vrot.lane.b32.xlu0 %v3665, 120
  %v4181 = vpop.permute.xlu0 %4180
  %4182 = vrot.lane.b32.xlu0 %v3670, 120
  %v4183 = vpop.permute.xlu0 %4182
  %4184 = vrot.lane.b32.xlu0 %v3675, 120
  %v4185 = vpop.permute.xlu0 %4184
  %4186 = vrot.lane.b32.xlu0 %v3680, 120
  %v4187 = vpop.permute.xlu0 %4186
  %v4188 = vmul.f32 %v4173, %v895
  %v4189 = vmul.f32 %v4175, %v895
  %v4190 = vmul.f32 %v4177, %v895
  %v4191 = vmul.f32 %v4179, %v895
  %v4192 = vmul.f32 %v4181, %v895
  %v4193 = vmul.f32 %v4183, %v895
  %v4194 = vmul.f32 %v4185, %v895
  %v4195 = vmul.f32 %v4187, %v895
  %4196 = vset.pattern.permute.xlu0 7
  %4197 = vperm.xlu0 %4196, %v3684
  %v4198 = vpop.permute.xlu0 %4197
  %4200 = vset.pattern.permute.xlu0 7
  %4201 = vperm.xlu0 %4200, %v3685
  %v4202 = vpop.permute.xlu0 %4201
  %4204 = vset.pattern.permute.xlu0 7
  %4205 = vperm.xlu0 %4204, %v3686
  %v4206 = vpop.permute.xlu0 %4205
  %4208 = vset.pattern.permute.xlu0 7
  %4209 = vperm.xlu0 %4208, %v3687
  %v4210 = vpop.permute.xlu0 %4209
  %4212 = vset.pattern.permute.xlu0 7
  %4213 = vperm.xlu0 %4212, %v3688
  %v4214 = vpop.permute.xlu0 %4213
  %4216 = vset.pattern.permute.xlu0 7
  %4217 = vperm.xlu0 %4216, %v3689
  %v4218 = vpop.permute.xlu0 %4217
  %4220 = vset.pattern.permute.xlu0 7
  %4221 = vperm.xlu0 %4220, %v3690
  %v4222 = vpop.permute.xlu0 %4221
  %4224 = vset.pattern.permute.xlu0 7
  %4225 = vperm.xlu0 %4224, %v3691
  %v4226 = vpop.permute.xlu0 %4225
  %v4228 = vmul.f32 %v4188, %v4198
  %v4229 = vmul.f32 %v4189, %v4202
  %v4230 = vmul.f32 %v4190, %v4206
  %v4231 = vmul.f32 %v4191, %v4210
  %v4232 = vmul.f32 %v4192, %v4214
  %v4233 = vmul.f32 %v4193, %v4218
  %v4234 = vmul.f32 %v4194, %v4222
  %v4235 = vmul.f32 %v4195, %v4226
  %v4236 = vadd.f32 %v4164, %v4228
  %v4237 = vadd.f32 %v4165, %v4229
  %v4238 = vadd.f32 %v4166, %v4230
  %v4239 = vadd.f32 %v4167, %v4231
  %v4240 = vadd.f32 %v4168, %v4232
  %v4241 = vadd.f32 %v4169, %v4233
  %v4242 = vadd.f32 %v4170, %v4234
  %v4243 = vadd.f32 %v4171, %v4235
  %4244 = vrot.lane.b32.xlu0 %v3645, 119
  %v4245 = vpop.permute.xlu0 %4244
  %4246 = vrot.lane.b32.xlu0 %v3650, 119
  %v4247 = vpop.permute.xlu0 %4246
  %4248 = vrot.lane.b32.xlu0 %v3655, 119
  %v4249 = vpop.permute.xlu0 %4248
  %4250 = vrot.lane.b32.xlu0 %v3660, 119
  %v4251 = vpop.permute.xlu0 %4250
  %4252 = vrot.lane.b32.xlu0 %v3665, 119
  %v4253 = vpop.permute.xlu0 %4252
  %4254 = vrot.lane.b32.xlu0 %v3670, 119
  %v4255 = vpop.permute.xlu0 %4254
  %4256 = vrot.lane.b32.xlu0 %v3675, 119
  %v4257 = vpop.permute.xlu0 %4256
  %4258 = vrot.lane.b32.xlu0 %v3680, 119
  %v4259 = vpop.permute.xlu0 %4258
  %v4260 = vmul.f32 %v4245, %v955
  %v4261 = vmul.f32 %v4247, %v955
  %v4262 = vmul.f32 %v4249, %v955
  %v4263 = vmul.f32 %v4251, %v955
  %v4264 = vmul.f32 %v4253, %v955
  %v4265 = vmul.f32 %v4255, %v955
  %v4266 = vmul.f32 %v4257, %v955
  %v4267 = vmul.f32 %v4259, %v955
  %4268 = vset.pattern.permute.xlu0 8
  %4269 = vperm.xlu0 %4268, %v3684
  %v4270 = vpop.permute.xlu0 %4269
  %4272 = vset.pattern.permute.xlu0 8
  %4273 = vperm.xlu0 %4272, %v3685
  %v4274 = vpop.permute.xlu0 %4273
  %4276 = vset.pattern.permute.xlu0 8
  %4277 = vperm.xlu0 %4276, %v3686
  %v4278 = vpop.permute.xlu0 %4277
  %4280 = vset.pattern.permute.xlu0 8
  %4281 = vperm.xlu0 %4280, %v3687
  %v4282 = vpop.permute.xlu0 %4281
  %4284 = vset.pattern.permute.xlu0 8
  %4285 = vperm.xlu0 %4284, %v3688
  %v4286 = vpop.permute.xlu0 %4285
  %4288 = vset.pattern.permute.xlu0 8
  %4289 = vperm.xlu0 %4288, %v3689
  %v4290 = vpop.permute.xlu0 %4289
  %4292 = vset.pattern.permute.xlu0 8
  %4293 = vperm.xlu0 %4292, %v3690
  %v4294 = vpop.permute.xlu0 %4293
  %4296 = vset.pattern.permute.xlu0 8
  %4297 = vperm.xlu0 %4296, %v3691
  %v4298 = vpop.permute.xlu0 %4297
  %v4300 = vmul.f32 %v4260, %v4270
  %v4301 = vmul.f32 %v4261, %v4274
  %v4302 = vmul.f32 %v4262, %v4278
  %v4303 = vmul.f32 %v4263, %v4282
  %v4304 = vmul.f32 %v4264, %v4286
  %v4305 = vmul.f32 %v4265, %v4290
  %v4306 = vmul.f32 %v4266, %v4294
  %v4307 = vmul.f32 %v4267, %v4298
  %v4308 = vadd.f32 %v4236, %v4300
  %v4309 = vadd.f32 %v4237, %v4301
  %v4310 = vadd.f32 %v4238, %v4302
  %v4311 = vadd.f32 %v4239, %v4303
  %v4312 = vadd.f32 %v4240, %v4304
  %v4313 = vadd.f32 %v4241, %v4305
  %v4314 = vadd.f32 %v4242, %v4306
  %v4315 = vadd.f32 %v4243, %v4307
  %v4316 = vand.u32 2147483647, %v4308
  %v4317 = vand.u32 2147483647, %v4309
  %v4318 = vand.u32 2147483647, %v4310
  %v4319 = vand.u32 2147483647, %v4311
  %v4320 = vmul.f32 %v4316, 0.5
  %v4321 = vmul.f32 %v4317, 0.5
  %v4322 = vmul.f32 %v4318, 0.5
  %v4323 = vmul.f32 %v4319, 0.5
  %v4324 = vadd.f32 %v4320, 1.0
  %v4325 = vadd.f32 %v4321, 1.0
  %v4326 = vadd.f32 %v4322, 1.0
  %v4327 = vadd.f32 %v4323, 1.0
  %v4328 = vrcp.pop %v4324
  %v4329 = vmul.f32 1.0, %v4328
  %v4330 = vrcp.pop %v4325
  %v4331 = vmul.f32 1.0, %v4330
  %v4332 = vrcp.pop %v4326
  %v4333 = vmul.f32 1.0, %v4332
  %v4334 = vrcp.pop %v4327
  %v4335 = vmul.f32 1.0, %v4334
  %v4336 = vsub.f32 0.0, %v4316
  %v4337 = vsub.f32 0.0, %v4317
  %v4338 = vsub.f32 0.0, %v4318
  %v4339 = vsub.f32 0.0, %v4319
  %v4340 = vmul.f32 %v4336, %v4316
  %v4341 = vmul.f32 %v4337, %v4317
  %v4342 = vmul.f32 %v4338, %v4318
  %v4343 = vmul.f32 %v4339, %v4319
  %v4344 = vsub.f32 %v4340, 1.2655122
  %v4345 = vsub.f32 %v4341, 1.2655122
  %v4346 = vsub.f32 %v4342, 1.2655122
  %v4347 = vsub.f32 %v4343, 1.2655122
  %v4348 = vmul.f32 %v4329, 0.17087276
  %v4349 = vmul.f32 %v4331, 0.17087276
  %v4350 = vmul.f32 %v4333, 0.17087276
  %v4351 = vmul.f32 %v4335, 0.17087276
  %v4352 = vadd.f32 %v4348, -0.82215226
  %v4353 = vadd.f32 %v4349, -0.82215226
  %v4354 = vadd.f32 %v4350, -0.82215226
  %v4355 = vadd.f32 %v4351, -0.82215226
  %v4356 = vmul.f32 %v4329, %v4352
  %v4357 = vmul.f32 %v4331, %v4353
  %v4358 = vmul.f32 %v4333, %v4354
  %v4359 = vmul.f32 %v4335, %v4355
  %v4360 = vadd.f32 %v4356, 1.4885159
  %v4361 = vadd.f32 %v4357, 1.4885159
  %v4362 = vadd.f32 %v4358, 1.4885159
  %v4363 = vadd.f32 %v4359, 1.4885159
  %v4364 = vmul.f32 %v4329, %v4360
  %v4365 = vmul.f32 %v4331, %v4361
  %v4366 = vmul.f32 %v4333, %v4362
  %v4367 = vmul.f32 %v4335, %v4363
  %v4368 = vadd.f32 %v4364, -1.135204
  %v4369 = vadd.f32 %v4365, -1.135204
  %v4370 = vadd.f32 %v4366, -1.135204
  %v4371 = vadd.f32 %v4367, -1.135204
  %v4372 = vmul.f32 %v4329, %v4368
  %v4373 = vmul.f32 %v4331, %v4369
  %v4374 = vmul.f32 %v4333, %v4370
  %v4375 = vmul.f32 %v4335, %v4371
  %v4376 = vadd.f32 %v4372, 0.27886808
  %v4377 = vadd.f32 %v4373, 0.27886808
  %v4378 = vadd.f32 %v4374, 0.27886808
  %v4379 = vadd.f32 %v4375, 0.27886808
  %v4380 = vmul.f32 %v4329, %v4376
  %v4381 = vmul.f32 %v4331, %v4377
  %v4382 = vmul.f32 %v4333, %v4378
  %v4383 = vmul.f32 %v4335, %v4379
  %v4384 = vadd.f32 %v4380, -0.18628806
  %v4385 = vadd.f32 %v4381, -0.18628806
  %v4386 = vadd.f32 %v4382, -0.18628806
  %v4387 = vadd.f32 %v4383, -0.18628806
  %v4388 = vmul.f32 %v4329, %v4384
  %v4389 = vmul.f32 %v4331, %v4385
  %v4390 = vmul.f32 %v4333, %v4386
  %v4391 = vmul.f32 %v4335, %v4387
  %v4392 = vadd.f32 %v4388, 0.09678418
  %v4393 = vadd.f32 %v4389, 0.09678418
  %v4394 = vadd.f32 %v4390, 0.09678418
  %v4395 = vadd.f32 %v4391, 0.09678418
  %v4396 = vmul.f32 %v4329, %v4392
  %v4397 = vmul.f32 %v4331, %v4393
  %v4398 = vmul.f32 %v4333, %v4394
  %v4399 = vmul.f32 %v4335, %v4395
  %v4400 = vadd.f32 %v4396, 0.37409195
  %v4401 = vadd.f32 %v4397, 0.37409195
  %v4402 = vadd.f32 %v4398, 0.37409195
  %v4403 = vadd.f32 %v4399, 0.37409195
  %v4404 = vmul.f32 %v4329, %v4400
  %v4405 = vmul.f32 %v4331, %v4401
  %v4406 = vmul.f32 %v4333, %v4402
  %v4407 = vmul.f32 %v4335, %v4403
  %v4408 = vadd.f32 %v4404, 1.0000237
  %v4409 = vadd.f32 %v4405, 1.0000237
  %v4410 = vadd.f32 %v4406, 1.0000237
  %v4411 = vadd.f32 %v4407, 1.0000237
  %v4412 = vmul.f32 %v4329, %v4408
  %v4413 = vmul.f32 %v4331, %v4409
  %v4414 = vmul.f32 %v4333, %v4410
  %v4415 = vmul.f32 %v4335, %v4411
  %v4416 = vadd.f32 %v4344, %v4412
  %v4417 = vadd.f32 %v4345, %v4413
  %v4418 = vadd.f32 %v4346, %v4414
  %v4419 = vadd.f32 %v4347, %v4415
  %v4420 = vmul.f32 %v4416, 1.442695
  %v4421 = vpow.pop %v4420
  %v4422 = vmul.f32 %v4417, 1.442695
  %v4423 = vpow.pop %v4422
  %v4424 = vmul.f32 %v4418, 1.442695
  %v4425 = vpow.pop %v4424
  %v4426 = vmul.f32 %v4419, 1.442695
  %v4427 = vpow.pop %v4426
  %v4428 = vmul.f32 %v4329, %v4421
  %v4429 = vmul.f32 %v4331, %v4423
  %v4430 = vmul.f32 %v4333, %v4425
  %v4431 = vmul.f32 %v4335, %v4427
  %vm4432 = vcmp.ge.f32.partialorder %v4308, 0.0
  %vm4433 = vcmp.ge.f32.partialorder %v4309, 0.0
  %vm4434 = vcmp.ge.f32.partialorder %v4310, 0.0
  %vm4435 = vcmp.ge.f32.partialorder %v4311, 0.0
  %v4436 = vsub.f32 1.0, %v4428
  %v4437 = vsub.f32 1.0, %v4429
  %v4438 = vsub.f32 1.0, %v4430
  %v4439 = vsub.f32 1.0, %v4431
  %v4440 = vsub.f32 %v4428, 1.0
  %v4441 = vsub.f32 %v4429, 1.0
  %v4442 = vsub.f32 %v4430, 1.0
  %v4443 = vsub.f32 %v4431, 1.0
  %v4444 = vsel %vm4432, %v4436, %v4440
  %v4445 = vsel %vm4433, %v4437, %v4441
  %v4446 = vsel %vm4434, %v4438, %v4442
  %v4447 = vsel %vm4435, %v4439, %v4443
  %v4448 = vmul.f32 %v4308, 0.5
  %v4449 = vmul.f32 %v4309, 0.5
  %v4450 = vmul.f32 %v4310, 0.5
  %v4451 = vmul.f32 %v4311, 0.5
  %v4452 = vadd.f32 %v4444, 1.0
  %v4453 = vadd.f32 %v4445, 1.0
  %v4454 = vadd.f32 %v4446, 1.0
  %v4455 = vadd.f32 %v4447, 1.0
  %v4456 = vmul.f32 %v4448, %v4452
  %v4457 = vmul.f32 %v4449, %v4453
  %v4458 = vmul.f32 %v4450, %v4454
  %v4459 = vmul.f32 %v4451, %v4455
  %v4460 = vmul.f32 %v4456, %v4312
  %v4461 = vmul.f32 %v4457, %v4313
  %v4462 = vmul.f32 %v4458, %v4314
  %v4463 = vmul.f32 %v4459, %v4315
  %s4464 = scalar_lea.vmem %s17, 16
  %v4465 = vld [vmem:[%s4464] sm:$0xff]
  %v4466 = vld [vmem:[%s4464 + $0x8] sm:$0xff]
  %v4468 = vsel %vm1160, %v4465, 0
  %v4471 = vsel %vm1160, %v4466, 0
  %4473 = vmatprep.subr.mxu0 0.0
  %4474 = vmatpush1.msra.mxu0 0.0
  %4475 = vmatprep.subr.mxu0 0.0
  %4476 = vmatpush1.msra.mxu0 0.0
  %4477 = vmatprep.subr.mxu0 0.0
  %4478 = vmatpush1.msra.mxu0 0.0
  %4479 = vmatprep.subr.mxu0 0.0
  %4480 = vmatpush1.msra.mxu0 0.0
  %4481 = vmatprep.subr.mxu0 0.0
  %4482 = vmatpush1.msra.mxu0 0.0
  %4483 = vmatprep.subr.mxu0 0.0
  %4484 = vmatpush1.msra.mxu0 0.0
  %4485 = vmatprep.subr.mxu0 0.0
  %4486 = vmatpush1.msra.mxu0 0.0
  %4487 = vmatprep.subr.mxu0 0.0
  %4488 = vmatpush1.msra.mxu0 0.0
  %4489 = vmatprep.subr.mxu0 0.0
  %4490 = vmatpush1.msra.mxu0 0.0
  %4491 = vmatprep.subr.mxu0 0.0
  %4492 = vmatpush1.msra.mxu0 0.0
  %4493 = vmatprep.subr.mxu0 0.0
  %4494 = vmatpush1.msra.mxu0 0.0
  %4495 = vmatprep.subr.mxu0 0.0
  %4496 = vmatpush1.msra.mxu0 0.0
  %4497 = vmatprep.subr.mxu0 0.0
  %4498 = vmatpush1.msra.mxu0 %v4463
  %4499 = vmatprep.subr.mxu0 0.0
  %4500 = vmatpush1.msra.mxu0 %v4462
  %4501 = vmatprep.subr.mxu0 0.0
  %4502 = vmatpush1.msra.mxu0 %v4461
  %4503 = vmatprep.subr.mxu0 0.0
  %4504 = vmatpush1.msra.mxu0 %v4460
  %4505 = vmatprep.subr.mxu0 0.0
  %4506 = vmatpush2.msra.mxu0 0.0
  %4507 = vmatprep.subr.mxu0 0.0
  %4508 = vmatpush2.msra.mxu0 0.0
  %4509 = vmatprep.subr.mxu0 0.0
  %4510 = vmatpush2.msra.mxu0 0.0
  %4511 = vmatprep.subr.mxu0 0.0
  %4512 = vmatpush2.msra.mxu0 0.0
  %4513 = vmatprep.subr.mxu0 0.0
  %4514 = vmatpush2.msra.mxu0 0.0
  %4515 = vmatprep.subr.mxu0 0.0
  %4516 = vmatpush2.msra.mxu0 0.0
  %4517 = vmatprep.subr.mxu0 0.0
  %4518 = vmatpush2.msra.mxu0 0.0
  %4519 = vmatprep.subr.mxu0 0.0
  %4520 = vmatpush2.msra.mxu0 0.0
  %4521 = vmatprep.subr.mxu0 0.0
  %4522 = vmatpush2.msra.mxu0 0.0
  %4523 = vmatprep.subr.mxu0 0.0
  %4524 = vmatpush2.msra.mxu0 0.0
  %4525 = vmatprep.subr.mxu0 0.0
  %4526 = vmatpush2.msra.mxu0 0.0
  %4527 = vmatprep.subr.mxu0 0.0
  %4528 = vmatpush2.msra.mxu0 0.0
  %4529 = vmatprep.subr.mxu0 0.0
  %4530 = vmatpush2.msra.mxu0 0.0
  %4531 = vmatprep.subr.mxu0 0.0
  %4532 = vmatpush2.msra.mxu0 0.0
  %4533 = vmatprep.subr.mxu0 0.0
  %4534 = vmatpush2.msra.mxu0 0.0
  %4535 = vmatprep.subr.mxu0 0.0
  %4536 = vmatpush2.msra.mxu0 0.0
  %4537 = vmatprep.mubr.f32.mxu0 0.0
  %4538 = vmatmul.mubr.f32.gmra.mxu0 %v4468
  %v4539 = vpop.f32.mrf.mxu0
  %v4540 = vadd.f32 0.0, %v4539
  %v4541 = vpop.f32.mrf.mxu0
  %4542 = vmatprep.mubr.f32.mxu0 0.0
  %4543 = vmatmul.mubr.f32.gmra.mxu0 %v4471
  %v4544 = vpop.f32.mrf.mxu0
  %v4545 = vadd.f32 0.0, %v4544
  %v4546 = vpop.f32.mrf.mxu0
  %4547 = vdwg.mxu0
  %v4548 = vadd.f32 %v3489, %v4540
  %v4549 = vadd.f32 %v3490, %v4545
  %v4550 = vld [vmem:[%s18] sm:$0xff]
  %v4551 = vld [vmem:[%s18 + $0x8] sm:$0xff]
  %4552 = vrot.lane.b32.xlu0 %v4548, 9
  %v4553 = vpop.permute.xlu0 %4552
  %4554 = vrot.lane.b32.xlu0 %v4549, 9
  %v4555 = vpop.permute.xlu0 %4554
  %v4556 = vmul.f32 %v4553, %v535
  %v4557 = vmul.f32 %v4555, %v535
  %4558 = vrot.lane.b32.xlu0 %v4548, 8
  %v4559 = vpop.permute.xlu0 %4558
  %4560 = vrot.lane.b32.xlu0 %v4549, 8
  %v4561 = vpop.permute.xlu0 %4560
  %v4562 = vmul.f32 %v4559, %v595
  %v4563 = vmul.f32 %v4561, %v595
  %4564 = vrot.lane.b32.xlu0 %v4548, 7
  %v4565 = vpop.permute.xlu0 %4564
  %4566 = vrot.lane.b32.xlu0 %v4549, 7
  %v4567 = vpop.permute.xlu0 %4566
  %v4568 = vmul.f32 %v4565, %v655
  %v4569 = vmul.f32 %v4567, %v655
  %4570 = vrot.lane.b32.xlu0 %v4548, 1
  %v4571 = vpop.permute.xlu0 %4570
  %4572 = vrot.lane.b32.xlu0 %v4549, 1
  %v4573 = vpop.permute.xlu0 %4572
  %v4574 = vmul.f32 %v4571, %v715
  %v4575 = vmul.f32 %v4573, %v715
  %4576 = vrot.lane.b32.xlu0 %v4548, 127
  %v4577 = vpop.permute.xlu0 %4576
  %4578 = vrot.lane.b32.xlu0 %v4549, 127
  %v4579 = vpop.permute.xlu0 %4578
  %v4580 = vmul.f32 %v4577, %v775
  %v4581 = vmul.f32 %v4579, %v775
  %4582 = vrot.lane.b32.xlu0 %v4548, 121
  %v4583 = vpop.permute.xlu0 %4582
  %4584 = vrot.lane.b32.xlu0 %v4549, 121
  %v4585 = vpop.permute.xlu0 %4584
  %v4586 = vmul.f32 %v4583, %v835
  %v4587 = vmul.f32 %v4585, %v835
  %4588 = vrot.lane.b32.xlu0 %v4548, 120
  %v4589 = vpop.permute.xlu0 %4588
  %4590 = vrot.lane.b32.xlu0 %v4549, 120
  %v4591 = vpop.permute.xlu0 %4590
  %v4592 = vmul.f32 %v4589, %v895
  %v4593 = vmul.f32 %v4591, %v895
  %4594 = vrot.lane.b32.xlu0 %v4548, 119
  %v4595 = vpop.permute.xlu0 %4594
  %4596 = vrot.lane.b32.xlu0 %v4549, 119
  %v4597 = vpop.permute.xlu0 %4596
  %v4598 = vmul.f32 %v4595, %v955
  %v4599 = vmul.f32 %v4597, %v955
  %v4601 = vsel %vm142, %v4551, 0
  %4603 = vmatprep.subr.mxu0 0.0
  %4604 = vmatpush1.msra.mxu0 %v4593
  %4605 = vmatprep.subr.mxu0 0.0
  %4606 = vmatpush1.msra.mxu0 %v4592
  %4607 = vmatprep.subr.mxu0 0.0
  %4608 = vmatpush1.msra.mxu0 %v4587
  %4609 = vmatprep.subr.mxu0 0.0
  %4610 = vmatpush1.msra.mxu0 %v4586
  %4611 = vmatprep.subr.mxu0 0.0
  %4612 = vmatpush1.msra.mxu0 %v4581
  %4613 = vmatprep.subr.mxu0 0.0
  %4614 = vmatpush1.msra.mxu0 %v4580
  %4615 = vmatprep.subr.mxu0 0.0
  %4616 = vmatpush1.msra.mxu0 %v4549
  %4617 = vmatprep.subr.mxu0 0.0
  %4618 = vmatpush1.msra.mxu0 %v4548
  %4619 = vmatprep.subr.mxu0 0.0
  %4620 = vmatpush1.msra.mxu0 %v4575
  %4621 = vmatprep.subr.mxu0 0.0
  %4622 = vmatpush1.msra.mxu0 %v4574
  %4623 = vmatprep.subr.mxu0 0.0
  %4624 = vmatpush1.msra.mxu0 %v4569
  %4625 = vmatprep.subr.mxu0 0.0
  %4626 = vmatpush1.msra.mxu0 %v4568
  %4627 = vmatprep.subr.mxu0 0.0
  %4628 = vmatpush1.msra.mxu0 %v4563
  %4629 = vmatprep.subr.mxu0 0.0
  %4630 = vmatpush1.msra.mxu0 %v4562
  %4631 = vmatprep.subr.mxu0 0.0
  %4632 = vmatpush1.msra.mxu0 %v4557
  %4633 = vmatprep.subr.mxu0 0.0
  %4634 = vmatpush1.msra.mxu0 %v4556
  %4635 = vmatprep.subr.mxu0 0.0
  %4636 = vmatpush2.msra.mxu0 0.0
  %4637 = vmatprep.subr.mxu0 0.0
  %4638 = vmatpush2.msra.mxu0 0.0
  %4639 = vmatprep.subr.mxu0 0.0
  %4640 = vmatpush2.msra.mxu0 0.0
  %4641 = vmatprep.subr.mxu0 0.0
  %4642 = vmatpush2.msra.mxu0 0.0
  %4643 = vmatprep.subr.mxu0 0.0
  %4644 = vmatpush2.msra.mxu0 0.0
  %4645 = vmatprep.subr.mxu0 0.0
  %4646 = vmatpush2.msra.mxu0 0.0
  %4647 = vmatprep.subr.mxu0 0.0
  %4648 = vmatpush2.msra.mxu0 0.0
  %4649 = vmatprep.subr.mxu0 0.0
  %4650 = vmatpush2.msra.mxu0 0.0
  %4651 = vmatprep.subr.mxu0 0.0
  %4652 = vmatpush2.msra.mxu0 0.0
  %4653 = vmatprep.subr.mxu0 0.0
  %4654 = vmatpush2.msra.mxu0 0.0
  %4655 = vmatprep.subr.mxu0 0.0
  %4656 = vmatpush2.msra.mxu0 0.0
  %4657 = vmatprep.subr.mxu0 0.0
  %4658 = vmatpush2.msra.mxu0 0.0
  %4659 = vmatprep.subr.mxu0 0.0
  %4660 = vmatpush2.msra.mxu0 0.0
  %4661 = vmatprep.subr.mxu0 0.0
  %4662 = vmatpush2.msra.mxu0 0.0
  %4663 = vmatprep.subr.mxu0 0.0
  %4664 = vmatpush2.msra.mxu0 %v4599
  %4665 = vmatprep.subr.mxu0 0.0
  %4666 = vmatpush2.msra.mxu0 %v4598
  %4667 = vmatprep.mubr.f32.mxu0 %v4601
  %4668 = vmatmul.mubr.f32.gmra.mxu0 %v4550
  %v4669 = vpop.f32.mrf.mxu0
  %v4670 = vadd.f32 0.0, %v4669
  %v4671 = vpop.f32.mrf.mxu0
  %4672 = vdwg.mxu0
  %vm4673 = vcmp.ge.f32.partialorder %v4670, 0.0
  %v4674 = vmul.f32 %v4670, 0.01
  %v4675 = vsel %vm4673, %v4670, %v4674
  %v4676 = vld [vmem:[%s19] sm:$0xff]
  %4677 = vrot.lane.b32.xlu0 %v4675, 9
  %v4678 = vpop.permute.xlu0 %4677
  %v4679 = vmul.f32 %v4678, %v535
  %4680 = vrot.lane.b32.xlu0 %v4675, 8
  %v4681 = vpop.permute.xlu0 %4680
  %v4682 = vmul.f32 %v4681, %v595
  %4683 = vrot.lane.b32.xlu0 %v4675, 7
  %v4684 = vpop.permute.xlu0 %4683
  %v4685 = vmul.f32 %v4684, %v655
  %4686 = vrot.lane.b32.xlu0 %v4675, 1
  %v4687 = vpop.permute.xlu0 %4686
  %v4688 = vmul.f32 %v4687, %v715
  %4689 = vrot.lane.b32.xlu0 %v4675, 127
  %v4690 = vpop.permute.xlu0 %4689
  %v4691 = vmul.f32 %v4690, %v775
  %4692 = vrot.lane.b32.xlu0 %v4675, 121
  %v4693 = vpop.permute.xlu0 %4692
  %v4694 = vmul.f32 %v4693, %v835
  %4695 = vrot.lane.b32.xlu0 %v4675, 120
  %v4696 = vpop.permute.xlu0 %4695
  %v4697 = vmul.f32 %v4696, %v895
  %4698 = vrot.lane.b32.xlu0 %v4675, 119
  %v4699 = vpop.permute.xlu0 %4698
  %v4700 = vmul.f32 %v4699, %v955
  %vm4701 = vcmask 588800
  %v4703 = vsel %vm4701, %v4676, 0
  %4705 = vmatprep.subr.mxu0 0.0
  %4706 = vmatpush1.msra.mxu0 0.0
  %4707 = vmatprep.subr.mxu0 0.0
  %4708 = vmatpush1.msra.mxu0 0.0
  %4709 = vmatprep.subr.mxu0 0.0
  %4710 = vmatpush1.msra.mxu0 0.0
  %4711 = vmatprep.subr.mxu0 0.0
  %4712 = vmatpush1.msra.mxu0 0.0
  %4713 = vmatprep.subr.mxu0 0.0
  %4714 = vmatpush1.msra.mxu0 0.0
  %4715 = vmatprep.subr.mxu0 0.0
  %4716 = vmatpush1.msra.mxu0 0.0
  %4717 = vmatprep.subr.mxu0 0.0
  %4718 = vmatpush1.msra.mxu0 0.0
  %4719 = vmatprep.subr.mxu0 0.0
  %4720 = vmatpush1.msra.mxu0 %v4700
  %4721 = vmatprep.subr.mxu0 0.0
  %4722 = vmatpush1.msra.mxu0 %v4697
  %4723 = vmatprep.subr.mxu0 0.0
  %4724 = vmatpush1.msra.mxu0 %v4694
  %4725 = vmatprep.subr.mxu0 0.0
  %4726 = vmatpush1.msra.mxu0 %v4691
  %4727 = vmatprep.subr.mxu0 0.0
  %4728 = vmatpush1.msra.mxu0 %v4675
  %4729 = vmatprep.subr.mxu0 0.0
  %4730 = vmatpush1.msra.mxu0 %v4688
  %4731 = vmatprep.subr.mxu0 0.0
  %4732 = vmatpush1.msra.mxu0 %v4685
  %4733 = vmatprep.subr.mxu0 0.0
  %4734 = vmatpush1.msra.mxu0 %v4682
  %4735 = vmatprep.subr.mxu0 0.0
  %4736 = vmatpush1.msra.mxu0 %v4679
  %4737 = vmatprep.subr.mxu0 0.0
  %4738 = vmatpush2.msra.mxu0 0.0
  %4739 = vmatprep.subr.mxu0 0.0
  %4740 = vmatpush2.msra.mxu0 0.0
  %4741 = vmatprep.subr.mxu0 0.0
  %4742 = vmatpush2.msra.mxu0 0.0
  %4743 = vmatprep.subr.mxu0 0.0
  %4744 = vmatpush2.msra.mxu0 0.0
  %4745 = vmatprep.subr.mxu0 0.0
  %4746 = vmatpush2.msra.mxu0 0.0
  %4747 = vmatprep.subr.mxu0 0.0
  %4748 = vmatpush2.msra.mxu0 0.0
  %4749 = vmatprep.subr.mxu0 0.0
  %4750 = vmatpush2.msra.mxu0 0.0
  %4751 = vmatprep.subr.mxu0 0.0
  %4752 = vmatpush2.msra.mxu0 0.0
  %4753 = vmatprep.subr.mxu0 0.0
  %4754 = vmatpush2.msra.mxu0 0.0
  %4755 = vmatprep.subr.mxu0 0.0
  %4756 = vmatpush2.msra.mxu0 0.0
  %4757 = vmatprep.subr.mxu0 0.0
  %4758 = vmatpush2.msra.mxu0 0.0
  %4759 = vmatprep.subr.mxu0 0.0
  %4760 = vmatpush2.msra.mxu0 0.0
  %4761 = vmatprep.subr.mxu0 0.0
  %4762 = vmatpush2.msra.mxu0 0.0
  %4763 = vmatprep.subr.mxu0 0.0
  %4764 = vmatpush2.msra.mxu0 0.0
  %4765 = vmatprep.subr.mxu0 0.0
  %4766 = vmatpush2.msra.mxu0 0.0
  %4767 = vmatprep.subr.mxu0 0.0
  %4768 = vmatpush2.msra.mxu0 0.0
  %4769 = vmatprep.mubr.f32.mxu0 0.0
  %4770 = vmatmul.mubr.f32.gmra.mxu0 %v4703
  %v4771 = vpop.f32.mrf.mxu0
  %v4772 = vadd.f32 0.0, %v4771
  %v4773 = vpop.f32.mrf.mxu0
  %4774 = vdwg.mxu0
  %4775 = vst [vmem:[%s20] sm:$0xff] %v4772
  // Predicated region
  $region82: #{restormer_decoder_hr.1} parent=0 // pred_check
    _
  $region83: #{restormer_decoder_hr.1} parent=0 // pred_check_branch
    %4777 = sbr.rel (0) target = $region85
  $region84: #{restormer_decoder_hr.1} parent=0 // pred_region
    _
  $region85: #{restormer_decoder_hr.1} parent=0 // pred_fallthru
    _
  // Predicated region
  $region86: #{restormer_decoder_hr.1} parent=0 // pred_check
    _
  $region87: #{restormer_decoder_hr.1} parent=0 // pred_check_branch
    %4779 = sbr.rel (0) target = $region89
  $region88: #{restormer_decoder_hr.1} parent=0 // pred_region
    _
  $region89: #{restormer_decoder_hr.1} parent=0 // pred_fallthru
    _

</llo_original>
